<compile_context>
chip_gen: v7x
topology: tpu7x:2x2x1
jax: 0.10.0
libtpu: 0.0.40
codegen_flags: <defaults>
</compile_context>

<pallas_src>
import functools

import jax
import jax.numpy as jnp
from jax.experimental import pallas as pl
from jax.experimental.pallas import tpu as pltpu


MAX_BLOCK_B = 32  # max instances per grid step


def _pick_block_b(n):
    """Instances per grid step: 32 for real workloads, smaller (multiple of 8)
    for tiny inputs so we don't over-pad. With max_instances=100 this yields a
    4-step grid (even -> both v7x TensorCores get work)."""
    if n >= 2 * MAX_BLOCK_B:
        return MAX_BLOCK_B
    return min(MAX_BLOCK_B, max(8, -(-n // 8) * 8))


# ----------------------------- fused kernel ---------------------------------

def _fused_dcl_kernel(x_ref, w1_ref, b12_ref, w2_ref, o_ref, *,
                      num_samples, tau):
    """Projection head + channel L2-normalize + dense contrastive loss for a
    block of B instances.

    x_ref   : (B, 3*S, C) bf16 gathered raw features, rows = [anchor|pos|neg]
    w1_ref  : (C, C) bf16   first 1x1-conv weight
    b12_ref : (2, C) bf16   [b1; b2]
    w2_ref  : (C, C) bf16   second 1x1-conv weight
    o_ref   : (1, B, 128) f32 per-instance losses broadcast along lanes
    """
    B, P, C = x_ref.shape
    S = num_samples

    b = b12_ref[...].astype(jnp.float32)                       # (2, C)
    b1 = b[0:1, :]
    b2 = b[1:2, :]

    # ---- projection head: conv1x1 -> ReLU -> conv1x1 as two bf16 GEMMs ----
    x = x_ref[...].reshape(B * P, C)                            # bf16
    h = jnp.dot(x, w1_ref[...], preferred_element_type=jnp.float32) + b1
    h = jnp.maximum(h, 0.0)                                     # ReLU(inplace)
    y = jnp.dot(h.astype(jnp.bfloat16), w2_ref[...],
                preferred_element_type=jnp.float32) + b2

    # ---- F.normalize(dim=channel): x / max(||x||, 1e-12) via rsqrt --------
    sumsq = jnp.sum(y * y, axis=-1, keepdims=True)
    y = y * jax.lax.rsqrt(jnp.maximum(sumsq, 1e-24))

    # ---- similarities: one batched einsum vs. the [pos | neg] slab --------
    yb = y.astype(jnp.bfloat16).reshape(B, P, C)
    a = yb[:, :S, :]                                            # (B, S, C)
    pn = yb[:, S:, :]                                           # (B, 2S, C)
    inv_tau = 1.0 / tau
    sim = jnp.einsum('bsc,btc->bst', a, pn,
                     preferred_element_type=jnp.float32) * inv_tau  # (B,S,2S)

    # lane-iota mask splits pos (t < S) and neg (t >= S) columns without any
    # lane slicing / relayout.
    col = jax.lax.broadcasted_iota(jnp.int32, sim.shape, 2)
    is_neg = col >= S

    # loss = -log(exp_ap / (exp_ap + sum_t exp_an))
    #      = softplus(logsumexp(sim_an, -1) - sim_ap)   (overflow safe)
    neg_sim = jnp.where(is_neg, sim, -jnp.inf)
    m = jnp.max(neg_sim, axis=-1, keepdims=True)
    lse_an = m + jnp.log(jnp.sum(jnp.exp(neg_sim - m), axis=-1, keepdims=True))
    z = lse_an - sim                                            # (B, S, 2S)
    sp = jnp.maximum(z, 0.0) + jnp.log(1.0 + jnp.exp(-jnp.abs(z)))
    sp = jnp.where(is_neg, 0.0, sp)                             # keep pos cols

    per_inst = jnp.sum(sp, axis=2)                              # (B, S)
    per_inst = jnp.sum(per_inst, axis=1, keepdims=True) * (1.0 / (S * S))
    # pack B scalar losses as a lane-dense (B, 128) block (unmasked stores)
    o_ref[0] = jnp.broadcast_to(per_inst, (B, 128)).astype(jnp.float32)


def dense_contrast_losses(sampled_feats, w1, b12, w2, *, num_samples, tau,
                          block_b):
    """sampled_feats: (N_pad, 3*S, C) bf16 gathered pixels -> (N_pad,) f32."""
    N_pad, P, C = sampled_feats.shape
    assert P == 3 * num_samples
    assert N_pad % block_b == 0
    G = N_pad // block_b
    kern = functools.partial(_fused_dcl_kernel, num_samples=num_samples,
                             tau=tau)
    out = pl.pallas_call(
        kern,
        out_shape=jax.ShapeDtypeStruct((G, block_b, 128), jnp.float32),
        grid_spec=pltpu.PrefetchScalarGridSpec(
            num_scalar_prefetch=0,
            grid=(G,),
            in_specs=[
                pl.BlockSpec((block_b, P, C), lambda g: (g, 0, 0)),
                pl.BlockSpec((C, C), lambda g: (0, 0)),
                pl.BlockSpec((2, C), lambda g: (0, 0)),
                pl.BlockSpec((C, C), lambda g: (0, 0)),
            ],
            out_specs=pl.BlockSpec((1, block_b, 128), lambda g: (g, 0, 0)),
        ),
        compiler_params=pltpu.CompilerParams(
            dimension_semantics=("parallel",)),   # instance blocks independent
    )(sampled_feats, w1, b12, w2)
    return out[:, :, 0].reshape(-1)               # (N_pad,)


# ----------------------------- module wrapper --------------------------------

def dense_contrast_loss_forward(feats_nchw, gt_masks, params, *,
                                num_samples=32, temperature=0.07,
                                loss_weight=1.2, max_instances=100,
                                sample_key=None):
    """Forward pass of DenseContrastLoss.

    feats_nchw : (N, C, H, W) float32 (PyTorch NCHW convention)
    gt_masks   : (N, H, W) bool
    params     : dict with w1 (C,C), b1 (1,C), w2 (C,C), b2 (1,C)
    Returns scalar loss.
    # TODO(synk): `logits` / `gt_classes` are accepted by the PyTorch loss but
    # never used in dense_contrast_loss, so they are omitted here.
    # TODO(synk): get_gt_masks (crop_and_resize) and event-storage logging have
    # no Pallas equivalent; the boolean masks are passed in directly.
    """
    N, C, H, W = feats_nchw.shape
    HW = H * W
    N = min(N, max_instances)
    feats_nchw = feats_nchw[:N]
    gt_masks = gt_masks[:N]

    # Keep the channels-first layout; never transpose the full feature map.
    feats_cf = feats_nchw.reshape(N, C, HW)                 # (N, C, HW)
    flat_mask = gt_masks.reshape(N, HW).astype(jnp.float32)

    if sample_key is None:
        sample_key = jax.random.PRNGKey(42)

    # --- auto_sample: uniform-with-replacement sampling of pixel indices ----
    # TODO(synk): torch.randint over nonzero indices has no Pallas equivalent;
    # sampling is done with jax.random.choice in the wrapper (same
    # distribution, different RNG stream).
    def sample_one(k, weights):
        s = jnp.sum(weights)
        p = jnp.where(s > 0, weights / jnp.maximum(s, 1.0),
                      jnp.ones((HW,), jnp.float32) / HW)
        return jax.random.choice(k, HW, shape=(num_samples,), replace=True, p=p)

    samp_keys = jax.random.split(sample_key, N * 3).reshape(N, 3, 2)
    anchor_idx = jax.vmap(sample_one)(samp_keys[:, 0], flat_mask)
    pos_idx = jax.vmap(sample_one)(samp_keys[:, 1], flat_mask)
    neg_idx = jax.vmap(sample_one)(samp_keys[:, 2], 1.0 - flat_mask)
    all_idx = jnp.concatenate([anchor_idx, pos_idx, neg_idx], axis=1)  # (N,3S)

    # Gather BEFORE projection, straight from the channels-first layout.
    # Projection + L2-normalize are per-pixel, so projecting only the 3*S
    # sampled pixels is mathematically identical; only the tiny (N, C, 3S)
    # gather result is transposed to channels-last.
    sampled_cf = jax.vmap(lambda f, idx: f[:, idx])(feats_cf, all_idx)  # (N,C,3S)
    sampled = jnp.transpose(sampled_cf, (0, 2, 1)).astype(jnp.bfloat16)  # (N,3S,C)

    # pad the instance dim to a multiple of block_b for the kernel grid
    block_b = _pick_block_b(N)
    n_pad = pl.cdiv(N, block_b) * block_b
    sampled = jnp.pad(sampled, ((0, n_pad - N), (0, 0), (0, 0)))

    w1 = params["w1"].astype(jnp.bfloat16)
    w2 = params["w2"].astype(jnp.bfloat16)
    b12 = jnp.concatenate([params["b1"], params["b2"]],
                          axis=0).astype(jnp.bfloat16)          # (2, C)

    per_inst = dense_contrast_losses(
        sampled, w1, b12, w2,
        num_samples=num_samples, tau=temperature, block_b=block_b)[:N]  # (N,)

    # valid-instance filter: num_samples < area < H*W - num_samples
    area = jnp.sum(flat_mask, axis=1)
    valid = ((area > num_samples) & (area < HW - num_samples)).astype(jnp.float32)
    num_valid = jnp.sum(valid)
    mean_loss = jnp.sum(per_inst * valid) / jnp.maximum(num_valid, 1.0)
    # zero-loss fallback when no instance is valid (matches feats.sum() * 0)
    return jnp.where(num_valid > 0, mean_loss * loss_weight, jnp.float32(0.0))


# ----------------------------- demo ------------------------------------------

if __name__ == "__main__":
    N, C, H, W = 2, 32, 16, 16          # conv_dim=32 for a small synthetic run
    NUM_SAMPLES = 32
    TAU = 0.07
    LOSS_WEIGHT = 1.2

    key = jax.random.PRNGKey(0)
    k_feats, k_mask, k_w1, k_b1, k_w2, k_b2, k_samp = jax.random.split(key, 7)

    feats = jax.random.normal(k_feats, (N, C, H, W), jnp.float32)
    gt_masks = jax.random.bernoulli(k_mask, 0.5, (N, H, W))             # bool

    # deterministic synthetic weights for the 1x1-conv projection head
    params = {
        "w1": jax.random.normal(k_w1, (C, C), jnp.float32) * 0.05,
        "b1": jax.random.normal(k_b1, (1, C), jnp.float32) * 0.01,
        "w2": jax.random.normal(k_w2, (C, C), jnp.float32) * 0.05,
        "b2": jax.random.normal(k_b2, (1, C), jnp.float32) * 0.01,
    }

    loss = dense_contrast_loss_forward(
        feats, gt_masks, params,
        num_samples=NUM_SAMPLES, temperature=TAU,
        loss_weight=LOSS_WEIGHT, sample_key=k_samp)

    loss = jax.block_until_ready(loss)
    assert jnp.isfinite(loss), "loss is not finite"
    print("KERNEL_OK")
</pallas_src>

<mosaic_0001>
module attributes {stable_mosaic.version = 11 : i64} {
  func.func @_fused_dcl_kernel(%arg0: i32, %arg1: memref<8x96x32xbf16, #tpu.memory_space<vmem>>, %arg2: memref<32x32xbf16, #tpu.memory_space<vmem>>, %arg3: memref<2x32xbf16, #tpu.memory_space<vmem>>, %arg4: memref<32x32xbf16, #tpu.memory_space<vmem>>, %arg5: memref<1x8x128xf32, #tpu.memory_space<vmem>>) attributes {dimension_semantics = [#tpu.dimension_semantics<parallel>], iteration_bounds = array<i64: 1>, scalar_prefetch = 0 : i64, scratch_operands = 0 : i64, tpu.core_type = #tpu.core_type<tc>, window_params = [{transform_indices = @transform_0, window_bounds = array<i64: 8, 96, 32>}, {pipeline_mode = #tpu.pipeline_mode<synchronous>, transform_indices = @transform_1, window_bounds = array<i64: 32, 32>}, {pipeline_mode = #tpu.pipeline_mode<synchronous>, transform_indices = @transform_2, window_bounds = array<i64: 2, 32>}, {pipeline_mode = #tpu.pipeline_mode<synchronous>, transform_indices = @transform_3, window_bounds = array<i64: 32, 32>}, {transform_indices = @transform_4, window_bounds = array<i64: 1, 8, 128>}]} {
    %c0 = arith.constant 0 : index
    %c0_0 = arith.constant 0 : index
    %0 = vector.load %arg3[%c0, %c0_0] : memref<2x32xbf16, #tpu.memory_space<vmem>>, vector<2x32xbf16>
    %1 = arith.extf %0 : vector<2x32xbf16> to vector<2x32xf32>
    %2 = vector.extract_strided_slice %1 {offsets = [0, 0], sizes = [1, 32], strides = [1, 1]} : vector<2x32xf32> to vector<1x32xf32>
    %3 = vector.extract_strided_slice %1 {offsets = [1, 0], sizes = [1, 32], strides = [1, 1]} : vector<2x32xf32> to vector<1x32xf32>
    %c0_1 = arith.constant 0 : index
    %c0_2 = arith.constant 0 : index
    %c0_3 = arith.constant 0 : index
    %4 = vector.load %arg1[%c0_1, %c0_2, %c0_3] : memref<8x96x32xbf16, #tpu.memory_space<vmem>>, vector<8x96x32xbf16>
    %5 = vector.shape_cast %4 : vector<8x96x32xbf16> to vector<768x32xbf16>
    %c0_4 = arith.constant 0 : index
    %c0_5 = arith.constant 0 : index
    %6 = vector.load %arg2[%c0_4, %c0_5] : memref<32x32xbf16, #tpu.memory_space<vmem>>, vector<32x32xbf16>
    %cst = arith.constant dense<0.000000e+00> : vector<768x32xf32>
    %7 = tpu.matmul %5, %6, %cst {dimension_numbers = #tpu.dot_dimension_numbers<[1], [0], [0], [1], [0, 0, 1, 1], [], []>} : vector<768x32xbf16>, vector<32x32xbf16>, vector<768x32xf32> -> vector<768x32xf32>
    %8 = vector.broadcast %2 : vector<1x32xf32> to vector<768x32xf32>
    %9 = arith.addf %7, %8 : vector<768x32xf32>
    %cst_6 = arith.constant 0.000000e+00 : f32
    %10 = vector.broadcast %cst_6 : f32 to vector<768x32xf32>
    %11 = arith.maximumf %9, %10 : vector<768x32xf32>
    %12 = arith.truncf %11 : vector<768x32xf32> to vector<768x32xbf16>
    %c0_7 = arith.constant 0 : index
    %c0_8 = arith.constant 0 : index
    %13 = vector.load %arg4[%c0_7, %c0_8] : memref<32x32xbf16, #tpu.memory_space<vmem>>, vector<32x32xbf16>
    %cst_9 = arith.constant dense<0.000000e+00> : vector<768x32xf32>
    %14 = tpu.matmul %12, %13, %cst_9 {dimension_numbers = #tpu.dot_dimension_numbers<[1], [0], [0], [1], [0, 0, 1, 1], [], []>} : vector<768x32xbf16>, vector<32x32xbf16>, vector<768x32xf32> -> vector<768x32xf32>
    %15 = vector.broadcast %3 : vector<1x32xf32> to vector<768x32xf32>
    %16 = arith.addf %14, %15 : vector<768x32xf32>
    %17 = arith.mulf %16, %16 : vector<768x32xf32>
    %cst_10 = arith.constant dense<0.000000e+00> : vector<768xf32>
    %18 = vector.multi_reduction <add>, %17, %cst_10 [1] : vector<768x32xf32> to vector<768xf32>
    %19 = vector.shape_cast %18 : vector<768xf32> to vector<768x1xf32>
    %cst_11 = arith.constant 1.000000e-24 : f32
    %20 = vector.broadcast %cst_11 : f32 to vector<768x1xf32>
    %21 = arith.maximumf %19, %20 : vector<768x1xf32>
    %22 = math.rsqrt %21 : vector<768x1xf32>
    %23 = vector.broadcast %22 : vector<768x1xf32> to vector<768x32xf32>
    %24 = arith.mulf %16, %23 : vector<768x32xf32>
    %25 = arith.truncf %24 : vector<768x32xf32> to vector<768x32xbf16>
    %26 = vector.shape_cast %25 : vector<768x32xbf16> to vector<8x96x32xbf16>
    %27 = vector.extract_strided_slice %26 {offsets = [0, 0, 0], sizes = [8, 32, 32], strides = [1, 1, 1]} : vector<8x96x32xbf16> to vector<8x32x32xbf16>
    %28 = vector.extract_strided_slice %26 {offsets = [0, 32, 0], sizes = [8, 64, 32], strides = [1, 1, 1]} : vector<8x96x32xbf16> to vector<8x64x32xbf16>
    "tpu.trace_start"() <{level = 10 : i32, message = "bsc,btc->bst"}> : () -> ()
    %cst_12 = arith.constant dense<0.000000e+00> : vector<8x32x64xf32>
    %29 = tpu.matmul %27, %28, %cst_12 {dimension_numbers = #tpu.dot_dimension_numbers<[2], [2], [1], [1], [0, 0, 0, 1, 1, 1], [0], [0]>} : vector<8x32x32xbf16>, vector<8x64x32xbf16>, vector<8x32x64xf32> -> vector<8x32x64xf32>
    "tpu.trace_stop"() : () -> ()
    %cst_13 = arith.constant 14.2857141 : f32
    %30 = vector.broadcast %cst_13 : f32 to vector<8x32x64xf32>
    %31 = arith.mulf %29, %30 : vector<8x32x64xf32>
    %32 = tpu.iota {dimensions = array<i32: 2>} : vector<8x32x64xi32>
    %c32_i32 = arith.constant 32 : i32
    %33 = vector.broadcast %c32_i32 : i32 to vector<8x32x64xi32>
    %34 = arith.cmpi sge, %32, %33 : vector<8x32x64xi32>
    %cst_14 = arith.constant 0xFF800000 : f32
    %35 = vector.broadcast %cst_14 : f32 to vector<8x32x64xf32>
    %36 = arith.select %34, %31, %35 : vector<8x32x64xi1>, vector<8x32x64xf32>
    %cst_15 = arith.constant dense<0xFF800000> : vector<8x32xf32>
    %37 = vector.multi_reduction <maximumf>, %36, %cst_15 [2] : vector<8x32x64xf32> to vector<8x32xf32>
    %38 = vector.shape_cast %37 : vector<8x32xf32> to vector<8x32x1xf32>
    %39 = vector.broadcast %38 : vector<8x32x1xf32> to vector<8x32x64xf32>
    %40 = arith.subf %36, %39 : vector<8x32x64xf32>
    %41 = math.exp %40 : vector<8x32x64xf32>
    %cst_16 = arith.constant dense<0.000000e+00> : vector<8x32xf32>
    %42 = vector.multi_reduction <add>, %41, %cst_16 [2] : vector<8x32x64xf32> to vector<8x32xf32>
    %43 = vector.shape_cast %42 : vector<8x32xf32> to vector<8x32x1xf32>
    %44 = math.log %43 : vector<8x32x1xf32>
    %45 = arith.addf %38, %44 : vector<8x32x1xf32>
    %46 = vector.broadcast %45 : vector<8x32x1xf32> to vector<8x32x64xf32>
    %47 = arith.subf %46, %31 : vector<8x32x64xf32>
    %cst_17 = arith.constant 0.000000e+00 : f32
    %48 = vector.broadcast %cst_17 : f32 to vector<8x32x64xf32>
    %49 = arith.maximumf %47, %48 : vector<8x32x64xf32>
    %50 = math.absf %47 : vector<8x32x64xf32>
    %cst_18 = arith.constant 0.000000e+00 : f32
    %51 = vector.broadcast %cst_18 : f32 to vector<8x32x64xf32>
    %52 = arith.subf %51, %50 : vector<8x32x64xf32>
    %53 = math.exp %52 : vector<8x32x64xf32>
    %cst_19 = arith.constant 1.000000e+00 : f32
    %54 = vector.broadcast %cst_19 : f32 to vector<8x32x64xf32>
    %55 = arith.addf %54, %53 : vector<8x32x64xf32>
    %56 = math.log %55 : vector<8x32x64xf32>
    %57 = arith.addf %49, %56 : vector<8x32x64xf32>
    %cst_20 = arith.constant 0.000000e+00 : f32
    %58 = vector.broadcast %cst_20 : f32 to vector<8x32x64xf32>
    %59 = arith.select %34, %58, %57 : vector<8x32x64xi1>, vector<8x32x64xf32>
    %cst_21 = arith.constant dense<0.000000e+00> : vector<8x32xf32>
    %60 = vector.multi_reduction <add>, %59, %cst_21 [2] : vector<8x32x64xf32> to vector<8x32xf32>
    %cst_22 = arith.constant dense<0.000000e+00> : vector<8xf32>
    %61 = vector.multi_reduction <add>, %60, %cst_22 [1] : vector<8x32xf32> to vector<8xf32>
    %62 = vector.shape_cast %61 : vector<8xf32> to vector<8x1xf32>
    %cst_23 = arith.constant 9.765625E-4 : f32
    %63 = vector.broadcast %cst_23 : f32 to vector<8x1xf32>
    %64 = arith.mulf %62, %63 : vector<8x1xf32>
    %65 = vector.shape_cast %64 : vector<8x1xf32> to vector<8x1xf32>
    %66 = vector.broadcast %65 : vector<8x1xf32> to vector<8x128xf32>
    %c0_24 = arith.constant 0 : index
    %c0_25 = arith.constant 0 : index
    %c0_26 = arith.constant 0 : index
    %67 = vector.load %arg5[%c0_24, %c0_25, %c0_26] : memref<1x8x128xf32, #tpu.memory_space<vmem>>, vector<1x8x128xf32>
    %68 = vector.shape_cast %67 : vector<1x8x128xf32> to vector<8x128xf32>
    %69 = vector.shape_cast %66 : vector<8x128xf32> to vector<1x8x128xf32>
    tpu.vector_store %arg5[%c0_24, %c0_25, %c0_26], %69 {strides = array<i32>} : memref<1x8x128xf32, #tpu.memory_space<vmem>>, vector<1x8x128xf32>,
    return
  }
  func.func @transform_0(%arg0: i32) -> (i32, i32, i32) {
    %c0_i32 = arith.constant 0 : i32
    %c0_i32_0 = arith.constant 0 : i32
    %c0_i32_1 = arith.constant 0 : i32
    return %arg0, %c0_i32, %c0_i32_0 : i32, i32, i32
  }
  func.func @transform_1(%arg0: i32) -> (i32, i32) {
    %c0_i32 = arith.constant 0 : i32
    %c0_i32_0 = arith.constant 0 : i32
    %c0_i32_1 = arith.constant 0 : i32
    return %c0_i32, %c0_i32_0 : i32, i32
  }
  func.func @transform_2(%arg0: i32) -> (i32, i32) {
    %c0_i32 = arith.constant 0 : i32
    %c0_i32_0 = arith.constant 0 : i32
    %c0_i32_1 = arith.constant 0 : i32
    return %c0_i32, %c0_i32_0 : i32, i32
  }
  func.func @transform_3(%arg0: i32) -> (i32, i32) {
    %c0_i32 = arith.constant 0 : i32
    %c0_i32_0 = arith.constant 0 : i32
    %c0_i32_1 = arith.constant 0 : i32
    return %c0_i32, %c0_i32_0 : i32, i32
  }
  func.func @transform_4(%arg0: i32) -> (i32, i32, i32) {
    %c0_i32 = arith.constant 0 : i32
    %c0_i32_0 = arith.constant 0 : i32
    %c0_i32_1 = arith.constant 0 : i32
    return %arg0, %c0_i32, %c0_i32_0 : i32, i32, i32
  }
}

</mosaic_0001>

<llo_original>
// kernel: tpu_custom_call.1
$region0: #{tpu_custom_call.1}
  #allocation0 [shape = 'u32[]', space=smem, size = 0x4, offset = 0x4, fixed_abs, tag = 'smem constant byte address 0x4 - core index']
  #allocation1 [shape = 'u32[144,128]{1,0:T(1,128)}', space=vmem, size = 0x12000, scoped, tag = 'internal scratch']
  %s0 = inlined_call_operand.vmem [shape: bf16[8,96,32], index: 0, kind: input, shape index: {}]
  %s1 = inlined_call_operand.vmem [shape: bf16[32,32], index: 1, kind: input, shape index: {}]
  %s2 = inlined_call_operand.vmem [shape: bf16[2,32], index: 2, kind: input, shape index: {}]
  %s3 = inlined_call_operand.vmem [shape: bf16[32,32], index: 3, kind: input, shape index: {}]
  %s4 = inlined_call_operand.hbm [shape: f32[1,8,128], index: 4, kind: output, shape index: {}]
  %s5 = sld [smem:[#allocation0]]
  $region26: #{tpu_custom_call.1} parent=0
    _
  %s7 = ssub.s32 1, %s5
  %s8 = scalar_select 0, %s7, %s5
  $region1: #{tpu_custom_call.1} parent=0
    #allocation2 [shape = 'u8[4096]{0}', space=vmem, size = 0x1000, scoped, tag = 'output window, operand 0, single buffered']
    #allocation3 [shape = 's32[1]{0}', space=sflag, size = 0x4, scoped, tag = 'scoped memory for tpu_custom_call.1']
    %9 = vsyncpa [#allocation3], 0
    // Predicated region
    $region2: #{tpu_custom_call.1} parent=1 // pred_check
      _
    $region3: #{tpu_custom_call.1} parent=1 // pred_check_branch
      %11 = sbr.rel (0) target = $region5
    $region4: #{tpu_custom_call.1} parent=1 // pred_region
      _
    $region5: #{tpu_custom_call.1} parent=1 // pred_fallthru
      _
    // Predicated region
    $region6: #{tpu_custom_call.1} parent=1 // pred_check
      _
    $region7: #{tpu_custom_call.1} parent=1 // pred_check_branch
      %13 = sbr.rel (0) target = $region9
    $region8: #{tpu_custom_call.1} parent=1 // pred_region
      _
    $region9: #{tpu_custom_call.1} parent=1 // pred_fallthru
      _
    // Predicated region
    $region10: #{tpu_custom_call.1} parent=1 // pred_check
      _
    $region11: #{tpu_custom_call.1} parent=1 // pred_check_branch
      %15 = sbr.rel (0) target = $region13
    $region12: #{tpu_custom_call.1} parent=1 // pred_region
      _
    $region13: #{tpu_custom_call.1} parent=1 // pred_fallthru
      _
    // Predicated region
    $region14: #{tpu_custom_call.1} parent=1 // pred_check
      _
    $region15: #{tpu_custom_call.1} parent=1 // pred_check_branch
      %17 = sbr.rel (0) target = $region17
    $region16: #{tpu_custom_call.1} parent=1 // pred_region
      _
    $region17: #{tpu_custom_call.1} parent=1 // pred_fallthru
      _
    %v19 = vld [vmem:[%s2] sm:$0x1]
    %v20 = vunpack.c.l.bf16 %v19
    %v21 = vld [vmem:[%s0] sm:$0xf]
    %v22 = vld [vmem:[%s0 + $0x4] sm:$0xf]
    %v23 = vld [vmem:[%s0 + $0x8] sm:$0xf]
    %v24 = vld [vmem:[%s0 + $0xc] sm:$0xf]
    %v25 = vld [vmem:[%s0 + $0x10] sm:$0xf]
    %v26 = vld [vmem:[%s0 + $0x14] sm:$0xf]
    %v27 = vld [vmem:[%s0 + $0x18] sm:$0xf]
    %v28 = vld [vmem:[%s0 + $0x1c] sm:$0xf]
    %v29 = vld [vmem:[%s0 + $0x20] sm:$0xf]
    %v30 = vld [vmem:[%s0 + $0x24] sm:$0xf]
    %v31 = vld [vmem:[%s0 + $0x28] sm:$0xf]
    %v32 = vld [vmem:[%s0 + $0x2c] sm:$0xf]
    %v33 = vld [vmem:[%s0 + $0x30] sm:$0xf]
    %v34 = vld [vmem:[%s0 + $0x34] sm:$0xf]
    %v35 = vld [vmem:[%s0 + $0x38] sm:$0xf]
    %v36 = vld [vmem:[%s0 + $0x3c] sm:$0xf]
    %v37 = vld [vmem:[%s0 + $0x40] sm:$0xf]
    %v38 = vld [vmem:[%s0 + $0x44] sm:$0xf]
    %v39 = vld [vmem:[%s0 + $0x48] sm:$0xf]
    %v40 = vld [vmem:[%s0 + $0x4c] sm:$0xf]
    %v41 = vld [vmem:[%s0 + $0x50] sm:$0xf]
    %v42 = vld [vmem:[%s0 + $0x54] sm:$0xf]
    %v43 = vld [vmem:[%s0 + $0x58] sm:$0xf]
    %v44 = vld [vmem:[%s0 + $0x5c] sm:$0xf]
    %v45 = vld [vmem:[%s0 + $0x60] sm:$0xf]
    %v46 = vld [vmem:[%s0 + $0x64] sm:$0xf]
    %v47 = vld [vmem:[%s0 + $0x68] sm:$0xf]
    %v48 = vld [vmem:[%s0 + $0x6c] sm:$0xf]
    %v49 = vld [vmem:[%s0 + $0x70] sm:$0xf]
    %v50 = vld [vmem:[%s0 + $0x74] sm:$0xf]
    %v51 = vld [vmem:[%s0 + $0x78] sm:$0xf]
    %v52 = vld [vmem:[%s0 + $0x7c] sm:$0xf]
    %v53 = vld [vmem:[%s0 + $0x80] sm:$0xf]
    %v54 = vld [vmem:[%s0 + $0x84] sm:$0xf]
    %v55 = vld [vmem:[%s0 + $0x88] sm:$0xf]
    %v56 = vld [vmem:[%s0 + $0x8c] sm:$0xf]
    %v57 = vld [vmem:[%s0 + $0x90] sm:$0xf]
    %v58 = vld [vmem:[%s0 + $0x94] sm:$0xf]
    %v59 = vld [vmem:[%s0 + $0x98] sm:$0xf]
    %v60 = vld [vmem:[%s0 + $0x9c] sm:$0xf]
    %v61 = vld [vmem:[%s0 + $0xa0] sm:$0xf]
    %v62 = vld [vmem:[%s0 + $0xa4] sm:$0xf]
    %v63 = vld [vmem:[%s0 + $0xa8] sm:$0xf]
    %v64 = vld [vmem:[%s0 + $0xac] sm:$0xf]
    %v65 = vld [vmem:[%s0 + $0xb0] sm:$0xf]
    %v66 = vld [vmem:[%s0 + $0xb4] sm:$0xf]
    %v67 = vld [vmem:[%s0 + $0xb8] sm:$0xf]
    %v68 = vld [vmem:[%s0 + $0xbc] sm:$0xf]
    %v69 = vld [vmem:[%s0 + $0xc0] sm:$0xf]
    %v70 = vld [vmem:[%s0 + $0xc4] sm:$0xf]
    %v71 = vld [vmem:[%s0 + $0xc8] sm:$0xf]
    %v72 = vld [vmem:[%s0 + $0xcc] sm:$0xf]
    %v73 = vld [vmem:[%s0 + $0xd0] sm:$0xf]
    %v74 = vld [vmem:[%s0 + $0xd4] sm:$0xf]
    %v75 = vld [vmem:[%s0 + $0xd8] sm:$0xf]
    %v76 = vld [vmem:[%s0 + $0xdc] sm:$0xf]
    %v77 = vld [vmem:[%s0 + $0xe0] sm:$0xf]
    %v78 = vld [vmem:[%s0 + $0xe4] sm:$0xf]
    %v79 = vld [vmem:[%s0 + $0xe8] sm:$0xf]
    %v80 = vld [vmem:[%s0 + $0xec] sm:$0xf]
    %v81 = vld [vmem:[%s0 + $0xf0] sm:$0xf]
    %v82 = vld [vmem:[%s0 + $0xf4] sm:$0xf]
    %v83 = vld [vmem:[%s0 + $0xf8] sm:$0xf]
    %v84 = vld [vmem:[%s0 + $0xfc] sm:$0xf]
    %v85 = vld [vmem:[%s0 + $0x100] sm:$0xf]
    %v86 = vld [vmem:[%s0 + $0x104] sm:$0xf]
    %v87 = vld [vmem:[%s0 + $0x108] sm:$0xf]
    %v88 = vld [vmem:[%s0 + $0x10c] sm:$0xf]
    %v89 = vld [vmem:[%s0 + $0x110] sm:$0xf]
    %v90 = vld [vmem:[%s0 + $0x114] sm:$0xf]
    %v91 = vld [vmem:[%s0 + $0x118] sm:$0xf]
    %v92 = vld [vmem:[%s0 + $0x11c] sm:$0xf]
    %v93 = vld [vmem:[%s0 + $0x120] sm:$0xf]
    %v94 = vld [vmem:[%s0 + $0x124] sm:$0xf]
    %v95 = vld [vmem:[%s0 + $0x128] sm:$0xf]
    %v96 = vld [vmem:[%s0 + $0x12c] sm:$0xf]
    %v97 = vld [vmem:[%s0 + $0x130] sm:$0xf]
    %v98 = vld [vmem:[%s0 + $0x134] sm:$0xf]
    %v99 = vld [vmem:[%s0 + $0x138] sm:$0xf]
    %v100 = vld [vmem:[%s0 + $0x13c] sm:$0xf]
    %v101 = vld [vmem:[%s0 + $0x140] sm:$0xf]
    %v102 = vld [vmem:[%s0 + $0x144] sm:$0xf]
    %v103 = vld [vmem:[%s0 + $0x148] sm:$0xf]
    %v104 = vld [vmem:[%s0 + $0x14c] sm:$0xf]
    %v105 = vld [vmem:[%s0 + $0x150] sm:$0xf]
    %v106 = vld [vmem:[%s0 + $0x154] sm:$0xf]
    %v107 = vld [vmem:[%s0 + $0x158] sm:$0xf]
    %v108 = vld [vmem:[%s0 + $0x15c] sm:$0xf]
    %v109 = vld [vmem:[%s0 + $0x160] sm:$0xf]
    %v110 = vld [vmem:[%s0 + $0x164] sm:$0xf]
    %v111 = vld [vmem:[%s0 + $0x168] sm:$0xf]
    %v112 = vld [vmem:[%s0 + $0x16c] sm:$0xf]
    %v113 = vld [vmem:[%s0 + $0x170] sm:$0xf]
    %v114 = vld [vmem:[%s0 + $0x174] sm:$0xf]
    %v115 = vld [vmem:[%s0 + $0x178] sm:$0xf]
    %v116 = vld [vmem:[%s0 + $0x17c] sm:$0xf]
    %v117 = vld [vmem:[%s1] sm:$0xf]
    %v118 = vld [vmem:[%s1 + $0x4] sm:$0xf]
    %v119 = vld [vmem:[%s1 + $0x8] sm:$0xf]
    %v120 = vld [vmem:[%s1 + $0xc] sm:$0xf]
    %v121 = vlaneseq
    %v122 = vshrl.u32 %v121, 7
    %v123 = vsub.s32 0, %v122
    %v124 = vrot.slane %v20, %v123
    %v221 = vunpack.c.l.b16 %v21
    %v222 = vunpack.c.l.b16 %v22
    %v223 = vunpack.c.l.b16 %v23
    %v224 = vunpack.c.l.b16 %v24
    %v225 = vunpack.c.l.b16 %v25
    %v226 = vunpack.c.l.b16 %v26
    %v227 = vunpack.c.l.b16 %v27
    %v228 = vunpack.c.l.b16 %v28
    %v229 = vunpack.c.l.b16 %v29
    %v230 = vunpack.c.l.b16 %v30
    %v231 = vunpack.c.l.b16 %v31
    %v232 = vunpack.c.l.b16 %v32
    %v233 = vunpack.c.l.b16 %v33
    %v234 = vunpack.c.l.b16 %v34
    %v235 = vunpack.c.l.b16 %v35
    %v236 = vunpack.c.l.b16 %v36
    %v237 = vunpack.c.l.b16 %v37
    %v238 = vunpack.c.l.b16 %v38
    %v239 = vunpack.c.l.b16 %v39
    %v240 = vunpack.c.l.b16 %v40
    %v241 = vunpack.c.l.b16 %v41
    %v242 = vunpack.c.l.b16 %v42
    %v243 = vunpack.c.l.b16 %v43
    %v244 = vunpack.c.l.b16 %v44
    %v245 = vunpack.c.l.b16 %v45
    %v246 = vunpack.c.l.b16 %v46
    %v247 = vunpack.c.l.b16 %v47
    %v248 = vunpack.c.l.b16 %v48
    %v249 = vunpack.c.l.b16 %v49
    %v250 = vunpack.c.l.b16 %v50
    %v251 = vunpack.c.l.b16 %v51
    %v252 = vunpack.c.l.b16 %v52
    %v253 = vunpack.c.l.b16 %v53
    %v254 = vunpack.c.l.b16 %v54
    %v255 = vunpack.c.l.b16 %v55
    %v256 = vunpack.c.l.b16 %v56
    %v257 = vunpack.c.l.b16 %v57
    %v258 = vunpack.c.l.b16 %v58
    %v259 = vunpack.c.l.b16 %v59
    %v260 = vunpack.c.l.b16 %v60
    %v261 = vunpack.c.l.b16 %v61
    %v262 = vunpack.c.l.b16 %v62
    %v263 = vunpack.c.l.b16 %v63
    %v264 = vunpack.c.l.b16 %v64
    %v265 = vunpack.c.l.b16 %v65
    %v266 = vunpack.c.l.b16 %v66
    %v267 = vunpack.c.l.b16 %v67
    %v268 = vunpack.c.l.b16 %v68
    %v269 = vunpack.c.l.b16 %v69
    %v270 = vunpack.c.l.b16 %v70
    %v271 = vunpack.c.l.b16 %v71
    %v272 = vunpack.c.l.b16 %v72
    %v273 = vunpack.c.l.b16 %v73
    %v274 = vunpack.c.l.b16 %v74
    %v275 = vunpack.c.l.b16 %v75
    %v276 = vunpack.c.l.b16 %v76
    %v277 = vunpack.c.l.b16 %v77
    %v278 = vunpack.c.l.b16 %v78
    %v279 = vunpack.c.l.b16 %v79
    %v280 = vunpack.c.l.b16 %v80
    %v281 = vunpack.c.l.b16 %v81
    %v282 = vunpack.c.l.b16 %v82
    %v283 = vunpack.c.l.b16 %v83
    %v284 = vunpack.c.l.b16 %v84
    %v285 = vunpack.c.l.b16 %v85
    %v286 = vunpack.c.l.b16 %v86
    %v287 = vunpack.c.l.b16 %v87
    %v288 = vunpack.c.l.b16 %v88
    %v289 = vunpack.c.l.b16 %v89
    %v290 = vunpack.c.l.b16 %v90
    %v291 = vunpack.c.l.b16 %v91
    %v292 = vunpack.c.l.b16 %v92
    %v293 = vunpack.c.l.b16 %v93
    %v294 = vunpack.c.l.b16 %v94
    %v295 = vunpack.c.l.b16 %v95
    %v296 = vunpack.c.l.b16 %v96
    %v297 = vunpack.c.l.b16 %v97
    %v298 = vunpack.c.l.b16 %v98
    %v299 = vunpack.c.l.b16 %v99
    %v300 = vunpack.c.l.b16 %v100
    %v301 = vunpack.c.l.b16 %v101
    %v302 = vunpack.c.l.b16 %v102
    %v303 = vunpack.c.l.b16 %v103
    %v304 = vunpack.c.l.b16 %v104
    %v305 = vunpack.c.l.b16 %v105
    %v306 = vunpack.c.l.b16 %v106
    %v307 = vunpack.c.l.b16 %v107
    %v308 = vunpack.c.l.b16 %v108
    %v309 = vunpack.c.l.b16 %v109
    %v310 = vunpack.c.l.b16 %v110
    %v311 = vunpack.c.l.b16 %v111
    %v312 = vunpack.c.l.b16 %v112
    %v313 = vunpack.c.l.b16 %v113
    %v314 = vunpack.c.l.b16 %v114
    %v315 = vunpack.c.l.b16 %v115
    %v316 = vunpack.c.l.b16 %v116
    %v317 = vpack.c.b16 %v222, %v221
    %v318 = vpack.c.b16 %v224, %v223
    %v319 = vpack.c.b16 %v226, %v225
    %v320 = vpack.c.b16 %v228, %v227
    %v321 = vpack.c.b16 %v230, %v229
    %v322 = vpack.c.b16 %v232, %v231
    %v323 = vpack.c.b16 %v234, %v233
    %v324 = vpack.c.b16 %v236, %v235
    %v325 = vpack.c.b16 %v238, %v237
    %v326 = vpack.c.b16 %v240, %v239
    %v327 = vpack.c.b16 %v242, %v241
    %v328 = vpack.c.b16 %v244, %v243
    %v329 = vpack.c.b16 %v246, %v245
    %v330 = vpack.c.b16 %v248, %v247
    %v331 = vpack.c.b16 %v250, %v249
    %v332 = vpack.c.b16 %v252, %v251
    %v333 = vpack.c.b16 %v254, %v253
    %v334 = vpack.c.b16 %v256, %v255
    %v335 = vpack.c.b16 %v258, %v257
    %v336 = vpack.c.b16 %v260, %v259
    %v337 = vpack.c.b16 %v262, %v261
    %v338 = vpack.c.b16 %v264, %v263
    %v339 = vpack.c.b16 %v266, %v265
    %v340 = vpack.c.b16 %v268, %v267
    %v341 = vpack.c.b16 %v270, %v269
    %v342 = vpack.c.b16 %v272, %v271
    %v343 = vpack.c.b16 %v274, %v273
    %v344 = vpack.c.b16 %v276, %v275
    %v345 = vpack.c.b16 %v278, %v277
    %v346 = vpack.c.b16 %v280, %v279
    %v347 = vpack.c.b16 %v282, %v281
    %v348 = vpack.c.b16 %v284, %v283
    %v349 = vpack.c.b16 %v286, %v285
    %v350 = vpack.c.b16 %v288, %v287
    %v351 = vpack.c.b16 %v290, %v289
    %v352 = vpack.c.b16 %v292, %v291
    %v353 = vpack.c.b16 %v294, %v293
    %v354 = vpack.c.b16 %v296, %v295
    %v355 = vpack.c.b16 %v298, %v297
    %v356 = vpack.c.b16 %v300, %v299
    %v357 = vpack.c.b16 %v302, %v301
    %v358 = vpack.c.b16 %v304, %v303
    %v359 = vpack.c.b16 %v306, %v305
    %v360 = vpack.c.b16 %v308, %v307
    %v361 = vpack.c.b16 %v310, %v309
    %v362 = vpack.c.b16 %v312, %v311
    %v363 = vpack.c.b16 %v314, %v313
    %v364 = vpack.c.b16 %v316, %v315
    %v369 = vunpack.c.l.b16 %v117
    %v370 = vunpack.c.l.b16 %v118
    %v371 = vunpack.c.l.b16 %v119
    %v372 = vunpack.c.l.b16 %v120
    %v373 = vpack.c.b16 %v370, %v369
    %v374 = vpack.c.b16 %v372, %v371
    %vm377 = vcmask 261120
    %v379 = vsel %vm377, %v317, 0
    %v382 = vsel %vm377, %v318, 0
    %v385 = vsel %vm377, %v319, 0
    %v388 = vsel %vm377, %v320, 0
    %v391 = vsel %vm377, %v321, 0
    %v394 = vsel %vm377, %v322, 0
    %v397 = vsel %vm377, %v323, 0
    %v400 = vsel %vm377, %v324, 0
    %v403 = vsel %vm377, %v325, 0
    %v406 = vsel %vm377, %v326, 0
    %v409 = vsel %vm377, %v327, 0
    %v412 = vsel %vm377, %v328, 0
    %v415 = vsel %vm377, %v329, 0
    %v418 = vsel %vm377, %v330, 0
    %v421 = vsel %vm377, %v331, 0
    %v424 = vsel %vm377, %v332, 0
    %v427 = vsel %vm377, %v333, 0
    %v430 = vsel %vm377, %v334, 0
    %v433 = vsel %vm377, %v335, 0
    %v436 = vsel %vm377, %v336, 0
    %v439 = vsel %vm377, %v337, 0
    %v442 = vsel %vm377, %v338, 0
    %v445 = vsel %vm377, %v339, 0
    %v448 = vsel %vm377, %v340, 0
    %v451 = vsel %vm377, %v341, 0
    %v454 = vsel %vm377, %v342, 0
    %v457 = vsel %vm377, %v343, 0
    %v460 = vsel %vm377, %v344, 0
    %v463 = vsel %vm377, %v345, 0
    %v466 = vsel %vm377, %v346, 0
    %v469 = vsel %vm377, %v347, 0
    %v472 = vsel %vm377, %v348, 0
    %v475 = vsel %vm377, %v349, 0
    %v478 = vsel %vm377, %v350, 0
    %v481 = vsel %vm377, %v351, 0
    %v484 = vsel %vm377, %v352, 0
    %v487 = vsel %vm377, %v353, 0
    %v490 = vsel %vm377, %v354, 0
    %v493 = vsel %vm377, %v355, 0
    %v496 = vsel %vm377, %v356, 0
    %v499 = vsel %vm377, %v357, 0
    %v502 = vsel %vm377, %v358, 0
    %v505 = vsel %vm377, %v359, 0
    %v508 = vsel %vm377, %v360, 0
    %v511 = vsel %vm377, %v361, 0
    %v514 = vsel %vm377, %v362, 0
    %v517 = vsel %vm377, %v363, 0
    %v520 = vsel %vm377, %v364, 0
    %522 = vmatprep.subr.bf16.mxu0 0
    %523 = vmatpush1.bf16.msra.mxu0 %v373
    %524 = vmatprep.subr.bf16.mxu0 0
    %525 = vmatpush1.bf16.msra.mxu0 %v374
    %526 = vmatprep.subr.bf16.mxu0 0
    %527 = vmatpush1.bf16.msra.mxu0 0
    %528 = vmatprep.subr.bf16.mxu0 0
    %529 = vmatpush1.bf16.msra.mxu0 0
    %530 = vmatprep.subr.bf16.mxu0 0
    %531 = vmatpush1.bf16.msra.mxu0 0
    %532 = vmatprep.subr.bf16.mxu0 0
    %533 = vmatpush1.bf16.msra.mxu0 0
    %534 = vmatprep.subr.bf16.mxu0 0
    %535 = vmatpush1.bf16.msra.mxu0 0
    %536 = vmatprep.subr.bf16.mxu0 0
    %537 = vmatpush1.bf16.msra.mxu0 0
    %538 = vmatprep.subr.bf16.mxu0 0
    %539 = vmatpush1.bf16.msra.mxu0 0
    %540 = vmatprep.subr.bf16.mxu0 0
    %541 = vmatpush1.bf16.msra.mxu0 0
    %542 = vmatprep.subr.bf16.mxu0 0
    %543 = vmatpush1.bf16.msra.mxu0 0
    %544 = vmatprep.subr.bf16.mxu0 0
    %545 = vmatpush1.bf16.msra.mxu0 0
    %546 = vmatprep.subr.bf16.mxu0 0
    %547 = vmatpush1.bf16.msra.mxu0 0
    %548 = vmatprep.subr.bf16.mxu0 0
    %549 = vmatpush1.bf16.msra.mxu0 0
    %550 = vmatprep.subr.bf16.mxu0 0
    %551 = vmatpush1.bf16.msra.mxu0 0
    %552 = vmatprep.subr.bf16.mxu0 0
    %553 = vmatpush1.bf16.msra.mxu0 0
    %554 = vmatprep.mubr.bf16.mxu0 0
    %555 = vmatmul.mubr.bf16.gmra.mrb[0].mxu0 %v379
    %v556 = vpop.f32.mrb[0].mxu0
    %v557 = vadd.f32 %v124, %v556
    %v558 = vpop.f32.mrb[0].mxu0
    %v559 = vpop.f32.mrb[0].mxu0
    %v560 = vadd.f32 %v124, %v559
    %v561 = vpop.f32.mrb[0].mxu0
    %562 = vmatprep.mubr.bf16.mxu0 0
    %563 = vmatmul.mubr.bf16.gmra.mrb[0].mxu0 %v382
    %v564 = vpop.f32.mrb[0].mxu0
    %v565 = vadd.f32 %v124, %v564
    %v566 = vpop.f32.mrb[0].mxu0
    %v567 = vpop.f32.mrb[0].mxu0
    %v568 = vadd.f32 %v124, %v567
    %v569 = vpop.f32.mrb[0].mxu0
    %570 = vmatprep.mubr.bf16.mxu0 0
    %571 = vmatmul.mubr.bf16.gmra.mrb[0].mxu0 %v385
    %v572 = vpop.f32.mrb[0].mxu0
    %v573 = vadd.f32 %v124, %v572
    %v574 = vpop.f32.mrb[0].mxu0
    %v575 = vpop.f32.mrb[0].mxu0
    %v576 = vadd.f32 %v124, %v575
    %v577 = vpop.f32.mrb[0].mxu0
    %578 = vmatprep.mubr.bf16.mxu0 0
    %579 = vmatmul.mubr.bf16.gmra.mrb[0].mxu0 %v388
    %v580 = vpop.f32.mrb[0].mxu0
    %v581 = vadd.f32 %v124, %v580
    %v582 = vpop.f32.mrb[0].mxu0
    %v583 = vpop.f32.mrb[0].mxu0
    %v584 = vadd.f32 %v124, %v583
    %v585 = vpop.f32.mrb[0].mxu0
    %586 = vmatprep.mubr.bf16.mxu0 0
    %587 = vmatmul.mubr.bf16.gmra.mrb[0].mxu0 %v391
    %v588 = vpop.f32.mrb[0].mxu0
    %v589 = vadd.f32 %v124, %v588
    %v590 = vpop.f32.mrb[0].mxu0
    %v591 = vpop.f32.mrb[0].mxu0
    %v592 = vadd.f32 %v124, %v591
    %v593 = vpop.f32.mrb[0].mxu0
    %594 = vmatprep.mubr.bf16.mxu0 0
    %595 = vmatmul.mubr.bf16.gmra.mrb[0].mxu0 %v394
    %v596 = vpop.f32.mrb[0].mxu0
    %v597 = vadd.f32 %v124, %v596
    %v598 = vpop.f32.mrb[0].mxu0
    %v599 = vpop.f32.mrb[0].mxu0
    %v600 = vadd.f32 %v124, %v599
    %v601 = vpop.f32.mrb[0].mxu0
    %602 = vmatprep.mubr.bf16.mxu0 0
    %603 = vmatmul.mubr.bf16.gmra.mrb[0].mxu0 %v397
    %v604 = vpop.f32.mrb[0].mxu0
    %v605 = vadd.f32 %v124, %v604
    %v606 = vpop.f32.mrb[0].mxu0
    %v607 = vpop.f32.mrb[0].mxu0
    %v608 = vadd.f32 %v124, %v607
    %v609 = vpop.f32.mrb[0].mxu0
    %610 = vmatprep.mubr.bf16.mxu0 0
    %611 = vmatmul.mubr.bf16.gmra.mrb[0].mxu0 %v400
    %v612 = vpop.f32.mrb[0].mxu0
    %v613 = vadd.f32 %v124, %v612
    %v614 = vpop.f32.mrb[0].mxu0
    %v615 = vpop.f32.mrb[0].mxu0
    %v616 = vadd.f32 %v124, %v615
    %v617 = vpop.f32.mrb[0].mxu0
    %618 = vmatprep.mubr.bf16.mxu0 0
    %619 = vmatmul.mubr.bf16.gmra.mrb[0].mxu0 %v403
    %v620 = vpop.f32.mrb[0].mxu0
    %v621 = vadd.f32 %v124, %v620
    %v622 = vpop.f32.mrb[0].mxu0
    %v623 = vpop.f32.mrb[0].mxu0
    %v624 = vadd.f32 %v124, %v623
    %v625 = vpop.f32.mrb[0].mxu0
    %626 = vmatprep.mubr.bf16.mxu0 0
    %627 = vmatmul.mubr.bf16.gmra.mrb[0].mxu0 %v406
    %v628 = vpop.f32.mrb[0].mxu0
    %v629 = vadd.f32 %v124, %v628
    %v630 = vpop.f32.mrb[0].mxu0
    %v631 = vpop.f32.mrb[0].mxu0
    %v632 = vadd.f32 %v124, %v631
    %v633 = vpop.f32.mrb[0].mxu0
    %634 = vmatprep.mubr.bf16.mxu0 0
    %635 = vmatmul.mubr.bf16.gmra.mrb[0].mxu0 %v409
    %v636 = vpop.f32.mrb[0].mxu0
    %v637 = vadd.f32 %v124, %v636
    %v638 = vpop.f32.mrb[0].mxu0
    %v639 = vpop.f32.mrb[0].mxu0
    %v640 = vadd.f32 %v124, %v639
    %v641 = vpop.f32.mrb[0].mxu0
    %642 = vmatprep.mubr.bf16.mxu0 0
    %643 = vmatmul.mubr.bf16.gmra.mrb[0].mxu0 %v412
    %v644 = vpop.f32.mrb[0].mxu0
    %v645 = vadd.f32 %v124, %v644
    %v646 = vpop.f32.mrb[0].mxu0
    %v647 = vpop.f32.mrb[0].mxu0
    %v648 = vadd.f32 %v124, %v647
    %v649 = vpop.f32.mrb[0].mxu0
    %650 = vmatprep.mubr.bf16.mxu0 0
    %651 = vmatmul.mubr.bf16.gmra.mrb[0].mxu0 %v415
    %v652 = vpop.f32.mrb[0].mxu0
    %v653 = vadd.f32 %v124, %v652
    %v654 = vpop.f32.mrb[0].mxu0
    %v655 = vpop.f32.mrb[0].mxu0
    %v656 = vadd.f32 %v124, %v655
    %v657 = vpop.f32.mrb[0].mxu0
    %658 = vmatprep.mubr.bf16.mxu0 0
    %659 = vmatmul.mubr.bf16.gmra.mrb[0].mxu0 %v418
    %v660 = vpop.f32.mrb[0].mxu0
    %v661 = vadd.f32 %v124, %v660
    %v662 = vpop.f32.mrb[0].mxu0
    %v663 = vpop.f32.mrb[0].mxu0
    %v664 = vadd.f32 %v124, %v663
    %v665 = vpop.f32.mrb[0].mxu0
    %666 = vmatprep.mubr.bf16.mxu0 0
    %667 = vmatmul.mubr.bf16.gmra.mrb[0].mxu0 %v421
    %v668 = vpop.f32.mrb[0].mxu0
    %v669 = vadd.f32 %v124, %v668
    %v670 = vpop.f32.mrb[0].mxu0
    %v671 = vpop.f32.mrb[0].mxu0
    %v672 = vadd.f32 %v124, %v671
    %v673 = vpop.f32.mrb[0].mxu0
    %674 = vmatprep.mubr.bf16.mxu0 0
    %675 = vmatmul.mubr.bf16.gmra.mrb[0].mxu0 %v424
    %v676 = vpop.f32.mrb[0].mxu0
    %v677 = vadd.f32 %v124, %v676
    %v678 = vpop.f32.mrb[0].mxu0
    %v679 = vpop.f32.mrb[0].mxu0
    %v680 = vadd.f32 %v124, %v679
    %v681 = vpop.f32.mrb[0].mxu0
    %682 = vmatprep.mubr.bf16.mxu0 0
    %683 = vmatmul.mubr.bf16.gmra.mrb[0].mxu0 %v427
    %v684 = vpop.f32.mrb[0].mxu0
    %v685 = vadd.f32 %v124, %v684
    %v686 = vpop.f32.mrb[0].mxu0
    %v687 = vpop.f32.mrb[0].mxu0
    %v688 = vadd.f32 %v124, %v687
    %v689 = vpop.f32.mrb[0].mxu0
    %690 = vmatprep.mubr.bf16.mxu0 0
    %691 = vmatmul.mubr.bf16.gmra.mrb[0].mxu0 %v430
    %v692 = vpop.f32.mrb[0].mxu0
    %v693 = vadd.f32 %v124, %v692
    %v694 = vpop.f32.mrb[0].mxu0
    %v695 = vpop.f32.mrb[0].mxu0
    %v696 = vadd.f32 %v124, %v695
    %v697 = vpop.f32.mrb[0].mxu0
    %698 = vmatprep.mubr.bf16.mxu0 0
    %699 = vmatmul.mubr.bf16.gmra.mrb[0].mxu0 %v433
    %v700 = vpop.f32.mrb[0].mxu0
    %v701 = vadd.f32 %v124, %v700
    %v702 = vpop.f32.mrb[0].mxu0
    %v703 = vpop.f32.mrb[0].mxu0
    %v704 = vadd.f32 %v124, %v703
    %v705 = vpop.f32.mrb[0].mxu0
    %706 = vmatprep.mubr.bf16.mxu0 0
    %707 = vmatmul.mubr.bf16.gmra.mrb[0].mxu0 %v436
    %v708 = vpop.f32.mrb[0].mxu0
    %v709 = vadd.f32 %v124, %v708
    %v710 = vpop.f32.mrb[0].mxu0
    %v711 = vpop.f32.mrb[0].mxu0
    %v712 = vadd.f32 %v124, %v711
    %v713 = vpop.f32.mrb[0].mxu0
    %714 = vmatprep.mubr.bf16.mxu0 0
    %715 = vmatmul.mubr.bf16.gmra.mrb[0].mxu0 %v439
    %v716 = vpop.f32.mrb[0].mxu0
    %v717 = vadd.f32 %v124, %v716
    %v718 = vpop.f32.mrb[0].mxu0
    %v719 = vpop.f32.mrb[0].mxu0
    %v720 = vadd.f32 %v124, %v719
    %v721 = vpop.f32.mrb[0].mxu0
    %722 = vmatprep.mubr.bf16.mxu0 0
    %723 = vmatmul.mubr.bf16.gmra.mrb[0].mxu0 %v442
    %v724 = vpop.f32.mrb[0].mxu0
    %v725 = vadd.f32 %v124, %v724
    %v726 = vpop.f32.mrb[0].mxu0
    %v727 = vpop.f32.mrb[0].mxu0
    %v728 = vadd.f32 %v124, %v727
    %v729 = vpop.f32.mrb[0].mxu0
    %730 = vmatprep.mubr.bf16.mxu0 0
    %731 = vmatmul.mubr.bf16.gmra.mrb[0].mxu0 %v445
    %v732 = vpop.f32.mrb[0].mxu0
    %v733 = vadd.f32 %v124, %v732
    %v734 = vpop.f32.mrb[0].mxu0
    %v735 = vpop.f32.mrb[0].mxu0
    %v736 = vadd.f32 %v124, %v735
    %v737 = vpop.f32.mrb[0].mxu0
    %738 = vmatprep.mubr.bf16.mxu0 0
    %739 = vmatmul.mubr.bf16.gmra.mrb[0].mxu0 %v448
    %v740 = vpop.f32.mrb[0].mxu0
    %v741 = vadd.f32 %v124, %v740
    %v742 = vpop.f32.mrb[0].mxu0
    %v743 = vpop.f32.mrb[0].mxu0
    %v744 = vadd.f32 %v124, %v743
    %v745 = vpop.f32.mrb[0].mxu0
    %746 = vmatprep.mubr.bf16.mxu0 0
    %747 = vmatmul.mubr.bf16.gmra.mrb[0].mxu0 %v451
    %v748 = vpop.f32.mrb[0].mxu0
    %v749 = vadd.f32 %v124, %v748
    %v750 = vpop.f32.mrb[0].mxu0
    %v751 = vpop.f32.mrb[0].mxu0
    %v752 = vadd.f32 %v124, %v751
    %v753 = vpop.f32.mrb[0].mxu0
    %754 = vmatprep.mubr.bf16.mxu0 0
    %755 = vmatmul.mubr.bf16.gmra.mrb[0].mxu0 %v454
    %v756 = vpop.f32.mrb[0].mxu0
    %v757 = vadd.f32 %v124, %v756
    %v758 = vpop.f32.mrb[0].mxu0
    %v759 = vpop.f32.mrb[0].mxu0
    %v760 = vadd.f32 %v124, %v759
    %v761 = vpop.f32.mrb[0].mxu0
    %762 = vmatprep.mubr.bf16.mxu0 0
    %763 = vmatmul.mubr.bf16.gmra.mrb[0].mxu0 %v457
    %v764 = vpop.f32.mrb[0].mxu0
    %v765 = vadd.f32 %v124, %v764
    %v766 = vpop.f32.mrb[0].mxu0
    %v767 = vpop.f32.mrb[0].mxu0
    %v768 = vadd.f32 %v124, %v767
    %v769 = vpop.f32.mrb[0].mxu0
    %770 = vmatprep.mubr.bf16.mxu0 0
    %771 = vmatmul.mubr.bf16.gmra.mrb[0].mxu0 %v460
    %v772 = vpop.f32.mrb[0].mxu0
    %v773 = vadd.f32 %v124, %v772
    %v774 = vpop.f32.mrb[0].mxu0
    %v775 = vpop.f32.mrb[0].mxu0
    %v776 = vadd.f32 %v124, %v775
    %v777 = vpop.f32.mrb[0].mxu0
    %778 = vmatprep.mubr.bf16.mxu0 0
    %779 = vmatmul.mubr.bf16.gmra.mrb[0].mxu0 %v463
    %v780 = vpop.f32.mrb[0].mxu0
    %v781 = vadd.f32 %v124, %v780
    %v782 = vpop.f32.mrb[0].mxu0
    %v783 = vpop.f32.mrb[0].mxu0
    %v784 = vadd.f32 %v124, %v783
    %v785 = vpop.f32.mrb[0].mxu0
    %786 = vmatprep.mubr.bf16.mxu0 0
    %787 = vmatmul.mubr.bf16.gmra.mrb[0].mxu0 %v466
    %v788 = vpop.f32.mrb[0].mxu0
    %v789 = vadd.f32 %v124, %v788
    %v790 = vpop.f32.mrb[0].mxu0
    %v791 = vpop.f32.mrb[0].mxu0
    %v792 = vadd.f32 %v124, %v791
    %v793 = vpop.f32.mrb[0].mxu0
    %794 = vmatprep.mubr.bf16.mxu0 0
    %795 = vmatmul.mubr.bf16.gmra.mrb[0].mxu0 %v469
    %v796 = vpop.f32.mrb[0].mxu0
    %v797 = vadd.f32 %v124, %v796
    %v798 = vpop.f32.mrb[0].mxu0
    %v799 = vpop.f32.mrb[0].mxu0
    %v800 = vadd.f32 %v124, %v799
    %v801 = vpop.f32.mrb[0].mxu0
    %802 = vmatprep.mubr.bf16.mxu0 0
    %803 = vmatmul.mubr.bf16.gmra.mrb[0].mxu0 %v472
    %v804 = vpop.f32.mrb[0].mxu0
    %v805 = vadd.f32 %v124, %v804
    %v806 = vpop.f32.mrb[0].mxu0
    %v807 = vpop.f32.mrb[0].mxu0
    %v808 = vadd.f32 %v124, %v807
    %v809 = vpop.f32.mrb[0].mxu0
    %810 = vmatprep.mubr.bf16.mxu0 0
    %811 = vmatmul.mubr.bf16.gmra.mrb[0].mxu0 %v475
    %v812 = vpop.f32.mrb[0].mxu0
    %v813 = vadd.f32 %v124, %v812
    %v814 = vpop.f32.mrb[0].mxu0
    %v815 = vpop.f32.mrb[0].mxu0
    %v816 = vadd.f32 %v124, %v815
    %v817 = vpop.f32.mrb[0].mxu0
    %818 = vmatprep.mubr.bf16.mxu0 0
    %819 = vmatmul.mubr.bf16.gmra.mrb[0].mxu0 %v478
    %v820 = vpop.f32.mrb[0].mxu0
    %v821 = vadd.f32 %v124, %v820
    %v822 = vpop.f32.mrb[0].mxu0
    %v823 = vpop.f32.mrb[0].mxu0
    %v824 = vadd.f32 %v124, %v823
    %v825 = vpop.f32.mrb[0].mxu0
    %826 = vmatprep.mubr.bf16.mxu0 0
    %827 = vmatmul.mubr.bf16.gmra.mrb[0].mxu0 %v481
    %v828 = vpop.f32.mrb[0].mxu0
    %v829 = vadd.f32 %v124, %v828
    %v830 = vpop.f32.mrb[0].mxu0
    %v831 = vpop.f32.mrb[0].mxu0
    %v832 = vadd.f32 %v124, %v831
    %v833 = vpop.f32.mrb[0].mxu0
    %834 = vmatprep.mubr.bf16.mxu0 0
    %835 = vmatmul.mubr.bf16.gmra.mrb[0].mxu0 %v484
    %v836 = vpop.f32.mrb[0].mxu0
    %v837 = vadd.f32 %v124, %v836
    %v838 = vpop.f32.mrb[0].mxu0
    %v839 = vpop.f32.mrb[0].mxu0
    %v840 = vadd.f32 %v124, %v839
    %v841 = vpop.f32.mrb[0].mxu0
    %842 = vmatprep.mubr.bf16.mxu0 0
    %843 = vmatmul.mubr.bf16.gmra.mrb[0].mxu0 %v487
    %v844 = vpop.f32.mrb[0].mxu0
    %v845 = vadd.f32 %v124, %v844
    %v846 = vpop.f32.mrb[0].mxu0
    %v847 = vpop.f32.mrb[0].mxu0
    %v848 = vadd.f32 %v124, %v847
    %v849 = vpop.f32.mrb[0].mxu0
    %850 = vmatprep.mubr.bf16.mxu0 0
    %851 = vmatmul.mubr.bf16.gmra.mrb[0].mxu0 %v490
    %v852 = vpop.f32.mrb[0].mxu0
    %v853 = vadd.f32 %v124, %v852
    %v854 = vpop.f32.mrb[0].mxu0
    %v855 = vpop.f32.mrb[0].mxu0
    %v856 = vadd.f32 %v124, %v855
    %v857 = vpop.f32.mrb[0].mxu0
    %858 = vmatprep.mubr.bf16.mxu0 0
    %859 = vmatmul.mubr.bf16.gmra.mrb[0].mxu0 %v493
    %v860 = vpop.f32.mrb[0].mxu0
    %v861 = vadd.f32 %v124, %v860
    %v862 = vpop.f32.mrb[0].mxu0
    %v863 = vpop.f32.mrb[0].mxu0
    %v864 = vadd.f32 %v124, %v863
    %v865 = vpop.f32.mrb[0].mxu0
    %866 = vmatprep.mubr.bf16.mxu0 0
    %867 = vmatmul.mubr.bf16.gmra.mrb[0].mxu0 %v496
    %v868 = vpop.f32.mrb[0].mxu0
    %v869 = vadd.f32 %v124, %v868
    %v870 = vpop.f32.mrb[0].mxu0
    %v871 = vpop.f32.mrb[0].mxu0
    %v872 = vadd.f32 %v124, %v871
    %v873 = vpop.f32.mrb[0].mxu0
    %874 = vmatprep.mubr.bf16.mxu0 0
    %875 = vmatmul.mubr.bf16.gmra.mrb[0].mxu0 %v499
    %v876 = vpop.f32.mrb[0].mxu0
    %v877 = vadd.f32 %v124, %v876
    %v878 = vpop.f32.mrb[0].mxu0
    %v879 = vpop.f32.mrb[0].mxu0
    %v880 = vadd.f32 %v124, %v879
    %v881 = vpop.f32.mrb[0].mxu0
    %882 = vmatprep.mubr.bf16.mxu0 0
    %883 = vmatmul.mubr.bf16.gmra.mrb[0].mxu0 %v502
    %v884 = vpop.f32.mrb[0].mxu0
    %v885 = vadd.f32 %v124, %v884
    %v886 = vpop.f32.mrb[0].mxu0
    %v887 = vpop.f32.mrb[0].mxu0
    %v888 = vadd.f32 %v124, %v887
    %v889 = vpop.f32.mrb[0].mxu0
    %890 = vmatprep.mubr.bf16.mxu0 0
    %891 = vmatmul.mubr.bf16.gmra.mrb[0].mxu0 %v505
    %v892 = vpop.f32.mrb[0].mxu0
    %v893 = vadd.f32 %v124, %v892
    %v894 = vpop.f32.mrb[0].mxu0
    %v895 = vpop.f32.mrb[0].mxu0
    %v896 = vadd.f32 %v124, %v895
    %v897 = vpop.f32.mrb[0].mxu0
    %898 = vmatprep.mubr.bf16.mxu0 0
    %899 = vmatmul.mubr.bf16.gmra.mrb[0].mxu0 %v508
    %v900 = vpop.f32.mrb[0].mxu0
    %v901 = vadd.f32 %v124, %v900
    %v902 = vpop.f32.mrb[0].mxu0
    %v903 = vpop.f32.mrb[0].mxu0
    %v904 = vadd.f32 %v124, %v903
    %v905 = vpop.f32.mrb[0].mxu0
    %906 = vmatprep.mubr.bf16.mxu0 0
    %907 = vmatmul.mubr.bf16.gmra.mrb[0].mxu0 %v511
    %v908 = vpop.f32.mrb[0].mxu0
    %v909 = vadd.f32 %v124, %v908
    %v910 = vpop.f32.mrb[0].mxu0
    %v911 = vpop.f32.mrb[0].mxu0
    %v912 = vadd.f32 %v124, %v911
    %v913 = vpop.f32.mrb[0].mxu0
    %914 = vmatprep.mubr.bf16.mxu0 0
    %915 = vmatmul.mubr.bf16.gmra.mrb[0].mxu0 %v514
    %v916 = vpop.f32.mrb[0].mxu0
    %v917 = vadd.f32 %v124, %v916
    %v918 = vpop.f32.mrb[0].mxu0
    %v919 = vpop.f32.mrb[0].mxu0
    %v920 = vadd.f32 %v124, %v919
    %v921 = vpop.f32.mrb[0].mxu0
    %922 = vmatprep.mubr.bf16.mxu0 0
    %923 = vmatmul.mubr.bf16.gmra.mrb[0].mxu0 %v517
    %v924 = vpop.f32.mrb[0].mxu0
    %v925 = vadd.f32 %v124, %v924
    %v926 = vpop.f32.mrb[0].mxu0
    %v927 = vpop.f32.mrb[0].mxu0
    %v928 = vadd.f32 %v124, %v927
    %v929 = vpop.f32.mrb[0].mxu0
    %930 = vmatprep.mubr.bf16.mxu0 0
    %931 = vmatmul.mubr.bf16.gmra.mrb[0].mxu0 %v520
    %v932 = vpop.f32.mrb[0].mxu0
    %v933 = vadd.f32 %v124, %v932
    %v934 = vpop.f32.mrb[0].mxu0
    %v935 = vpop.f32.mrb[0].mxu0
    %v936 = vadd.f32 %v124, %v935
    %v937 = vpop.f32.mrb[0].mxu0
    %938 = vdwg.mxu0
    %v939 = vmax.f32 %v557, 0.0
    %v940 = vmax.f32 %v560, 0.0
    %v941 = vmax.f32 %v565, 0.0
    %v942 = vmax.f32 %v568, 0.0
    %v943 = vmax.f32 %v573, 0.0
    %v944 = vmax.f32 %v576, 0.0
    %v945 = vmax.f32 %v581, 0.0
    %v946 = vmax.f32 %v584, 0.0
    %v947 = vmax.f32 %v589, 0.0
    %v948 = vmax.f32 %v592, 0.0
    %v949 = vmax.f32 %v597, 0.0
    %v950 = vmax.f32 %v600, 0.0
    %v951 = vmax.f32 %v605, 0.0
    %v952 = vmax.f32 %v608, 0.0
    %v953 = vmax.f32 %v613, 0.0
    %v954 = vmax.f32 %v616, 0.0
    %v955 = vmax.f32 %v621, 0.0
    %v956 = vmax.f32 %v624, 0.0
    %v957 = vmax.f32 %v629, 0.0
    %v958 = vmax.f32 %v632, 0.0
    %v959 = vmax.f32 %v637, 0.0
    %v960 = vmax.f32 %v640, 0.0
    %v961 = vmax.f32 %v645, 0.0
    %v962 = vmax.f32 %v648, 0.0
    %v963 = vmax.f32 %v653, 0.0
    %v964 = vmax.f32 %v656, 0.0
    %v965 = vmax.f32 %v661, 0.0
    %v966 = vmax.f32 %v664, 0.0
    %v967 = vmax.f32 %v669, 0.0
    %v968 = vmax.f32 %v672, 0.0
    %v969 = vmax.f32 %v677, 0.0
    %v970 = vmax.f32 %v680, 0.0
    %v971 = vmax.f32 %v685, 0.0
    %v972 = vmax.f32 %v688, 0.0
    %v973 = vmax.f32 %v693, 0.0
    %v974 = vmax.f32 %v696, 0.0
    %v975 = vmax.f32 %v701, 0.0
    %v976 = vmax.f32 %v704, 0.0
    %v977 = vmax.f32 %v709, 0.0
    %v978 = vmax.f32 %v712, 0.0
    %v979 = vmax.f32 %v717, 0.0
    %v980 = vmax.f32 %v720, 0.0
    %v981 = vmax.f32 %v725, 0.0
    %v982 = vmax.f32 %v728, 0.0
    %v983 = vmax.f32 %v733, 0.0
    %v984 = vmax.f32 %v736, 0.0
    %v985 = vmax.f32 %v741, 0.0
    %v986 = vmax.f32 %v744, 0.0
    %v987 = vmax.f32 %v749, 0.0
    %v988 = vmax.f32 %v752, 0.0
    %v989 = vmax.f32 %v757, 0.0
    %v990 = vmax.f32 %v760, 0.0
    %v991 = vmax.f32 %v765, 0.0
    %v992 = vmax.f32 %v768, 0.0
    %v993 = vmax.f32 %v773, 0.0
    %v994 = vmax.f32 %v776, 0.0
    %v995 = vmax.f32 %v781, 0.0
    %v996 = vmax.f32 %v784, 0.0
    %v997 = vmax.f32 %v789, 0.0
    %v998 = vmax.f32 %v792, 0.0
    %v999 = vmax.f32 %v797, 0.0
    %v1000 = vmax.f32 %v800, 0.0
    %v1001 = vmax.f32 %v805, 0.0
    %v1002 = vmax.f32 %v808, 0.0
    %v1003 = vmax.f32 %v813, 0.0
    %v1004 = vmax.f32 %v816, 0.0
    %v1005 = vmax.f32 %v821, 0.0
    %v1006 = vmax.f32 %v824, 0.0
    %v1007 = vmax.f32 %v829, 0.0
    %v1008 = vmax.f32 %v832, 0.0
    %v1009 = vmax.f32 %v837, 0.0
    %v1010 = vmax.f32 %v840, 0.0
    %v1011 = vmax.f32 %v845, 0.0
    %v1012 = vmax.f32 %v848, 0.0
    %v1013 = vmax.f32 %v853, 0.0
    %v1014 = vmax.f32 %v856, 0.0
    %v1015 = vmax.f32 %v861, 0.0
    %v1016 = vmax.f32 %v864, 0.0
    %v1017 = vmax.f32 %v869, 0.0
    %v1018 = vmax.f32 %v872, 0.0
    %v1019 = vmax.f32 %v877, 0.0
    %v1020 = vmax.f32 %v880, 0.0
    %v1021 = vmax.f32 %v885, 0.0
    %v1022 = vmax.f32 %v888, 0.0
    %v1023 = vmax.f32 %v893, 0.0
    %v1024 = vmax.f32 %v896, 0.0
    %v1025 = vmax.f32 %v901, 0.0
    %v1026 = vmax.f32 %v904, 0.0
    %v1027 = vmax.f32 %v909, 0.0
    %v1028 = vmax.f32 %v912, 0.0
    %v1029 = vmax.f32 %v917, 0.0
    %v1030 = vmax.f32 %v920, 0.0
    %v1031 = vmax.f32 %v925, 0.0
    %v1032 = vmax.f32 %v928, 0.0
    %v1033 = vmax.f32 %v933, 0.0
    %v1034 = vmax.f32 %v936, 0.0
    %v1035 = vpack.c.bf16 %v940, %v939
    %v1036 = vpack.c.bf16 %v942, %v941
    %v1037 = vpack.c.bf16 %v944, %v943
    %v1038 = vpack.c.bf16 %v946, %v945
    %v1039 = vpack.c.bf16 %v948, %v947
    %v1040 = vpack.c.bf16 %v950, %v949
    %v1041 = vpack.c.bf16 %v952, %v951
    %v1042 = vpack.c.bf16 %v954, %v953
    %v1043 = vpack.c.bf16 %v956, %v955
    %v1044 = vpack.c.bf16 %v958, %v957
    %v1045 = vpack.c.bf16 %v960, %v959
    %v1046 = vpack.c.bf16 %v962, %v961
    %v1047 = vpack.c.bf16 %v964, %v963
    %v1048 = vpack.c.bf16 %v966, %v965
    %v1049 = vpack.c.bf16 %v968, %v967
    %v1050 = vpack.c.bf16 %v970, %v969
    %v1051 = vpack.c.bf16 %v972, %v971
    %v1052 = vpack.c.bf16 %v974, %v973
    %v1053 = vpack.c.bf16 %v976, %v975
    %v1054 = vpack.c.bf16 %v978, %v977
    %v1055 = vpack.c.bf16 %v980, %v979
    %v1056 = vpack.c.bf16 %v982, %v981
    %v1057 = vpack.c.bf16 %v984, %v983
    %v1058 = vpack.c.bf16 %v986, %v985
    %v1059 = vpack.c.bf16 %v988, %v987
    %v1060 = vpack.c.bf16 %v990, %v989
    %v1061 = vpack.c.bf16 %v992, %v991
    %v1062 = vpack.c.bf16 %v994, %v993
    %v1063 = vpack.c.bf16 %v996, %v995
    %v1064 = vpack.c.bf16 %v998, %v997
    %v1065 = vpack.c.bf16 %v1000, %v999
    %v1066 = vpack.c.bf16 %v1002, %v1001
    %v1067 = vpack.c.bf16 %v1004, %v1003
    %v1068 = vpack.c.bf16 %v1006, %v1005
    %v1069 = vpack.c.bf16 %v1008, %v1007
    %v1070 = vpack.c.bf16 %v1010, %v1009
    %v1071 = vpack.c.bf16 %v1012, %v1011
    %v1072 = vpack.c.bf16 %v1014, %v1013
    %v1073 = vpack.c.bf16 %v1016, %v1015
    %v1074 = vpack.c.bf16 %v1018, %v1017
    %v1075 = vpack.c.bf16 %v1020, %v1019
    %v1076 = vpack.c.bf16 %v1022, %v1021
    %v1077 = vpack.c.bf16 %v1024, %v1023
    %v1078 = vpack.c.bf16 %v1026, %v1025
    %v1079 = vpack.c.bf16 %v1028, %v1027
    %v1080 = vpack.c.bf16 %v1030, %v1029
    %v1081 = vpack.c.bf16 %v1032, %v1031
    %v1082 = vpack.c.bf16 %v1034, %v1033
    %v1083 = vld [vmem:[%s3] sm:$0xf]
    %v1084 = vld [vmem:[%s3 + $0x4] sm:$0xf]
    %v1085 = vld [vmem:[%s3 + $0x8] sm:$0xf]
    %v1086 = vld [vmem:[%s3 + $0xc] sm:$0xf]
    %v1087 = vlaneseq
    %v1088 = vshrl.u32 %v1087, 7
    %v1089 = vsub.s32 1, %v1088
    %v1090 = vrot.slane %v20, %v1089
    %v1095 = vunpack.c.l.b16 %v1083
    %v1096 = vunpack.c.l.b16 %v1084
    %v1097 = vunpack.c.l.b16 %v1085
    %v1098 = vunpack.c.l.b16 %v1086
    %v1099 = vpack.c.b16 %v1096, %v1095
    %v1100 = vpack.c.b16 %v1098, %v1097
    %v1104 = vsel %vm377, %v1035, 0
    %v1107 = vsel %vm377, %v1036, 0
    %v1110 = vsel %vm377, %v1037, 0
    %v1113 = vsel %vm377, %v1038, 0
    %v1116 = vsel %vm377, %v1039, 0
    %v1119 = vsel %vm377, %v1040, 0
    %v1122 = vsel %vm377, %v1041, 0
    %v1125 = vsel %vm377, %v1042, 0
    %v1128 = vsel %vm377, %v1043, 0
    %v1131 = vsel %vm377, %v1044, 0
    %v1134 = vsel %vm377, %v1045, 0
    %v1137 = vsel %vm377, %v1046, 0
    %v1140 = vsel %vm377, %v1047, 0
    %v1143 = vsel %vm377, %v1048, 0
    %v1146 = vsel %vm377, %v1049, 0
    %v1149 = vsel %vm377, %v1050, 0
    %v1152 = vsel %vm377, %v1051, 0
    %v1155 = vsel %vm377, %v1052, 0
    %v1158 = vsel %vm377, %v1053, 0
    %v1161 = vsel %vm377, %v1054, 0
    %v1164 = vsel %vm377, %v1055, 0
    %v1167 = vsel %vm377, %v1056, 0
    %v1170 = vsel %vm377, %v1057, 0
    %v1173 = vsel %vm377, %v1058, 0
    %v1176 = vsel %vm377, %v1059, 0
    %v1179 = vsel %vm377, %v1060, 0
    %v1182 = vsel %vm377, %v1061, 0
    %v1185 = vsel %vm377, %v1062, 0
    %v1188 = vsel %vm377, %v1063, 0
    %v1191 = vsel %vm377, %v1064, 0
    %v1194 = vsel %vm377, %v1065, 0
    %v1197 = vsel %vm377, %v1066, 0
    %v1200 = vsel %vm377, %v1067, 0
    %v1203 = vsel %vm377, %v1068, 0
    %v1206 = vsel %vm377, %v1069, 0
    %v1209 = vsel %vm377, %v1070, 0
    %v1212 = vsel %vm377, %v1071, 0
    %v1215 = vsel %vm377, %v1072, 0
    %v1218 = vsel %vm377, %v1073, 0
    %v1221 = vsel %vm377, %v1074, 0
    %v1224 = vsel %vm377, %v1075, 0
    %v1227 = vsel %vm377, %v1076, 0
    %v1230 = vsel %vm377, %v1077, 0
    %v1233 = vsel %vm377, %v1078, 0
    %v1236 = vsel %vm377, %v1079, 0
    %v1239 = vsel %vm377, %v1080, 0
    %v1242 = vsel %vm377, %v1081, 0
    %v1245 = vsel %vm377, %v1082, 0
    %1247 = vmatprep.subr.bf16.mxu0 0
    %1248 = vmatpush1.bf16.msra.mxu0 %v1099
    %1249 = vmatprep.subr.bf16.mxu0 0
    %1250 = vmatpush1.bf16.msra.mxu0 %v1100
    %1251 = vmatprep.subr.bf16.mxu0 0
    %1252 = vmatpush1.bf16.msra.mxu0 0
    %1253 = vmatprep.subr.bf16.mxu0 0
    %1254 = vmatpush1.bf16.msra.mxu0 0
    %1255 = vmatprep.subr.bf16.mxu0 0
    %1256 = vmatpush1.bf16.msra.mxu0 0
    %1257 = vmatprep.subr.bf16.mxu0 0
    %1258 = vmatpush1.bf16.msra.mxu0 0
    %1259 = vmatprep.subr.bf16.mxu0 0
    %1260 = vmatpush1.bf16.msra.mxu0 0
    %1261 = vmatprep.subr.bf16.mxu0 0
    %1262 = vmatpush1.bf16.msra.mxu0 0
    %1263 = vmatprep.subr.bf16.mxu0 0
    %1264 = vmatpush1.bf16.msra.mxu0 0
    %1265 = vmatprep.subr.bf16.mxu0 0
    %1266 = vmatpush1.bf16.msra.mxu0 0
    %1267 = vmatprep.subr.bf16.mxu0 0
    %1268 = vmatpush1.bf16.msra.mxu0 0
    %1269 = vmatprep.subr.bf16.mxu0 0
    %1270 = vmatpush1.bf16.msra.mxu0 0
    %1271 = vmatprep.subr.bf16.mxu0 0
    %1272 = vmatpush1.bf16.msra.mxu0 0
    %1273 = vmatprep.subr.bf16.mxu0 0
    %1274 = vmatpush1.bf16.msra.mxu0 0
    %1275 = vmatprep.subr.bf16.mxu0 0
    %1276 = vmatpush1.bf16.msra.mxu0 0
    %1277 = vmatprep.subr.bf16.mxu0 0
    %1278 = vmatpush1.bf16.msra.mxu0 0
    %1279 = vmatprep.mubr.bf16.mxu0 0
    %1280 = vmatmul.mubr.bf16.gmra.mrb[0].mxu0 %v1104
    %v1281 = vpop.f32.mrb[0].mxu0
    %v1282 = vadd.f32 %v1090, %v1281
    %v1283 = vpop.f32.mrb[0].mxu0
    %v1284 = vpop.f32.mrb[0].mxu0
    %v1285 = vadd.f32 %v1090, %v1284
    %v1286 = vpop.f32.mrb[0].mxu0
    %1287 = vmatprep.mubr.bf16.mxu0 0
    %1288 = vmatmul.mubr.bf16.gmra.mrb[0].mxu0 %v1107
    %v1289 = vpop.f32.mrb[0].mxu0
    %v1290 = vadd.f32 %v1090, %v1289
    %v1291 = vpop.f32.mrb[0].mxu0
    %v1292 = vpop.f32.mrb[0].mxu0
    %v1293 = vadd.f32 %v1090, %v1292
    %v1294 = vpop.f32.mrb[0].mxu0
    %1295 = vmatprep.mubr.bf16.mxu0 0
    %1296 = vmatmul.mubr.bf16.gmra.mrb[0].mxu0 %v1110
    %v1297 = vpop.f32.mrb[0].mxu0
    %v1298 = vadd.f32 %v1090, %v1297
    %v1299 = vpop.f32.mrb[0].mxu0
    %v1300 = vpop.f32.mrb[0].mxu0
    %v1301 = vadd.f32 %v1090, %v1300
    %v1302 = vpop.f32.mrb[0].mxu0
    %1303 = vmatprep.mubr.bf16.mxu0 0
    %1304 = vmatmul.mubr.bf16.gmra.mrb[0].mxu0 %v1113
    %v1305 = vpop.f32.mrb[0].mxu0
    %v1306 = vadd.f32 %v1090, %v1305
    %v1307 = vpop.f32.mrb[0].mxu0
    %v1308 = vpop.f32.mrb[0].mxu0
    %v1309 = vadd.f32 %v1090, %v1308
    %v1310 = vpop.f32.mrb[0].mxu0
    %1311 = vmatprep.mubr.bf16.mxu0 0
    %1312 = vmatmul.mubr.bf16.gmra.mrb[0].mxu0 %v1116
    %v1313 = vpop.f32.mrb[0].mxu0
    %v1314 = vadd.f32 %v1090, %v1313
    %v1315 = vpop.f32.mrb[0].mxu0
    %v1316 = vpop.f32.mrb[0].mxu0
    %v1317 = vadd.f32 %v1090, %v1316
    %v1318 = vpop.f32.mrb[0].mxu0
    %1319 = vmatprep.mubr.bf16.mxu0 0
    %1320 = vmatmul.mubr.bf16.gmra.mrb[0].mxu0 %v1119
    %v1321 = vpop.f32.mrb[0].mxu0
    %v1322 = vadd.f32 %v1090, %v1321
    %v1323 = vpop.f32.mrb[0].mxu0
    %v1324 = vpop.f32.mrb[0].mxu0
    %v1325 = vadd.f32 %v1090, %v1324
    %v1326 = vpop.f32.mrb[0].mxu0
    %1327 = vmatprep.mubr.bf16.mxu0 0
    %1328 = vmatmul.mubr.bf16.gmra.mrb[0].mxu0 %v1122
    %v1329 = vpop.f32.mrb[0].mxu0
    %v1330 = vadd.f32 %v1090, %v1329
    %v1331 = vpop.f32.mrb[0].mxu0
    %v1332 = vpop.f32.mrb[0].mxu0
    %v1333 = vadd.f32 %v1090, %v1332
    %v1334 = vpop.f32.mrb[0].mxu0
    %1335 = vmatprep.mubr.bf16.mxu0 0
    %1336 = vmatmul.mubr.bf16.gmra.mrb[0].mxu0 %v1125
    %v1337 = vpop.f32.mrb[0].mxu0
    %v1338 = vadd.f32 %v1090, %v1337
    %v1339 = vpop.f32.mrb[0].mxu0
    %v1340 = vpop.f32.mrb[0].mxu0
    %v1341 = vadd.f32 %v1090, %v1340
    %v1342 = vpop.f32.mrb[0].mxu0
    %1343 = vmatprep.mubr.bf16.mxu0 0
    %1344 = vmatmul.mubr.bf16.gmra.mrb[0].mxu0 %v1128
    %v1345 = vpop.f32.mrb[0].mxu0
    %v1346 = vadd.f32 %v1090, %v1345
    %v1347 = vpop.f32.mrb[0].mxu0
    %v1348 = vpop.f32.mrb[0].mxu0
    %v1349 = vadd.f32 %v1090, %v1348
    %v1350 = vpop.f32.mrb[0].mxu0
    %1351 = vmatprep.mubr.bf16.mxu0 0
    %1352 = vmatmul.mubr.bf16.gmra.mrb[0].mxu0 %v1131
    %v1353 = vpop.f32.mrb[0].mxu0
    %v1354 = vadd.f32 %v1090, %v1353
    %v1355 = vpop.f32.mrb[0].mxu0
    %v1356 = vpop.f32.mrb[0].mxu0
    %v1357 = vadd.f32 %v1090, %v1356
    %v1358 = vpop.f32.mrb[0].mxu0
    %1359 = vmatprep.mubr.bf16.mxu0 0
    %1360 = vmatmul.mubr.bf16.gmra.mrb[0].mxu0 %v1134
    %v1361 = vpop.f32.mrb[0].mxu0
    %v1362 = vadd.f32 %v1090, %v1361
    %v1363 = vpop.f32.mrb[0].mxu0
    %v1364 = vpop.f32.mrb[0].mxu0
    %v1365 = vadd.f32 %v1090, %v1364
    %v1366 = vpop.f32.mrb[0].mxu0
    %1367 = vmatprep.mubr.bf16.mxu0 0
    %1368 = vmatmul.mubr.bf16.gmra.mrb[0].mxu0 %v1137
    %v1369 = vpop.f32.mrb[0].mxu0
    %v1370 = vadd.f32 %v1090, %v1369
    %v1371 = vpop.f32.mrb[0].mxu0
    %v1372 = vpop.f32.mrb[0].mxu0
    %v1373 = vadd.f32 %v1090, %v1372
    %v1374 = vpop.f32.mrb[0].mxu0
    %1375 = vmatprep.mubr.bf16.mxu0 0
    %1376 = vmatmul.mubr.bf16.gmra.mrb[0].mxu0 %v1140
    %v1377 = vpop.f32.mrb[0].mxu0
    %v1378 = vadd.f32 %v1090, %v1377
    %v1379 = vpop.f32.mrb[0].mxu0
    %v1380 = vpop.f32.mrb[0].mxu0
    %v1381 = vadd.f32 %v1090, %v1380
    %v1382 = vpop.f32.mrb[0].mxu0
    %1383 = vmatprep.mubr.bf16.mxu0 0
    %1384 = vmatmul.mubr.bf16.gmra.mrb[0].mxu0 %v1143
    %v1385 = vpop.f32.mrb[0].mxu0
    %v1386 = vadd.f32 %v1090, %v1385
    %v1387 = vpop.f32.mrb[0].mxu0
    %v1388 = vpop.f32.mrb[0].mxu0
    %v1389 = vadd.f32 %v1090, %v1388
    %v1390 = vpop.f32.mrb[0].mxu0
    %1391 = vmatprep.mubr.bf16.mxu0 0
    %1392 = vmatmul.mubr.bf16.gmra.mrb[0].mxu0 %v1146
    %v1393 = vpop.f32.mrb[0].mxu0
    %v1394 = vadd.f32 %v1090, %v1393
    %v1395 = vpop.f32.mrb[0].mxu0
    %v1396 = vpop.f32.mrb[0].mxu0
    %v1397 = vadd.f32 %v1090, %v1396
    %v1398 = vpop.f32.mrb[0].mxu0
    %1399 = vmatprep.mubr.bf16.mxu0 0
    %1400 = vmatmul.mubr.bf16.gmra.mrb[0].mxu0 %v1149
    %v1401 = vpop.f32.mrb[0].mxu0
    %v1402 = vadd.f32 %v1090, %v1401
    %v1403 = vpop.f32.mrb[0].mxu0
    %v1404 = vpop.f32.mrb[0].mxu0
    %v1405 = vadd.f32 %v1090, %v1404
    %v1406 = vpop.f32.mrb[0].mxu0
    %1407 = vmatprep.mubr.bf16.mxu0 0
    %1408 = vmatmul.mubr.bf16.gmra.mrb[0].mxu0 %v1152
    %v1409 = vpop.f32.mrb[0].mxu0
    %v1410 = vadd.f32 %v1090, %v1409
    %v1411 = vpop.f32.mrb[0].mxu0
    %v1412 = vpop.f32.mrb[0].mxu0
    %v1413 = vadd.f32 %v1090, %v1412
    %v1414 = vpop.f32.mrb[0].mxu0
    %1415 = vmatprep.mubr.bf16.mxu0 0
    %1416 = vmatmul.mubr.bf16.gmra.mrb[0].mxu0 %v1155
    %v1417 = vpop.f32.mrb[0].mxu0
    %v1418 = vadd.f32 %v1090, %v1417
    %v1419 = vpop.f32.mrb[0].mxu0
    %v1420 = vpop.f32.mrb[0].mxu0
    %v1421 = vadd.f32 %v1090, %v1420
    %v1422 = vpop.f32.mrb[0].mxu0
    %1423 = vmatprep.mubr.bf16.mxu0 0
    %1424 = vmatmul.mubr.bf16.gmra.mrb[0].mxu0 %v1158
    %v1425 = vpop.f32.mrb[0].mxu0
    %v1426 = vadd.f32 %v1090, %v1425
    %v1427 = vpop.f32.mrb[0].mxu0
    %v1428 = vpop.f32.mrb[0].mxu0
    %v1429 = vadd.f32 %v1090, %v1428
    %v1430 = vpop.f32.mrb[0].mxu0
    %1431 = vmatprep.mubr.bf16.mxu0 0
    %1432 = vmatmul.mubr.bf16.gmra.mrb[0].mxu0 %v1161
    %v1433 = vpop.f32.mrb[0].mxu0
    %v1434 = vadd.f32 %v1090, %v1433
    %v1435 = vpop.f32.mrb[0].mxu0
    %v1436 = vpop.f32.mrb[0].mxu0
    %v1437 = vadd.f32 %v1090, %v1436
    %v1438 = vpop.f32.mrb[0].mxu0
    %1439 = vmatprep.mubr.bf16.mxu0 0
    %1440 = vmatmul.mubr.bf16.gmra.mrb[0].mxu0 %v1164
    %v1441 = vpop.f32.mrb[0].mxu0
    %v1442 = vadd.f32 %v1090, %v1441
    %v1443 = vpop.f32.mrb[0].mxu0
    %v1444 = vpop.f32.mrb[0].mxu0
    %v1445 = vadd.f32 %v1090, %v1444
    %v1446 = vpop.f32.mrb[0].mxu0
    %1447 = vmatprep.mubr.bf16.mxu0 0
    %1448 = vmatmul.mubr.bf16.gmra.mrb[0].mxu0 %v1167
    %v1449 = vpop.f32.mrb[0].mxu0
    %v1450 = vadd.f32 %v1090, %v1449
    %v1451 = vpop.f32.mrb[0].mxu0
    %v1452 = vpop.f32.mrb[0].mxu0
    %v1453 = vadd.f32 %v1090, %v1452
    %v1454 = vpop.f32.mrb[0].mxu0
    %1455 = vmatprep.mubr.bf16.mxu0 0
    %1456 = vmatmul.mubr.bf16.gmra.mrb[0].mxu0 %v1170
    %v1457 = vpop.f32.mrb[0].mxu0
    %v1458 = vadd.f32 %v1090, %v1457
    %v1459 = vpop.f32.mrb[0].mxu0
    %v1460 = vpop.f32.mrb[0].mxu0
    %v1461 = vadd.f32 %v1090, %v1460
    %v1462 = vpop.f32.mrb[0].mxu0
    %1463 = vmatprep.mubr.bf16.mxu0 0
    %1464 = vmatmul.mubr.bf16.gmra.mrb[0].mxu0 %v1173
    %v1465 = vpop.f32.mrb[0].mxu0
    %v1466 = vadd.f32 %v1090, %v1465
    %v1467 = vpop.f32.mrb[0].mxu0
    %v1468 = vpop.f32.mrb[0].mxu0
    %v1469 = vadd.f32 %v1090, %v1468
    %v1470 = vpop.f32.mrb[0].mxu0
    %1471 = vmatprep.mubr.bf16.mxu0 0
    %1472 = vmatmul.mubr.bf16.gmra.mrb[0].mxu0 %v1176
    %v1473 = vpop.f32.mrb[0].mxu0
    %v1474 = vadd.f32 %v1090, %v1473
    %v1475 = vpop.f32.mrb[0].mxu0
    %v1476 = vpop.f32.mrb[0].mxu0
    %v1477 = vadd.f32 %v1090, %v1476
    %v1478 = vpop.f32.mrb[0].mxu0
    %1479 = vmatprep.mubr.bf16.mxu0 0
    %1480 = vmatmul.mubr.bf16.gmra.mrb[0].mxu0 %v1179
    %v1481 = vpop.f32.mrb[0].mxu0
    %v1482 = vadd.f32 %v1090, %v1481
    %v1483 = vpop.f32.mrb[0].mxu0
    %v1484 = vpop.f32.mrb[0].mxu0
    %v1485 = vadd.f32 %v1090, %v1484
    %v1486 = vpop.f32.mrb[0].mxu0
    %1487 = vmatprep.mubr.bf16.mxu0 0
    %1488 = vmatmul.mubr.bf16.gmra.mrb[0].mxu0 %v1182
    %v1489 = vpop.f32.mrb[0].mxu0
    %v1490 = vadd.f32 %v1090, %v1489
    %v1491 = vpop.f32.mrb[0].mxu0
    %v1492 = vpop.f32.mrb[0].mxu0
    %v1493 = vadd.f32 %v1090, %v1492
    %v1494 = vpop.f32.mrb[0].mxu0
    %1495 = vmatprep.mubr.bf16.mxu0 0
    %1496 = vmatmul.mubr.bf16.gmra.mrb[0].mxu0 %v1185
    %v1497 = vpop.f32.mrb[0].mxu0
    %v1498 = vadd.f32 %v1090, %v1497
    %v1499 = vpop.f32.mrb[0].mxu0
    %v1500 = vpop.f32.mrb[0].mxu0
    %v1501 = vadd.f32 %v1090, %v1500
    %v1502 = vpop.f32.mrb[0].mxu0
    %1503 = vmatprep.mubr.bf16.mxu0 0
    %1504 = vmatmul.mubr.bf16.gmra.mrb[0].mxu0 %v1188
    %v1505 = vpop.f32.mrb[0].mxu0
    %v1506 = vadd.f32 %v1090, %v1505
    %v1507 = vpop.f32.mrb[0].mxu0
    %v1508 = vpop.f32.mrb[0].mxu0
    %v1509 = vadd.f32 %v1090, %v1508
    %v1510 = vpop.f32.mrb[0].mxu0
    %1511 = vmatprep.mubr.bf16.mxu0 0
    %1512 = vmatmul.mubr.bf16.gmra.mrb[0].mxu0 %v1191
    %v1513 = vpop.f32.mrb[0].mxu0
    %v1514 = vadd.f32 %v1090, %v1513
    %v1515 = vpop.f32.mrb[0].mxu0
    %v1516 = vpop.f32.mrb[0].mxu0
    %v1517 = vadd.f32 %v1090, %v1516
    %v1518 = vpop.f32.mrb[0].mxu0
    %1519 = vmatprep.mubr.bf16.mxu0 0
    %1520 = vmatmul.mubr.bf16.gmra.mrb[0].mxu0 %v1194
    %v1521 = vpop.f32.mrb[0].mxu0
    %v1522 = vadd.f32 %v1090, %v1521
    %v1523 = vpop.f32.mrb[0].mxu0
    %v1524 = vpop.f32.mrb[0].mxu0
    %v1525 = vadd.f32 %v1090, %v1524
    %v1526 = vpop.f32.mrb[0].mxu0
    %1527 = vmatprep.mubr.bf16.mxu0 0
    %1528 = vmatmul.mubr.bf16.gmra.mrb[0].mxu0 %v1197
    %v1529 = vpop.f32.mrb[0].mxu0
    %v1530 = vadd.f32 %v1090, %v1529
    %v1531 = vpop.f32.mrb[0].mxu0
    %v1532 = vpop.f32.mrb[0].mxu0
    %v1533 = vadd.f32 %v1090, %v1532
    %v1534 = vpop.f32.mrb[0].mxu0
    %1535 = vmatprep.mubr.bf16.mxu0 0
    %1536 = vmatmul.mubr.bf16.gmra.mrb[0].mxu0 %v1200
    %v1537 = vpop.f32.mrb[0].mxu0
    %v1538 = vadd.f32 %v1090, %v1537
    %v1539 = vpop.f32.mrb[0].mxu0
    %v1540 = vpop.f32.mrb[0].mxu0
    %v1541 = vadd.f32 %v1090, %v1540
    %v1542 = vpop.f32.mrb[0].mxu0
    %1543 = vmatprep.mubr.bf16.mxu0 0
    %1544 = vmatmul.mubr.bf16.gmra.mrb[0].mxu0 %v1203
    %v1545 = vpop.f32.mrb[0].mxu0
    %v1546 = vadd.f32 %v1090, %v1545
    %v1547 = vpop.f32.mrb[0].mxu0
    %v1548 = vpop.f32.mrb[0].mxu0
    %v1549 = vadd.f32 %v1090, %v1548
    %v1550 = vpop.f32.mrb[0].mxu0
    %1551 = vmatprep.mubr.bf16.mxu0 0
    %1552 = vmatmul.mubr.bf16.gmra.mrb[0].mxu0 %v1206
    %v1553 = vpop.f32.mrb[0].mxu0
    %v1554 = vadd.f32 %v1090, %v1553
    %v1555 = vpop.f32.mrb[0].mxu0
    %v1556 = vpop.f32.mrb[0].mxu0
    %v1557 = vadd.f32 %v1090, %v1556
    %v1558 = vpop.f32.mrb[0].mxu0
    %1559 = vmatprep.mubr.bf16.mxu0 0
    %1560 = vmatmul.mubr.bf16.gmra.mrb[0].mxu0 %v1209
    %v1561 = vpop.f32.mrb[0].mxu0
    %v1562 = vadd.f32 %v1090, %v1561
    %v1563 = vpop.f32.mrb[0].mxu0
    %v1564 = vpop.f32.mrb[0].mxu0
    %v1565 = vadd.f32 %v1090, %v1564
    %v1566 = vpop.f32.mrb[0].mxu0
    %1567 = vmatprep.mubr.bf16.mxu0 0
    %1568 = vmatmul.mubr.bf16.gmra.mrb[0].mxu0 %v1212
    %v1569 = vpop.f32.mrb[0].mxu0
    %v1570 = vadd.f32 %v1090, %v1569
    %v1571 = vpop.f32.mrb[0].mxu0
    %v1572 = vpop.f32.mrb[0].mxu0
    %v1573 = vadd.f32 %v1090, %v1572
    %v1574 = vpop.f32.mrb[0].mxu0
    %1575 = vmatprep.mubr.bf16.mxu0 0
    %1576 = vmatmul.mubr.bf16.gmra.mrb[0].mxu0 %v1215
    %v1577 = vpop.f32.mrb[0].mxu0
    %v1578 = vadd.f32 %v1090, %v1577
    %v1579 = vpop.f32.mrb[0].mxu0
    %v1580 = vpop.f32.mrb[0].mxu0
    %v1581 = vadd.f32 %v1090, %v1580
    %v1582 = vpop.f32.mrb[0].mxu0
    %1583 = vmatprep.mubr.bf16.mxu0 0
    %1584 = vmatmul.mubr.bf16.gmra.mrb[0].mxu0 %v1218
    %v1585 = vpop.f32.mrb[0].mxu0
    %v1586 = vadd.f32 %v1090, %v1585
    %v1587 = vpop.f32.mrb[0].mxu0
    %v1588 = vpop.f32.mrb[0].mxu0
    %v1589 = vadd.f32 %v1090, %v1588
    %v1590 = vpop.f32.mrb[0].mxu0
    %1591 = vmatprep.mubr.bf16.mxu0 0
    %1592 = vmatmul.mubr.bf16.gmra.mrb[0].mxu0 %v1221
    %v1593 = vpop.f32.mrb[0].mxu0
    %v1594 = vadd.f32 %v1090, %v1593
    %v1595 = vpop.f32.mrb[0].mxu0
    %v1596 = vpop.f32.mrb[0].mxu0
    %v1597 = vadd.f32 %v1090, %v1596
    %v1598 = vpop.f32.mrb[0].mxu0
    %1599 = vmatprep.mubr.bf16.mxu0 0
    %1600 = vmatmul.mubr.bf16.gmra.mrb[0].mxu0 %v1224
    %v1601 = vpop.f32.mrb[0].mxu0
    %v1602 = vadd.f32 %v1090, %v1601
    %v1603 = vpop.f32.mrb[0].mxu0
    %v1604 = vpop.f32.mrb[0].mxu0
    %v1605 = vadd.f32 %v1090, %v1604
    %v1606 = vpop.f32.mrb[0].mxu0
    %1607 = vmatprep.mubr.bf16.mxu0 0
    %1608 = vmatmul.mubr.bf16.gmra.mrb[0].mxu0 %v1227
    %v1609 = vpop.f32.mrb[0].mxu0
    %v1610 = vadd.f32 %v1090, %v1609
    %v1611 = vpop.f32.mrb[0].mxu0
    %v1612 = vpop.f32.mrb[0].mxu0
    %v1613 = vadd.f32 %v1090, %v1612
    %v1614 = vpop.f32.mrb[0].mxu0
    %1615 = vmatprep.mubr.bf16.mxu0 0
    %1616 = vmatmul.mubr.bf16.gmra.mrb[0].mxu0 %v1230
    %v1617 = vpop.f32.mrb[0].mxu0
    %v1618 = vadd.f32 %v1090, %v1617
    %v1619 = vpop.f32.mrb[0].mxu0
    %v1620 = vpop.f32.mrb[0].mxu0
    %v1621 = vadd.f32 %v1090, %v1620
    %v1622 = vpop.f32.mrb[0].mxu0
    %1623 = vmatprep.mubr.bf16.mxu0 0
    %1624 = vmatmul.mubr.bf16.gmra.mrb[0].mxu0 %v1233
    %v1625 = vpop.f32.mrb[0].mxu0
    %v1626 = vadd.f32 %v1090, %v1625
    %v1627 = vpop.f32.mrb[0].mxu0
    %v1628 = vpop.f32.mrb[0].mxu0
    %v1629 = vadd.f32 %v1090, %v1628
    %v1630 = vpop.f32.mrb[0].mxu0
    %1631 = vmatprep.mubr.bf16.mxu0 0
    %1632 = vmatmul.mubr.bf16.gmra.mrb[0].mxu0 %v1236
    %v1633 = vpop.f32.mrb[0].mxu0
    %v1634 = vadd.f32 %v1090, %v1633
    %v1635 = vpop.f32.mrb[0].mxu0
    %v1636 = vpop.f32.mrb[0].mxu0
    %v1637 = vadd.f32 %v1090, %v1636
    %v1638 = vpop.f32.mrb[0].mxu0
    %1639 = vmatprep.mubr.bf16.mxu0 0
    %1640 = vmatmul.mubr.bf16.gmra.mrb[0].mxu0 %v1239
    %v1641 = vpop.f32.mrb[0].mxu0
    %v1642 = vadd.f32 %v1090, %v1641
    %v1643 = vpop.f32.mrb[0].mxu0
    %v1644 = vpop.f32.mrb[0].mxu0
    %v1645 = vadd.f32 %v1090, %v1644
    %v1646 = vpop.f32.mrb[0].mxu0
    %1647 = vmatprep.mubr.bf16.mxu0 0
    %1648 = vmatmul.mubr.bf16.gmra.mrb[0].mxu0 %v1242
    %v1649 = vpop.f32.mrb[0].mxu0
    %v1650 = vadd.f32 %v1090, %v1649
    %v1651 = vpop.f32.mrb[0].mxu0
    %v1652 = vpop.f32.mrb[0].mxu0
    %v1653 = vadd.f32 %v1090, %v1652
    %v1654 = vpop.f32.mrb[0].mxu0
    %1655 = vmatprep.mubr.bf16.mxu0 0
    %1656 = vmatmul.mubr.bf16.gmra.mrb[0].mxu0 %v1245
    %v1657 = vpop.f32.mrb[0].mxu0
    %v1658 = vadd.f32 %v1090, %v1657
    %v1659 = vpop.f32.mrb[0].mxu0
    %v1660 = vpop.f32.mrb[0].mxu0
    %v1661 = vadd.f32 %v1090, %v1660
    %v1662 = vpop.f32.mrb[0].mxu0
    %1663 = vdwg.mxu0
    %v1664 = vmul.f32 %v1282, %v1282
    %v1665 = vmul.f32 %v1285, %v1285
    %v1666 = vmul.f32 %v1290, %v1290
    %v1667 = vmul.f32 %v1293, %v1293
    %v1668 = vmul.f32 %v1298, %v1298
    %v1669 = vmul.f32 %v1301, %v1301
    %v1670 = vmul.f32 %v1306, %v1306
    %v1671 = vmul.f32 %v1309, %v1309
    %v1672 = vmul.f32 %v1314, %v1314
    %v1673 = vmul.f32 %v1317, %v1317
    %v1674 = vmul.f32 %v1322, %v1322
    %v1675 = vmul.f32 %v1325, %v1325
    %v1676 = vmul.f32 %v1330, %v1330
    %v1677 = vmul.f32 %v1333, %v1333
    %v1678 = vmul.f32 %v1338, %v1338
    %v1679 = vmul.f32 %v1341, %v1341
    %v1680 = vmul.f32 %v1346, %v1346
    %v1681 = vmul.f32 %v1349, %v1349
    %v1682 = vmul.f32 %v1354, %v1354
    %v1683 = vmul.f32 %v1357, %v1357
    %v1684 = vmul.f32 %v1362, %v1362
    %v1685 = vmul.f32 %v1365, %v1365
    %v1686 = vmul.f32 %v1370, %v1370
    %v1687 = vmul.f32 %v1373, %v1373
    %v1688 = vmul.f32 %v1378, %v1378
    %v1689 = vmul.f32 %v1381, %v1381
    %v1690 = vmul.f32 %v1386, %v1386
    %v1691 = vmul.f32 %v1389, %v1389
    %v1692 = vmul.f32 %v1394, %v1394
    %v1693 = vmul.f32 %v1397, %v1397
    %v1694 = vmul.f32 %v1402, %v1402
    %v1695 = vmul.f32 %v1405, %v1405
    %v1696 = vmul.f32 %v1410, %v1410
    %v1697 = vmul.f32 %v1413, %v1413
    %v1698 = vmul.f32 %v1418, %v1418
    %v1699 = vmul.f32 %v1421, %v1421
    %v1700 = vmul.f32 %v1426, %v1426
    %v1701 = vmul.f32 %v1429, %v1429
    %v1702 = vmul.f32 %v1434, %v1434
    %v1703 = vmul.f32 %v1437, %v1437
    %v1704 = vmul.f32 %v1442, %v1442
    %v1705 = vmul.f32 %v1445, %v1445
    %v1706 = vmul.f32 %v1450, %v1450
    %v1707 = vmul.f32 %v1453, %v1453
    %v1708 = vmul.f32 %v1458, %v1458
    %v1709 = vmul.f32 %v1461, %v1461
    %v1710 = vmul.f32 %v1466, %v1466
    %v1711 = vmul.f32 %v1469, %v1469
    %v1712 = vmul.f32 %v1474, %v1474
    %v1713 = vmul.f32 %v1477, %v1477
    %v1714 = vmul.f32 %v1482, %v1482
    %v1715 = vmul.f32 %v1485, %v1485
    %v1716 = vmul.f32 %v1490, %v1490
    %v1717 = vmul.f32 %v1493, %v1493
    %v1718 = vmul.f32 %v1498, %v1498
    %v1719 = vmul.f32 %v1501, %v1501
    %v1720 = vmul.f32 %v1506, %v1506
    %v1721 = vmul.f32 %v1509, %v1509
    %v1722 = vmul.f32 %v1514, %v1514
    %v1723 = vmul.f32 %v1517, %v1517
    %v1724 = vmul.f32 %v1522, %v1522
    %v1725 = vmul.f32 %v1525, %v1525
    %v1726 = vmul.f32 %v1530, %v1530
    %v1727 = vmul.f32 %v1533, %v1533
    %v1728 = vmul.f32 %v1538, %v1538
    %v1729 = vmul.f32 %v1541, %v1541
    %v1730 = vmul.f32 %v1546, %v1546
    %v1731 = vmul.f32 %v1549, %v1549
    %v1732 = vmul.f32 %v1554, %v1554
    %v1733 = vmul.f32 %v1557, %v1557
    %v1734 = vmul.f32 %v1562, %v1562
    %v1735 = vmul.f32 %v1565, %v1565
    %v1736 = vmul.f32 %v1570, %v1570
    %v1737 = vmul.f32 %v1573, %v1573
    %v1738 = vmul.f32 %v1578, %v1578
    %v1739 = vmul.f32 %v1581, %v1581
    %v1740 = vmul.f32 %v1586, %v1586
    %v1741 = vmul.f32 %v1589, %v1589
    %v1742 = vmul.f32 %v1594, %v1594
    %v1743 = vmul.f32 %v1597, %v1597
    %v1744 = vmul.f32 %v1602, %v1602
    %v1745 = vmul.f32 %v1605, %v1605
    %v1746 = vmul.f32 %v1610, %v1610
    %v1747 = vmul.f32 %v1613, %v1613
    %v1748 = vmul.f32 %v1618, %v1618
    %v1749 = vmul.f32 %v1621, %v1621
    %v1750 = vmul.f32 %v1626, %v1626
    %v1751 = vmul.f32 %v1629, %v1629
    %v1752 = vmul.f32 %v1634, %v1634
    %v1753 = vmul.f32 %v1637, %v1637
    %v1754 = vmul.f32 %v1642, %v1642
    %v1755 = vmul.f32 %v1645, %v1645
    %v1756 = vmul.f32 %v1650, %v1650
    %v1757 = vmul.f32 %v1653, %v1653
    %v1758 = vmul.f32 %v1658, %v1658
    %v1759 = vmul.f32 %v1661, %v1661
    %v1760 = vsel %vm377, %v1664, 0.0
    %1761 = vadd.xlane.f32.xlu0 %v1760
    %v1762 = vpop.xlane.xlu0 %1761
    %v1763 = vsel %vm377, %v1665, 0.0
    %1764 = vadd.xlane.f32.xlu0 %v1763
    %v1765 = vpop.xlane.xlu0 %1764
    %v1766 = vsel %vm377, %v1666, 0.0
    %1767 = vadd.xlane.f32.xlu0 %v1766
    %v1768 = vpop.xlane.xlu0 %1767
    %v1769 = vsel %vm377, %v1667, 0.0
    %1770 = vadd.xlane.f32.xlu0 %v1769
    %v1771 = vpop.xlane.xlu0 %1770
    %v1772 = vsel %vm377, %v1668, 0.0
    %1773 = vadd.xlane.f32.xlu0 %v1772
    %v1774 = vpop.xlane.xlu0 %1773
    %v1775 = vsel %vm377, %v1669, 0.0
    %1776 = vadd.xlane.f32.xlu0 %v1775
    %v1777 = vpop.xlane.xlu0 %1776
    %v1778 = vsel %vm377, %v1670, 0.0
    %1779 = vadd.xlane.f32.xlu0 %v1778
    %v1780 = vpop.xlane.xlu0 %1779
    %v1781 = vsel %vm377, %v1671, 0.0
    %1782 = vadd.xlane.f32.xlu0 %v1781
    %v1783 = vpop.xlane.xlu0 %1782
    %v1784 = vsel %vm377, %v1672, 0.0
    %1785 = vadd.xlane.f32.xlu0 %v1784
    %v1786 = vpop.xlane.xlu0 %1785
    %v1787 = vsel %vm377, %v1673, 0.0
    %1788 = vadd.xlane.f32.xlu0 %v1787
    %v1789 = vpop.xlane.xlu0 %1788
    %v1790 = vsel %vm377, %v1674, 0.0
    %1791 = vadd.xlane.f32.xlu0 %v1790
    %v1792 = vpop.xlane.xlu0 %1791
    %v1793 = vsel %vm377, %v1675, 0.0
    %1794 = vadd.xlane.f32.xlu0 %v1793
    %v1795 = vpop.xlane.xlu0 %1794
    %v1796 = vsel %vm377, %v1676, 0.0
    %1797 = vadd.xlane.f32.xlu0 %v1796
    %v1798 = vpop.xlane.xlu0 %1797
    %v1799 = vsel %vm377, %v1677, 0.0
    %1800 = vadd.xlane.f32.xlu0 %v1799
    %v1801 = vpop.xlane.xlu0 %1800
    %v1802 = vsel %vm377, %v1678, 0.0
    %1803 = vadd.xlane.f32.xlu0 %v1802
    %v1804 = vpop.xlane.xlu0 %1803
    %v1805 = vsel %vm377, %v1679, 0.0
    %1806 = vadd.xlane.f32.xlu0 %v1805
    %v1807 = vpop.xlane.xlu0 %1806
    %v1808 = vsel %vm377, %v1680, 0.0
    %1809 = vadd.xlane.f32.xlu0 %v1808
    %v1810 = vpop.xlane.xlu0 %1809
    %v1811 = vsel %vm377, %v1681, 0.0
    %1812 = vadd.xlane.f32.xlu0 %v1811
    %v1813 = vpop.xlane.xlu0 %1812
    %v1814 = vsel %vm377, %v1682, 0.0
    %1815 = vadd.xlane.f32.xlu0 %v1814
    %v1816 = vpop.xlane.xlu0 %1815
    %v1817 = vsel %vm377, %v1683, 0.0
    %1818 = vadd.xlane.f32.xlu0 %v1817
    %v1819 = vpop.xlane.xlu0 %1818
    %v1820 = vsel %vm377, %v1684, 0.0
    %1821 = vadd.xlane.f32.xlu0 %v1820
    %v1822 = vpop.xlane.xlu0 %1821
    %v1823 = vsel %vm377, %v1685, 0.0
    %1824 = vadd.xlane.f32.xlu0 %v1823
    %v1825 = vpop.xlane.xlu0 %1824
    %v1826 = vsel %vm377, %v1686, 0.0
    %1827 = vadd.xlane.f32.xlu0 %v1826
    %v1828 = vpop.xlane.xlu0 %1827
    %v1829 = vsel %vm377, %v1687, 0.0
    %1830 = vadd.xlane.f32.xlu0 %v1829
    %v1831 = vpop.xlane.xlu0 %1830
    %v1832 = vsel %vm377, %v1688, 0.0
    %1833 = vadd.xlane.f32.xlu0 %v1832
    %v1834 = vpop.xlane.xlu0 %1833
    %v1835 = vsel %vm377, %v1689, 0.0
    %1836 = vadd.xlane.f32.xlu0 %v1835
    %v1837 = vpop.xlane.xlu0 %1836
    %v1838 = vsel %vm377, %v1690, 0.0
    %1839 = vadd.xlane.f32.xlu0 %v1838
    %v1840 = vpop.xlane.xlu0 %1839
    %v1841 = vsel %vm377, %v1691, 0.0
    %1842 = vadd.xlane.f32.xlu0 %v1841
    %v1843 = vpop.xlane.xlu0 %1842
    %v1844 = vsel %vm377, %v1692, 0.0
    %1845 = vadd.xlane.f32.xlu0 %v1844
    %v1846 = vpop.xlane.xlu0 %1845
    %v1847 = vsel %vm377, %v1693, 0.0
    %1848 = vadd.xlane.f32.xlu0 %v1847
    %v1849 = vpop.xlane.xlu0 %1848
    %v1850 = vsel %vm377, %v1694, 0.0
    %1851 = vadd.xlane.f32.xlu0 %v1850
    %v1852 = vpop.xlane.xlu0 %1851
    %v1853 = vsel %vm377, %v1695, 0.0
    %1854 = vadd.xlane.f32.xlu0 %v1853
    %v1855 = vpop.xlane.xlu0 %1854
    %v1856 = vsel %vm377, %v1696, 0.0
    %1857 = vadd.xlane.f32.xlu0 %v1856
    %v1858 = vpop.xlane.xlu0 %1857
    %v1859 = vsel %vm377, %v1697, 0.0
    %1860 = vadd.xlane.f32.xlu0 %v1859
    %v1861 = vpop.xlane.xlu0 %1860
    %v1862 = vsel %vm377, %v1698, 0.0
    %1863 = vadd.xlane.f32.xlu0 %v1862
    %v1864 = vpop.xlane.xlu0 %1863
    %v1865 = vsel %vm377, %v1699, 0.0
    %1866 = vadd.xlane.f32.xlu0 %v1865
    %v1867 = vpop.xlane.xlu0 %1866
    %v1868 = vsel %vm377, %v1700, 0.0
    %1869 = vadd.xlane.f32.xlu0 %v1868
    %v1870 = vpop.xlane.xlu0 %1869
    %v1871 = vsel %vm377, %v1701, 0.0
    %1872 = vadd.xlane.f32.xlu0 %v1871
    %v1873 = vpop.xlane.xlu0 %1872
    %v1874 = vsel %vm377, %v1702, 0.0
    %1875 = vadd.xlane.f32.xlu0 %v1874
    %v1876 = vpop.xlane.xlu0 %1875
    %v1877 = vsel %vm377, %v1703, 0.0
    %1878 = vadd.xlane.f32.xlu0 %v1877
    %v1879 = vpop.xlane.xlu0 %1878
    %v1880 = vsel %vm377, %v1704, 0.0
    %1881 = vadd.xlane.f32.xlu0 %v1880
    %v1882 = vpop.xlane.xlu0 %1881
    %v1883 = vsel %vm377, %v1705, 0.0
    %1884 = vadd.xlane.f32.xlu0 %v1883
    %v1885 = vpop.xlane.xlu0 %1884
    %v1886 = vsel %vm377, %v1706, 0.0
    %1887 = vadd.xlane.f32.xlu0 %v1886
    %v1888 = vpop.xlane.xlu0 %1887
    %v1889 = vsel %vm377, %v1707, 0.0
    %1890 = vadd.xlane.f32.xlu0 %v1889
    %v1891 = vpop.xlane.xlu0 %1890
    %v1892 = vsel %vm377, %v1708, 0.0
    %1893 = vadd.xlane.f32.xlu0 %v1892
    %v1894 = vpop.xlane.xlu0 %1893
    %v1895 = vsel %vm377, %v1709, 0.0
    %1896 = vadd.xlane.f32.xlu0 %v1895
    %v1897 = vpop.xlane.xlu0 %1896
    %v1898 = vsel %vm377, %v1710, 0.0
    %1899 = vadd.xlane.f32.xlu0 %v1898
    %v1900 = vpop.xlane.xlu0 %1899
    %v1901 = vsel %vm377, %v1711, 0.0
    %1902 = vadd.xlane.f32.xlu0 %v1901
    %v1903 = vpop.xlane.xlu0 %1902
    %v1904 = vsel %vm377, %v1712, 0.0
    %1905 = vadd.xlane.f32.xlu0 %v1904
    %v1906 = vpop.xlane.xlu0 %1905
    %v1907 = vsel %vm377, %v1713, 0.0
    %1908 = vadd.xlane.f32.xlu0 %v1907
    %v1909 = vpop.xlane.xlu0 %1908
    %v1910 = vsel %vm377, %v1714, 0.0
    %1911 = vadd.xlane.f32.xlu0 %v1910
    %v1912 = vpop.xlane.xlu0 %1911
    %v1913 = vsel %vm377, %v1715, 0.0
    %1914 = vadd.xlane.f32.xlu0 %v1913
    %v1915 = vpop.xlane.xlu0 %1914
    %v1916 = vsel %vm377, %v1716, 0.0
    %1917 = vadd.xlane.f32.xlu0 %v1916
    %v1918 = vpop.xlane.xlu0 %1917
    %v1919 = vsel %vm377, %v1717, 0.0
    %1920 = vadd.xlane.f32.xlu0 %v1919
    %v1921 = vpop.xlane.xlu0 %1920
    %v1922 = vsel %vm377, %v1718, 0.0
    %1923 = vadd.xlane.f32.xlu0 %v1922
    %v1924 = vpop.xlane.xlu0 %1923
    %v1925 = vsel %vm377, %v1719, 0.0
    %1926 = vadd.xlane.f32.xlu0 %v1925
    %v1927 = vpop.xlane.xlu0 %1926
    %v1928 = vsel %vm377, %v1720, 0.0
    %1929 = vadd.xlane.f32.xlu0 %v1928
    %v1930 = vpop.xlane.xlu0 %1929
    %v1931 = vsel %vm377, %v1721, 0.0
    %1932 = vadd.xlane.f32.xlu0 %v1931
    %v1933 = vpop.xlane.xlu0 %1932
    %v1934 = vsel %vm377, %v1722, 0.0
    %1935 = vadd.xlane.f32.xlu0 %v1934
    %v1936 = vpop.xlane.xlu0 %1935
    %v1937 = vsel %vm377, %v1723, 0.0
    %1938 = vadd.xlane.f32.xlu0 %v1937
    %v1939 = vpop.xlane.xlu0 %1938
    %v1940 = vsel %vm377, %v1724, 0.0
    %1941 = vadd.xlane.f32.xlu0 %v1940
    %v1942 = vpop.xlane.xlu0 %1941
    %v1943 = vsel %vm377, %v1725, 0.0
    %1944 = vadd.xlane.f32.xlu0 %v1943
    %v1945 = vpop.xlane.xlu0 %1944
    %v1946 = vsel %vm377, %v1726, 0.0
    %1947 = vadd.xlane.f32.xlu0 %v1946
    %v1948 = vpop.xlane.xlu0 %1947
    %v1949 = vsel %vm377, %v1727, 0.0
    %1950 = vadd.xlane.f32.xlu0 %v1949
    %v1951 = vpop.xlane.xlu0 %1950
    %v1952 = vsel %vm377, %v1728, 0.0
    %1953 = vadd.xlane.f32.xlu0 %v1952
    %v1954 = vpop.xlane.xlu0 %1953
    %v1955 = vsel %vm377, %v1729, 0.0
    %1956 = vadd.xlane.f32.xlu0 %v1955
    %v1957 = vpop.xlane.xlu0 %1956
    %v1958 = vsel %vm377, %v1730, 0.0
    %1959 = vadd.xlane.f32.xlu0 %v1958
    %v1960 = vpop.xlane.xlu0 %1959
    %v1961 = vsel %vm377, %v1731, 0.0
    %1962 = vadd.xlane.f32.xlu0 %v1961
    %v1963 = vpop.xlane.xlu0 %1962
    %v1964 = vsel %vm377, %v1732, 0.0
    %1965 = vadd.xlane.f32.xlu0 %v1964
    %v1966 = vpop.xlane.xlu0 %1965
    %v1967 = vsel %vm377, %v1733, 0.0
    %1968 = vadd.xlane.f32.xlu0 %v1967
    %v1969 = vpop.xlane.xlu0 %1968
    %v1970 = vsel %vm377, %v1734, 0.0
    %1971 = vadd.xlane.f32.xlu0 %v1970
    %v1972 = vpop.xlane.xlu0 %1971
    %v1973 = vsel %vm377, %v1735, 0.0
    %1974 = vadd.xlane.f32.xlu0 %v1973
    %v1975 = vpop.xlane.xlu0 %1974
    %v1976 = vsel %vm377, %v1736, 0.0
    %1977 = vadd.xlane.f32.xlu0 %v1976
    %v1978 = vpop.xlane.xlu0 %1977
    %v1979 = vsel %vm377, %v1737, 0.0
    %1980 = vadd.xlane.f32.xlu0 %v1979
    %v1981 = vpop.xlane.xlu0 %1980
    %v1982 = vsel %vm377, %v1738, 0.0
    %1983 = vadd.xlane.f32.xlu0 %v1982
    %v1984 = vpop.xlane.xlu0 %1983
    %v1985 = vsel %vm377, %v1739, 0.0
    %1986 = vadd.xlane.f32.xlu0 %v1985
    %v1987 = vpop.xlane.xlu0 %1986
    %v1988 = vsel %vm377, %v1740, 0.0
    %1989 = vadd.xlane.f32.xlu0 %v1988
    %v1990 = vpop.xlane.xlu0 %1989
    %v1991 = vsel %vm377, %v1741, 0.0
    %1992 = vadd.xlane.f32.xlu0 %v1991
    %v1993 = vpop.xlane.xlu0 %1992
    %v1994 = vsel %vm377, %v1742, 0.0
    %1995 = vadd.xlane.f32.xlu0 %v1994
    %v1996 = vpop.xlane.xlu0 %1995
    %v1997 = vsel %vm377, %v1743, 0.0
    %1998 = vadd.xlane.f32.xlu0 %v1997
    %v1999 = vpop.xlane.xlu0 %1998
    %v2000 = vsel %vm377, %v1744, 0.0
    %2001 = vadd.xlane.f32.xlu0 %v2000
    %v2002 = vpop.xlane.xlu0 %2001
    %v2003 = vsel %vm377, %v1745, 0.0
    %2004 = vadd.xlane.f32.xlu0 %v2003
    %v2005 = vpop.xlane.xlu0 %2004
    %v2006 = vsel %vm377, %v1746, 0.0
    %2007 = vadd.xlane.f32.xlu0 %v2006
    %v2008 = vpop.xlane.xlu0 %2007
    %v2009 = vsel %vm377, %v1747, 0.0
    %2010 = vadd.xlane.f32.xlu0 %v2009
    %v2011 = vpop.xlane.xlu0 %2010
    %v2012 = vsel %vm377, %v1748, 0.0
    %2013 = vadd.xlane.f32.xlu0 %v2012
    %v2014 = vpop.xlane.xlu0 %2013
    %v2015 = vsel %vm377, %v1749, 0.0
    %2016 = vadd.xlane.f32.xlu0 %v2015
    %v2017 = vpop.xlane.xlu0 %2016
    %v2018 = vsel %vm377, %v1750, 0.0
    %2019 = vadd.xlane.f32.xlu0 %v2018
    %v2020 = vpop.xlane.xlu0 %2019
    %v2021 = vsel %vm377, %v1751, 0.0
    %2022 = vadd.xlane.f32.xlu0 %v2021
    %v2023 = vpop.xlane.xlu0 %2022
    %v2024 = vsel %vm377, %v1752, 0.0
    %2025 = vadd.xlane.f32.xlu0 %v2024
    %v2026 = vpop.xlane.xlu0 %2025
    %v2027 = vsel %vm377, %v1753, 0.0
    %2028 = vadd.xlane.f32.xlu0 %v2027
    %v2029 = vpop.xlane.xlu0 %2028
    %v2030 = vsel %vm377, %v1754, 0.0
    %2031 = vadd.xlane.f32.xlu0 %v2030
    %v2032 = vpop.xlane.xlu0 %2031
    %v2033 = vsel %vm377, %v1755, 0.0
    %2034 = vadd.xlane.f32.xlu0 %v2033
    %v2035 = vpop.xlane.xlu0 %2034
    %v2036 = vsel %vm377, %v1756, 0.0
    %2037 = vadd.xlane.f32.xlu0 %v2036
    %v2038 = vpop.xlane.xlu0 %2037
    %v2039 = vsel %vm377, %v1757, 0.0
    %2040 = vadd.xlane.f32.xlu0 %v2039
    %v2041 = vpop.xlane.xlu0 %2040
    %v2042 = vsel %vm377, %v1758, 0.0
    %2043 = vadd.xlane.f32.xlu0 %v2042
    %v2044 = vpop.xlane.xlu0 %2043
    %v2045 = vsel %vm377, %v1759, 0.0
    %2046 = vadd.xlane.f32.xlu0 %v2045
    %v2047 = vpop.xlane.xlu0 %2046
    %v2048 = vmax.f32 %v1762, 1e-24
    %v2049 = vmax.f32 %v1765, 1e-24
    %v2050 = vmax.f32 %v1768, 1e-24
    %v2051 = vmax.f32 %v1771, 1e-24
    %v2052 = vmax.f32 %v1774, 1e-24
    %v2053 = vmax.f32 %v1777, 1e-24
    %v2054 = vmax.f32 %v1780, 1e-24
    %v2055 = vmax.f32 %v1783, 1e-24
    %v2056 = vmax.f32 %v1786, 1e-24
    %v2057 = vmax.f32 %v1789, 1e-24
    %v2058 = vmax.f32 %v1792, 1e-24
    %v2059 = vmax.f32 %v1795, 1e-24
    %v2060 = vmax.f32 %v1798, 1e-24
    %v2061 = vmax.f32 %v1801, 1e-24
    %v2062 = vmax.f32 %v1804, 1e-24
    %v2063 = vmax.f32 %v1807, 1e-24
    %v2064 = vmax.f32 %v1810, 1e-24
    %v2065 = vmax.f32 %v1813, 1e-24
    %v2066 = vmax.f32 %v1816, 1e-24
    %v2067 = vmax.f32 %v1819, 1e-24
    %v2068 = vmax.f32 %v1822, 1e-24
    %v2069 = vmax.f32 %v1825, 1e-24
    %v2070 = vmax.f32 %v1828, 1e-24
    %v2071 = vmax.f32 %v1831, 1e-24
    %v2072 = vmax.f32 %v1834, 1e-24
    %v2073 = vmax.f32 %v1837, 1e-24
    %v2074 = vmax.f32 %v1840, 1e-24
    %v2075 = vmax.f32 %v1843, 1e-24
    %v2076 = vmax.f32 %v1846, 1e-24
    %v2077 = vmax.f32 %v1849, 1e-24
    %v2078 = vmax.f32 %v1852, 1e-24
    %v2079 = vmax.f32 %v1855, 1e-24
    %v2080 = vmax.f32 %v1858, 1e-24
    %v2081 = vmax.f32 %v1861, 1e-24
    %v2082 = vmax.f32 %v1864, 1e-24
    %v2083 = vmax.f32 %v1867, 1e-24
    %v2084 = vmax.f32 %v1870, 1e-24
    %v2085 = vmax.f32 %v1873, 1e-24
    %v2086 = vmax.f32 %v1876, 1e-24
    %v2087 = vmax.f32 %v1879, 1e-24
    %v2088 = vmax.f32 %v1882, 1e-24
    %v2089 = vmax.f32 %v1885, 1e-24
    %v2090 = vmax.f32 %v1888, 1e-24
    %v2091 = vmax.f32 %v1891, 1e-24
    %v2092 = vmax.f32 %v1894, 1e-24
    %v2093 = vmax.f32 %v1897, 1e-24
    %v2094 = vmax.f32 %v1900, 1e-24
    %v2095 = vmax.f32 %v1903, 1e-24
    %v2096 = vmax.f32 %v1906, 1e-24
    %v2097 = vmax.f32 %v1909, 1e-24
    %v2098 = vmax.f32 %v1912, 1e-24
    %v2099 = vmax.f32 %v1915, 1e-24
    %v2100 = vmax.f32 %v1918, 1e-24
    %v2101 = vmax.f32 %v1921, 1e-24
    %v2102 = vmax.f32 %v1924, 1e-24
    %v2103 = vmax.f32 %v1927, 1e-24
    %v2104 = vmax.f32 %v1930, 1e-24
    %v2105 = vmax.f32 %v1933, 1e-24
    %v2106 = vmax.f32 %v1936, 1e-24
    %v2107 = vmax.f32 %v1939, 1e-24
    %v2108 = vmax.f32 %v1942, 1e-24
    %v2109 = vmax.f32 %v1945, 1e-24
    %v2110 = vmax.f32 %v1948, 1e-24
    %v2111 = vmax.f32 %v1951, 1e-24
    %v2112 = vmax.f32 %v1954, 1e-24
    %v2113 = vmax.f32 %v1957, 1e-24
    %v2114 = vmax.f32 %v1960, 1e-24
    %v2115 = vmax.f32 %v1963, 1e-24
    %v2116 = vmax.f32 %v1966, 1e-24
    %v2117 = vmax.f32 %v1969, 1e-24
    %v2118 = vmax.f32 %v1972, 1e-24
    %v2119 = vmax.f32 %v1975, 1e-24
    %v2120 = vmax.f32 %v1978, 1e-24
    %v2121 = vmax.f32 %v1981, 1e-24
    %v2122 = vmax.f32 %v1984, 1e-24
    %v2123 = vmax.f32 %v1987, 1e-24
    %v2124 = vmax.f32 %v1990, 1e-24
    %v2125 = vmax.f32 %v1993, 1e-24
    %v2126 = vmax.f32 %v1996, 1e-24
    %v2127 = vmax.f32 %v1999, 1e-24
    %v2128 = vmax.f32 %v2002, 1e-24
    %v2129 = vmax.f32 %v2005, 1e-24
    %v2130 = vmax.f32 %v2008, 1e-24
    %v2131 = vmax.f32 %v2011, 1e-24
    %v2132 = vmax.f32 %v2014, 1e-24
    %v2133 = vmax.f32 %v2017, 1e-24
    %v2134 = vmax.f32 %v2020, 1e-24
    %v2135 = vmax.f32 %v2023, 1e-24
    %v2136 = vmax.f32 %v2026, 1e-24
    %v2137 = vmax.f32 %v2029, 1e-24
    %v2138 = vmax.f32 %v2032, 1e-24
    %v2139 = vmax.f32 %v2035, 1e-24
    %v2140 = vmax.f32 %v2038, 1e-24
    %v2141 = vmax.f32 %v2041, 1e-24
    %v2142 = vmax.f32 %v2044, 1e-24
    %v2143 = vmax.f32 %v2047, 1e-24
    %v2144 = vrsqrt.pop %v2048
    %v2145 = vrsqrt.pop %v2049
    %v2146 = vrsqrt.pop %v2050
    %v2147 = vrsqrt.pop %v2051
    %v2148 = vrsqrt.pop %v2052
    %v2149 = vrsqrt.pop %v2053
    %v2150 = vrsqrt.pop %v2054
    %v2151 = vrsqrt.pop %v2055
    %v2152 = vrsqrt.pop %v2056
    %v2153 = vrsqrt.pop %v2057
    %v2154 = vrsqrt.pop %v2058
    %v2155 = vrsqrt.pop %v2059
    %v2156 = vrsqrt.pop %v2060
    %v2157 = vrsqrt.pop %v2061
    %v2158 = vrsqrt.pop %v2062
    %v2159 = vrsqrt.pop %v2063
    %v2160 = vrsqrt.pop %v2064
    %v2161 = vrsqrt.pop %v2065
    %v2162 = vrsqrt.pop %v2066
    %v2163 = vrsqrt.pop %v2067
    %v2164 = vrsqrt.pop %v2068
    %v2165 = vrsqrt.pop %v2069
    %v2166 = vrsqrt.pop %v2070
    %v2167 = vrsqrt.pop %v2071
    %v2168 = vrsqrt.pop %v2072
    %v2169 = vrsqrt.pop %v2073
    %v2170 = vrsqrt.pop %v2074
    %v2171 = vrsqrt.pop %v2075
    %v2172 = vrsqrt.pop %v2076
    %v2173 = vrsqrt.pop %v2077
    %v2174 = vrsqrt.pop %v2078
    %v2175 = vrsqrt.pop %v2079
    %v2176 = vrsqrt.pop %v2080
    %v2177 = vrsqrt.pop %v2081
    %v2178 = vrsqrt.pop %v2082
    %v2179 = vrsqrt.pop %v2083
    %v2180 = vrsqrt.pop %v2084
    %v2181 = vrsqrt.pop %v2085
    %v2182 = vrsqrt.pop %v2086
    %v2183 = vrsqrt.pop %v2087
    %v2184 = vrsqrt.pop %v2088
    %v2185 = vrsqrt.pop %v2089
    %v2186 = vrsqrt.pop %v2090
    %v2187 = vrsqrt.pop %v2091
    %v2188 = vrsqrt.pop %v2092
    %v2189 = vrsqrt.pop %v2093
    %v2190 = vrsqrt.pop %v2094
    %v2191 = vrsqrt.pop %v2095
    %v2192 = vrsqrt.pop %v2096
    %v2193 = vrsqrt.pop %v2097
    %v2194 = vrsqrt.pop %v2098
    %v2195 = vrsqrt.pop %v2099
    %v2196 = vrsqrt.pop %v2100
    %v2197 = vrsqrt.pop %v2101
    %v2198 = vrsqrt.pop %v2102
    %v2199 = vrsqrt.pop %v2103
    %v2200 = vrsqrt.pop %v2104
    %v2201 = vrsqrt.pop %v2105
    %v2202 = vrsqrt.pop %v2106
    %v2203 = vrsqrt.pop %v2107
    %v2204 = vrsqrt.pop %v2108
    %v2205 = vrsqrt.pop %v2109
    %v2206 = vrsqrt.pop %v2110
    %v2207 = vrsqrt.pop %v2111
    %v2208 = vrsqrt.pop %v2112
    %v2209 = vrsqrt.pop %v2113
    %v2210 = vrsqrt.pop %v2114
    %v2211 = vrsqrt.pop %v2115
    %v2212 = vrsqrt.pop %v2116
    %v2213 = vrsqrt.pop %v2117
    %v2214 = vrsqrt.pop %v2118
    %v2215 = vrsqrt.pop %v2119
    %v2216 = vrsqrt.pop %v2120
    %v2217 = vrsqrt.pop %v2121
    %v2218 = vrsqrt.pop %v2122
    %v2219 = vrsqrt.pop %v2123
    %v2220 = vrsqrt.pop %v2124
    %v2221 = vrsqrt.pop %v2125
    %v2222 = vrsqrt.pop %v2126
    %v2223 = vrsqrt.pop %v2127
    %v2224 = vrsqrt.pop %v2128
    %v2225 = vrsqrt.pop %v2129
    %v2226 = vrsqrt.pop %v2130
    %v2227 = vrsqrt.pop %v2131
    %v2228 = vrsqrt.pop %v2132
    %v2229 = vrsqrt.pop %v2133
    %v2230 = vrsqrt.pop %v2134
    %v2231 = vrsqrt.pop %v2135
    %v2232 = vrsqrt.pop %v2136
    %v2233 = vrsqrt.pop %v2137
    %v2234 = vrsqrt.pop %v2138
    %v2235 = vrsqrt.pop %v2139
    %v2236 = vrsqrt.pop %v2140
    %v2237 = vrsqrt.pop %v2141
    %v2238 = vrsqrt.pop %v2142
    %v2239 = vrsqrt.pop %v2143
    %v2240 = vmul.f32 %v1282, %v2144
    %v2241 = vmul.f32 %v1285, %v2145
    %v2242 = vmul.f32 %v1290, %v2146
    %v2243 = vmul.f32 %v1293, %v2147
    %v2244 = vmul.f32 %v1298, %v2148
    %v2245 = vmul.f32 %v1301, %v2149
    %v2246 = vmul.f32 %v1306, %v2150
    %v2247 = vmul.f32 %v1309, %v2151
    %v2248 = vmul.f32 %v1314, %v2152
    %v2249 = vmul.f32 %v1317, %v2153
    %v2250 = vmul.f32 %v1322, %v2154
    %v2251 = vmul.f32 %v1325, %v2155
    %v2252 = vmul.f32 %v1330, %v2156
    %v2253 = vmul.f32 %v1333, %v2157
    %v2254 = vmul.f32 %v1338, %v2158
    %v2255 = vmul.f32 %v1341, %v2159
    %v2256 = vmul.f32 %v1346, %v2160
    %v2257 = vmul.f32 %v1349, %v2161
    %v2258 = vmul.f32 %v1354, %v2162
    %v2259 = vmul.f32 %v1357, %v2163
    %v2260 = vmul.f32 %v1362, %v2164
    %v2261 = vmul.f32 %v1365, %v2165
    %v2262 = vmul.f32 %v1370, %v2166
    %v2263 = vmul.f32 %v1373, %v2167
    %v2264 = vmul.f32 %v1378, %v2168
    %v2265 = vmul.f32 %v1381, %v2169
    %v2266 = vmul.f32 %v1386, %v2170
    %v2267 = vmul.f32 %v1389, %v2171
    %v2268 = vmul.f32 %v1394, %v2172
    %v2269 = vmul.f32 %v1397, %v2173
    %v2270 = vmul.f32 %v1402, %v2174
    %v2271 = vmul.f32 %v1405, %v2175
    %v2272 = vmul.f32 %v1410, %v2176
    %v2273 = vmul.f32 %v1413, %v2177
    %v2274 = vmul.f32 %v1418, %v2178
    %v2275 = vmul.f32 %v1421, %v2179
    %v2276 = vmul.f32 %v1426, %v2180
    %v2277 = vmul.f32 %v1429, %v2181
    %v2278 = vmul.f32 %v1434, %v2182
    %v2279 = vmul.f32 %v1437, %v2183
    %v2280 = vmul.f32 %v1442, %v2184
    %v2281 = vmul.f32 %v1445, %v2185
    %v2282 = vmul.f32 %v1450, %v2186
    %v2283 = vmul.f32 %v1453, %v2187
    %v2284 = vmul.f32 %v1458, %v2188
    %v2285 = vmul.f32 %v1461, %v2189
    %v2286 = vmul.f32 %v1466, %v2190
    %v2287 = vmul.f32 %v1469, %v2191
    %v2288 = vmul.f32 %v1474, %v2192
    %v2289 = vmul.f32 %v1477, %v2193
    %v2290 = vmul.f32 %v1482, %v2194
    %v2291 = vmul.f32 %v1485, %v2195
    %v2292 = vmul.f32 %v1490, %v2196
    %v2293 = vmul.f32 %v1493, %v2197
    %v2294 = vmul.f32 %v1498, %v2198
    %v2295 = vmul.f32 %v1501, %v2199
    %v2296 = vmul.f32 %v1506, %v2200
    %v2297 = vmul.f32 %v1509, %v2201
    %v2298 = vmul.f32 %v1514, %v2202
    %v2299 = vmul.f32 %v1517, %v2203
    %v2300 = vmul.f32 %v1522, %v2204
    %v2301 = vmul.f32 %v1525, %v2205
    %v2302 = vmul.f32 %v1530, %v2206
    %v2303 = vmul.f32 %v1533, %v2207
    %v2304 = vmul.f32 %v1538, %v2208
    %v2305 = vmul.f32 %v1541, %v2209
    %v2306 = vmul.f32 %v1546, %v2210
    %v2307 = vmul.f32 %v1549, %v2211
    %v2308 = vmul.f32 %v1554, %v2212
    %v2309 = vmul.f32 %v1557, %v2213
    %v2310 = vmul.f32 %v1562, %v2214
    %v2311 = vmul.f32 %v1565, %v2215
    %v2312 = vmul.f32 %v1570, %v2216
    %v2313 = vmul.f32 %v1573, %v2217
    %v2314 = vmul.f32 %v1578, %v2218
    %v2315 = vmul.f32 %v1581, %v2219
    %v2316 = vmul.f32 %v1586, %v2220
    %v2317 = vmul.f32 %v1589, %v2221
    %v2318 = vmul.f32 %v1594, %v2222
    %v2319 = vmul.f32 %v1597, %v2223
    %v2320 = vmul.f32 %v1602, %v2224
    %v2321 = vmul.f32 %v1605, %v2225
    %v2322 = vmul.f32 %v1610, %v2226
    %v2323 = vmul.f32 %v1613, %v2227
    %v2324 = vmul.f32 %v1618, %v2228
    %v2325 = vmul.f32 %v1621, %v2229
    %v2326 = vmul.f32 %v1626, %v2230
    %v2327 = vmul.f32 %v1629, %v2231
    %v2328 = vmul.f32 %v1634, %v2232
    %v2329 = vmul.f32 %v1637, %v2233
    %v2330 = vmul.f32 %v1642, %v2234
    %v2331 = vmul.f32 %v1645, %v2235
    %v2332 = vmul.f32 %v1650, %v2236
    %v2333 = vmul.f32 %v1653, %v2237
    %v2334 = vmul.f32 %v1658, %v2238
    %v2335 = vmul.f32 %v1661, %v2239
    %v2336 = vpack.c.bf16 %v2241, %v2240
    %v2337 = vpack.c.bf16 %v2243, %v2242
    %v2338 = vpack.c.bf16 %v2245, %v2244
    %v2339 = vpack.c.bf16 %v2247, %v2246
    %v2340 = vpack.c.bf16 %v2249, %v2248
    %v2341 = vpack.c.bf16 %v2251, %v2250
    %v2342 = vpack.c.bf16 %v2253, %v2252
    %v2343 = vpack.c.bf16 %v2255, %v2254
    %v2344 = vpack.c.bf16 %v2257, %v2256
    %v2345 = vpack.c.bf16 %v2259, %v2258
    %v2346 = vpack.c.bf16 %v2261, %v2260
    %v2347 = vpack.c.bf16 %v2263, %v2262
    %v2348 = vpack.c.bf16 %v2265, %v2264
    %v2349 = vpack.c.bf16 %v2267, %v2266
    %v2350 = vpack.c.bf16 %v2269, %v2268
    %v2351 = vpack.c.bf16 %v2271, %v2270
    %v2352 = vpack.c.bf16 %v2273, %v2272
    %v2353 = vpack.c.bf16 %v2275, %v2274
    %v2354 = vpack.c.bf16 %v2277, %v2276
    %v2355 = vpack.c.bf16 %v2279, %v2278
    %v2356 = vpack.c.bf16 %v2281, %v2280
    %v2357 = vpack.c.bf16 %v2283, %v2282
    %v2358 = vpack.c.bf16 %v2285, %v2284
    %v2359 = vpack.c.bf16 %v2287, %v2286
    %v2360 = vpack.c.bf16 %v2289, %v2288
    %v2361 = vpack.c.bf16 %v2291, %v2290
    %v2362 = vpack.c.bf16 %v2293, %v2292
    %v2363 = vpack.c.bf16 %v2295, %v2294
    %v2364 = vpack.c.bf16 %v2297, %v2296
    %v2365 = vpack.c.bf16 %v2299, %v2298
    %v2366 = vpack.c.bf16 %v2301, %v2300
    %v2367 = vpack.c.bf16 %v2303, %v2302
    %v2368 = vpack.c.bf16 %v2305, %v2304
    %v2369 = vpack.c.bf16 %v2307, %v2306
    %v2370 = vpack.c.bf16 %v2309, %v2308
    %v2371 = vpack.c.bf16 %v2311, %v2310
    %v2372 = vpack.c.bf16 %v2313, %v2312
    %v2373 = vpack.c.bf16 %v2315, %v2314
    %v2374 = vpack.c.bf16 %v2317, %v2316
    %v2375 = vpack.c.bf16 %v2319, %v2318
    %v2376 = vpack.c.bf16 %v2321, %v2320
    %v2377 = vpack.c.bf16 %v2323, %v2322
    %v2378 = vpack.c.bf16 %v2325, %v2324
    %v2379 = vpack.c.bf16 %v2327, %v2326
    %v2380 = vpack.c.bf16 %v2329, %v2328
    %v2381 = vpack.c.bf16 %v2331, %v2330
    %v2382 = vpack.c.bf16 %v2333, %v2332
    %v2383 = vpack.c.bf16 %v2335, %v2334
    %v2385 = vsel %vm377, %v2336, 0
    %v2388 = vsel %vm377, %v2337, 0
    %v2391 = vsel %vm377, %v2338, 0
    %v2394 = vsel %vm377, %v2339, 0
    %v2397 = vsel %vm377, %v2340, 0
    %v2400 = vsel %vm377, %v2341, 0
    %2402 = vmatprep.subr.bf16.mxu0 0
    %2403 = vmatpush1.bf16.xpose.msra.mxu0 %v2391
    %2404 = vmatprep.subr.bf16.mxu0 0
    %2405 = vmatpush1.bf16.xpose.msra.mxu0 %v2394
    %2406 = vmatprep.subr.bf16.mxu0 0
    %2407 = vmatpush1.bf16.xpose.msra.mxu0 %v2397
    %2408 = vmatprep.subr.bf16.mxu0 0
    %2409 = vmatpush1.bf16.xpose.msra.mxu0 %v2400
    %2410 = vmatprep.subr.bf16.mxu0 0
    %2411 = vmatpush1.bf16.xpose.msra.mxu0 0
    %2412 = vmatprep.subr.bf16.mxu0 0
    %2413 = vmatpush1.bf16.xpose.msra.mxu0 0
    %2414 = vmatprep.subr.bf16.mxu0 0
    %2415 = vmatpush1.bf16.xpose.msra.mxu0 0
    %2416 = vmatprep.subr.bf16.mxu0 0
    %2417 = vmatpush1.bf16.xpose.msra.mxu0 0
    %2418 = vmatprep.subr.bf16.mxu0 0
    %2419 = vmatpush1.bf16.xpose.msra.mxu0 0
    %2420 = vmatprep.subr.bf16.mxu0 0
    %2421 = vmatpush1.bf16.xpose.msra.mxu0 0
    %2422 = vmatprep.subr.bf16.mxu0 0
    %2423 = vmatpush1.bf16.xpose.msra.mxu0 0
    %2424 = vmatprep.subr.bf16.mxu0 0
    %2425 = vmatpush1.bf16.xpose.msra.mxu0 0
    %2426 = vmatprep.subr.bf16.mxu0 0
    %2427 = vmatpush1.bf16.xpose.msra.mxu0 0
    %2428 = vmatprep.subr.bf16.mxu0 0
    %2429 = vmatpush1.bf16.xpose.msra.mxu0 0
    %2430 = vmatprep.subr.bf16.mxu0 0
    %2431 = vmatpush1.bf16.xpose.msra.mxu0 0
    %2432 = vmatprep.subr.bf16.mxu0 0
    %2433 = vmatpush1.bf16.xpose.msra.mxu0 0
    %2434 = vmatprep.mubr.bf16.mxu0 0
    %2435 = vmatmul.mubr.bf16.gmra.mrb[0].mxu0 %v2385
    %v2436 = vpop.f32.mrb[0].mxu0
    %v2437 = vadd.f32 0.0, %v2436
    %v2438 = vpop.f32.mrb[0].mxu0
    %v2439 = vpop.f32.mrb[0].mxu0
    %v2440 = vadd.f32 0.0, %v2439
    %v2441 = vpop.f32.mrb[0].mxu0
    %2442 = vmatprep.mubr.bf16.mxu0 0
    %2443 = vmatmul.mubr.bf16.gmra.mrb[0].mxu0 %v2388
    %v2444 = vpop.f32.mrb[0].mxu0
    %v2445 = vadd.f32 0.0, %v2444
    %v2446 = vpop.f32.mrb[0].mxu0
    %v2447 = vpop.f32.mrb[0].mxu0
    %v2448 = vadd.f32 0.0, %v2447
    %v2449 = vpop.f32.mrb[0].mxu0
    %2450 = vdwg.mxu0
    %v2452 = vsel %vm377, %v2342, 0
    %v2455 = vsel %vm377, %v2343, 0
    %v2458 = vsel %vm377, %v2344, 0
    %v2461 = vsel %vm377, %v2345, 0
    %v2464 = vsel %vm377, %v2346, 0
    %v2467 = vsel %vm377, %v2347, 0
    %2469 = vmatprep.subr.bf16.mxu0 0
    %2470 = vmatpush1.bf16.xpose.msra.mxu0 %v2458
    %2471 = vmatprep.subr.bf16.mxu0 0
    %2472 = vmatpush1.bf16.xpose.msra.mxu0 %v2461
    %2473 = vmatprep.subr.bf16.mxu0 0
    %2474 = vmatpush1.bf16.xpose.msra.mxu0 %v2464
    %2475 = vmatprep.subr.bf16.mxu0 0
    %2476 = vmatpush1.bf16.xpose.msra.mxu0 %v2467
    %2477 = vmatprep.subr.bf16.mxu0 0
    %2478 = vmatpush1.bf16.xpose.msra.mxu0 0
    %2479 = vmatprep.subr.bf16.mxu0 0
    %2480 = vmatpush1.bf16.xpose.msra.mxu0 0
    %2481 = vmatprep.subr.bf16.mxu0 0
    %2482 = vmatpush1.bf16.xpose.msra.mxu0 0
    %2483 = vmatprep.subr.bf16.mxu0 0
    %2484 = vmatpush1.bf16.xpose.msra.mxu0 0
    %2485 = vmatprep.subr.bf16.mxu0 0
    %2486 = vmatpush1.bf16.xpose.msra.mxu0 0
    %2487 = vmatprep.subr.bf16.mxu0 0
    %2488 = vmatpush1.bf16.xpose.msra.mxu0 0
    %2489 = vmatprep.subr.bf16.mxu0 0
    %2490 = vmatpush1.bf16.xpose.msra.mxu0 0
    %2491 = vmatprep.subr.bf16.mxu0 0
    %2492 = vmatpush1.bf16.xpose.msra.mxu0 0
    %2493 = vmatprep.subr.bf16.mxu0 0
    %2494 = vmatpush1.bf16.xpose.msra.mxu0 0
    %2495 = vmatprep.subr.bf16.mxu0 0
    %2496 = vmatpush1.bf16.xpose.msra.mxu0 0
    %2497 = vmatprep.subr.bf16.mxu0 0
    %2498 = vmatpush1.bf16.xpose.msra.mxu0 0
    %2499 = vmatprep.subr.bf16.mxu0 0
    %2500 = vmatpush1.bf16.xpose.msra.mxu0 0
    %2501 = vmatprep.mubr.bf16.mxu0 0
    %2502 = vmatmul.mubr.bf16.gmra.mrb[0].mxu0 %v2452
    %v2503 = vpop.f32.mrb[0].mxu0
    %v2504 = vadd.f32 0.0, %v2503
    %v2505 = vpop.f32.mrb[0].mxu0
    %v2506 = vpop.f32.mrb[0].mxu0
    %v2507 = vadd.f32 0.0, %v2506
    %v2508 = vpop.f32.mrb[0].mxu0
    %2509 = vmatprep.mubr.bf16.mxu0 0
    %2510 = vmatmul.mubr.bf16.gmra.mrb[0].mxu0 %v2455
    %v2511 = vpop.f32.mrb[0].mxu0
    %v2512 = vadd.f32 0.0, %v2511
    %v2513 = vpop.f32.mrb[0].mxu0
    %v2514 = vpop.f32.mrb[0].mxu0
    %v2515 = vadd.f32 0.0, %v2514
    %v2516 = vpop.f32.mrb[0].mxu0
    %2517 = vdwg.mxu0
    %v2519 = vsel %vm377, %v2348, 0
    %v2522 = vsel %vm377, %v2349, 0
    %v2525 = vsel %vm377, %v2350, 0
    %v2528 = vsel %vm377, %v2351, 0
    %v2531 = vsel %vm377, %v2352, 0
    %v2534 = vsel %vm377, %v2353, 0
    %2536 = vmatprep.subr.bf16.mxu0 0
    %2537 = vmatpush1.bf16.xpose.msra.mxu0 %v2525
    %2538 = vmatprep.subr.bf16.mxu0 0
    %2539 = vmatpush1.bf16.xpose.msra.mxu0 %v2528
    %2540 = vmatprep.subr.bf16.mxu0 0
    %2541 = vmatpush1.bf16.xpose.msra.mxu0 %v2531
    %2542 = vmatprep.subr.bf16.mxu0 0
    %2543 = vmatpush1.bf16.xpose.msra.mxu0 %v2534
    %2544 = vmatprep.subr.bf16.mxu0 0
    %2545 = vmatpush1.bf16.xpose.msra.mxu0 0
    %2546 = vmatprep.subr.bf16.mxu0 0
    %2547 = vmatpush1.bf16.xpose.msra.mxu0 0
    %2548 = vmatprep.subr.bf16.mxu0 0
    %2549 = vmatpush1.bf16.xpose.msra.mxu0 0
    %2550 = vmatprep.subr.bf16.mxu0 0
    %2551 = vmatpush1.bf16.xpose.msra.mxu0 0
    %2552 = vmatprep.subr.bf16.mxu0 0
    %2553 = vmatpush1.bf16.xpose.msra.mxu0 0
    %2554 = vmatprep.subr.bf16.mxu0 0
    %2555 = vmatpush1.bf16.xpose.msra.mxu0 0
    %2556 = vmatprep.subr.bf16.mxu0 0
    %2557 = vmatpush1.bf16.xpose.msra.mxu0 0
    %2558 = vmatprep.subr.bf16.mxu0 0
    %2559 = vmatpush1.bf16.xpose.msra.mxu0 0
    %2560 = vmatprep.subr.bf16.mxu0 0
    %2561 = vmatpush1.bf16.xpose.msra.mxu0 0
    %2562 = vmatprep.subr.bf16.mxu0 0
    %2563 = vmatpush1.bf16.xpose.msra.mxu0 0
    %2564 = vmatprep.subr.bf16.mxu0 0
    %2565 = vmatpush1.bf16.xpose.msra.mxu0 0
    %2566 = vmatprep.subr.bf16.mxu0 0
    %2567 = vmatpush1.bf16.xpose.msra.mxu0 0
    %2568 = vmatprep.mubr.bf16.mxu0 0
    %2569 = vmatmul.mubr.bf16.gmra.mrb[0].mxu0 %v2519
    %v2570 = vpop.f32.mrb[0].mxu0
    %v2571 = vadd.f32 0.0, %v2570
    %v2572 = vpop.f32.mrb[0].mxu0
    %v2573 = vpop.f32.mrb[0].mxu0
    %v2574 = vadd.f32 0.0, %v2573
    %v2575 = vpop.f32.mrb[0].mxu0
    %2576 = vmatprep.mubr.bf16.mxu0 0
    %2577 = vmatmul.mubr.bf16.gmra.mrb[0].mxu0 %v2522
    %v2578 = vpop.f32.mrb[0].mxu0
    %v2579 = vadd.f32 0.0, %v2578
    %v2580 = vpop.f32.mrb[0].mxu0
    %v2581 = vpop.f32.mrb[0].mxu0
    %v2582 = vadd.f32 0.0, %v2581
    %v2583 = vpop.f32.mrb[0].mxu0
    %2584 = vdwg.mxu0
    %v2586 = vsel %vm377, %v2354, 0
    %v2589 = vsel %vm377, %v2355, 0
    %v2592 = vsel %vm377, %v2356, 0
    %v2595 = vsel %vm377, %v2357, 0
    %v2598 = vsel %vm377, %v2358, 0
    %v2601 = vsel %vm377, %v2359, 0
    %2603 = vmatprep.subr.bf16.mxu0 0
    %2604 = vmatpush1.bf16.xpose.msra.mxu0 %v2592
    %2605 = vmatprep.subr.bf16.mxu0 0
    %2606 = vmatpush1.bf16.xpose.msra.mxu0 %v2595
    %2607 = vmatprep.subr.bf16.mxu0 0
    %2608 = vmatpush1.bf16.xpose.msra.mxu0 %v2598
    %2609 = vmatprep.subr.bf16.mxu0 0
    %2610 = vmatpush1.bf16.xpose.msra.mxu0 %v2601
    %2611 = vmatprep.subr.bf16.mxu0 0
    %2612 = vmatpush1.bf16.xpose.msra.mxu0 0
    %2613 = vmatprep.subr.bf16.mxu0 0
    %2614 = vmatpush1.bf16.xpose.msra.mxu0 0
    %2615 = vmatprep.subr.bf16.mxu0 0
    %2616 = vmatpush1.bf16.xpose.msra.mxu0 0
    %2617 = vmatprep.subr.bf16.mxu0 0
    %2618 = vmatpush1.bf16.xpose.msra.mxu0 0
    %2619 = vmatprep.subr.bf16.mxu0 0
    %2620 = vmatpush1.bf16.xpose.msra.mxu0 0
    %2621 = vmatprep.subr.bf16.mxu0 0
    %2622 = vmatpush1.bf16.xpose.msra.mxu0 0
    %2623 = vmatprep.subr.bf16.mxu0 0
    %2624 = vmatpush1.bf16.xpose.msra.mxu0 0
    %2625 = vmatprep.subr.bf16.mxu0 0
    %2626 = vmatpush1.bf16.xpose.msra.mxu0 0
    %2627 = vmatprep.subr.bf16.mxu0 0
    %2628 = vmatpush1.bf16.xpose.msra.mxu0 0
    %2629 = vmatprep.subr.bf16.mxu0 0
    %2630 = vmatpush1.bf16.xpose.msra.mxu0 0
    %2631 = vmatprep.subr.bf16.mxu0 0
    %2632 = vmatpush1.bf16.xpose.msra.mxu0 0
    %2633 = vmatprep.subr.bf16.mxu0 0
    %2634 = vmatpush1.bf16.xpose.msra.mxu0 0
    %2635 = vmatprep.mubr.bf16.mxu0 0
    %2636 = vmatmul.mubr.bf16.gmra.mrb[0].mxu0 %v2586
    %v2637 = vpop.f32.mrb[0].mxu0
    %v2638 = vadd.f32 0.0, %v2637
    %v2639 = vpop.f32.mrb[0].mxu0
    %v2640 = vpop.f32.mrb[0].mxu0
    %v2641 = vadd.f32 0.0, %v2640
    %v2642 = vpop.f32.mrb[0].mxu0
    %2643 = vmatprep.mubr.bf16.mxu0 0
    %2644 = vmatmul.mubr.bf16.gmra.mrb[0].mxu0 %v2589
    %v2645 = vpop.f32.mrb[0].mxu0
    %v2646 = vadd.f32 0.0, %v2645
    %v2647 = vpop.f32.mrb[0].mxu0
    %v2648 = vpop.f32.mrb[0].mxu0
    %v2649 = vadd.f32 0.0, %v2648
    %v2650 = vpop.f32.mrb[0].mxu0
    %2651 = vdwg.mxu0
    %v2653 = vsel %vm377, %v2360, 0
    %v2656 = vsel %vm377, %v2361, 0
    %v2659 = vsel %vm377, %v2362, 0
    %v2662 = vsel %vm377, %v2363, 0
    %v2665 = vsel %vm377, %v2364, 0
    %v2668 = vsel %vm377, %v2365, 0
    %2670 = vmatprep.subr.bf16.mxu0 0
    %2671 = vmatpush1.bf16.xpose.msra.mxu0 %v2659
    %2672 = vmatprep.subr.bf16.mxu0 0
    %2673 = vmatpush1.bf16.xpose.msra.mxu0 %v2662
    %2674 = vmatprep.subr.bf16.mxu0 0
    %2675 = vmatpush1.bf16.xpose.msra.mxu0 %v2665
    %2676 = vmatprep.subr.bf16.mxu0 0
    %2677 = vmatpush1.bf16.xpose.msra.mxu0 %v2668
    %2678 = vmatprep.subr.bf16.mxu0 0
    %2679 = vmatpush1.bf16.xpose.msra.mxu0 0
    %2680 = vmatprep.subr.bf16.mxu0 0
    %2681 = vmatpush1.bf16.xpose.msra.mxu0 0
    %2682 = vmatprep.subr.bf16.mxu0 0
    %2683 = vmatpush1.bf16.xpose.msra.mxu0 0
    %2684 = vmatprep.subr.bf16.mxu0 0
    %2685 = vmatpush1.bf16.xpose.msra.mxu0 0
    %2686 = vmatprep.subr.bf16.mxu0 0
    %2687 = vmatpush1.bf16.xpose.msra.mxu0 0
    %2688 = vmatprep.subr.bf16.mxu0 0
    %2689 = vmatpush1.bf16.xpose.msra.mxu0 0
    %2690 = vmatprep.subr.bf16.mxu0 0
    %2691 = vmatpush1.bf16.xpose.msra.mxu0 0
    %2692 = vmatprep.subr.bf16.mxu0 0
    %2693 = vmatpush1.bf16.xpose.msra.mxu0 0
    %2694 = vmatprep.subr.bf16.mxu0 0
    %2695 = vmatpush1.bf16.xpose.msra.mxu0 0
    %2696 = vmatprep.subr.bf16.mxu0 0
    %2697 = vmatpush1.bf16.xpose.msra.mxu0 0
    %2698 = vmatprep.subr.bf16.mxu0 0
    %2699 = vmatpush1.bf16.xpose.msra.mxu0 0
    %2700 = vmatprep.subr.bf16.mxu0 0
    %2701 = vmatpush1.bf16.xpose.msra.mxu0 0
    %2702 = vmatprep.mubr.bf16.mxu0 0
    %2703 = vmatmul.mubr.bf16.gmra.mrb[0].mxu0 %v2653
    %v2704 = vpop.f32.mrb[0].mxu0
    %v2705 = vadd.f32 0.0, %v2704
    %v2706 = vpop.f32.mrb[0].mxu0
    %v2707 = vpop.f32.mrb[0].mxu0
    %v2708 = vadd.f32 0.0, %v2707
    %v2709 = vpop.f32.mrb[0].mxu0
    %2710 = vmatprep.mubr.bf16.mxu0 0
    %2711 = vmatmul.mubr.bf16.gmra.mrb[0].mxu0 %v2656
    %v2712 = vpop.f32.mrb[0].mxu0
    %v2713 = vadd.f32 0.0, %v2712
    %v2714 = vpop.f32.mrb[0].mxu0
    %v2715 = vpop.f32.mrb[0].mxu0
    %v2716 = vadd.f32 0.0, %v2715
    %v2717 = vpop.f32.mrb[0].mxu0
    %2718 = vdwg.mxu0
    %v2720 = vsel %vm377, %v2366, 0
    %v2723 = vsel %vm377, %v2367, 0
    %v2726 = vsel %vm377, %v2368, 0
    %v2729 = vsel %vm377, %v2369, 0
    %v2732 = vsel %vm377, %v2370, 0
    %v2735 = vsel %vm377, %v2371, 0
    %2737 = vmatprep.subr.bf16.mxu0 0
    %2738 = vmatpush1.bf16.xpose.msra.mxu0 %v2726
    %2739 = vmatprep.subr.bf16.mxu0 0
    %2740 = vmatpush1.bf16.xpose.msra.mxu0 %v2729
    %2741 = vmatprep.subr.bf16.mxu0 0
    %2742 = vmatpush1.bf16.xpose.msra.mxu0 %v2732
    %2743 = vmatprep.subr.bf16.mxu0 0
    %2744 = vmatpush1.bf16.xpose.msra.mxu0 %v2735
    %2745 = vmatprep.subr.bf16.mxu0 0
    %2746 = vmatpush1.bf16.xpose.msra.mxu0 0
    %2747 = vmatprep.subr.bf16.mxu0 0
    %2748 = vmatpush1.bf16.xpose.msra.mxu0 0
    %2749 = vmatprep.subr.bf16.mxu0 0
    %2750 = vmatpush1.bf16.xpose.msra.mxu0 0
    %2751 = vmatprep.subr.bf16.mxu0 0
    %2752 = vmatpush1.bf16.xpose.msra.mxu0 0
    %2753 = vmatprep.subr.bf16.mxu0 0
    %2754 = vmatpush1.bf16.xpose.msra.mxu0 0
    %2755 = vmatprep.subr.bf16.mxu0 0
    %2756 = vmatpush1.bf16.xpose.msra.mxu0 0
    %2757 = vmatprep.subr.bf16.mxu0 0
    %2758 = vmatpush1.bf16.xpose.msra.mxu0 0
    %2759 = vmatprep.subr.bf16.mxu0 0
    %2760 = vmatpush1.bf16.xpose.msra.mxu0 0
    %2761 = vmatprep.subr.bf16.mxu0 0
    %2762 = vmatpush1.bf16.xpose.msra.mxu0 0
    %2763 = vmatprep.subr.bf16.mxu0 0
    %2764 = vmatpush1.bf16.xpose.msra.mxu0 0
    %2765 = vmatprep.subr.bf16.mxu0 0
    %2766 = vmatpush1.bf16.xpose.msra.mxu0 0
    %2767 = vmatprep.subr.bf16.mxu0 0
    %2768 = vmatpush1.bf16.xpose.msra.mxu0 0
    %2769 = vmatprep.mubr.bf16.mxu0 0
    %2770 = vmatmul.mubr.bf16.gmra.mrb[0].mxu0 %v2720
    %v2771 = vpop.f32.mrb[0].mxu0
    %v2772 = vadd.f32 0.0, %v2771
    %v2773 = vpop.f32.mrb[0].mxu0
    %v2774 = vpop.f32.mrb[0].mxu0
    %v2775 = vadd.f32 0.0, %v2774
    %v2776 = vpop.f32.mrb[0].mxu0
    %2777 = vmatprep.mubr.bf16.mxu0 0
    %2778 = vmatmul.mubr.bf16.gmra.mrb[0].mxu0 %v2723
    %v2779 = vpop.f32.mrb[0].mxu0
    %v2780 = vadd.f32 0.0, %v2779
    %v2781 = vpop.f32.mrb[0].mxu0
    %v2782 = vpop.f32.mrb[0].mxu0
    %v2783 = vadd.f32 0.0, %v2782
    %v2784 = vpop.f32.mrb[0].mxu0
    %2785 = vdwg.mxu0
    %v2787 = vsel %vm377, %v2372, 0
    %v2790 = vsel %vm377, %v2373, 0
    %v2793 = vsel %vm377, %v2374, 0
    %v2796 = vsel %vm377, %v2375, 0
    %v2799 = vsel %vm377, %v2376, 0
    %v2802 = vsel %vm377, %v2377, 0
    %2804 = vmatprep.subr.bf16.mxu0 0
    %2805 = vmatpush1.bf16.xpose.msra.mxu0 %v2793
    %2806 = vmatprep.subr.bf16.mxu0 0
    %2807 = vmatpush1.bf16.xpose.msra.mxu0 %v2796
    %2808 = vmatprep.subr.bf16.mxu0 0
    %2809 = vmatpush1.bf16.xpose.msra.mxu0 %v2799
    %2810 = vmatprep.subr.bf16.mxu0 0
    %2811 = vmatpush1.bf16.xpose.msra.mxu0 %v2802
    %2812 = vmatprep.subr.bf16.mxu0 0
    %2813 = vmatpush1.bf16.xpose.msra.mxu0 0
    %2814 = vmatprep.subr.bf16.mxu0 0
    %2815 = vmatpush1.bf16.xpose.msra.mxu0 0
    %2816 = vmatprep.subr.bf16.mxu0 0
    %2817 = vmatpush1.bf16.xpose.msra.mxu0 0
    %2818 = vmatprep.subr.bf16.mxu0 0
    %2819 = vmatpush1.bf16.xpose.msra.mxu0 0
    %2820 = vmatprep.subr.bf16.mxu0 0
    %2821 = vmatpush1.bf16.xpose.msra.mxu0 0
    %2822 = vmatprep.subr.bf16.mxu0 0
    %2823 = vmatpush1.bf16.xpose.msra.mxu0 0
    %2824 = vmatprep.subr.bf16.mxu0 0
    %2825 = vmatpush1.bf16.xpose.msra.mxu0 0
    %2826 = vmatprep.subr.bf16.mxu0 0
    %2827 = vmatpush1.bf16.xpose.msra.mxu0 0
    %2828 = vmatprep.subr.bf16.mxu0 0
    %2829 = vmatpush1.bf16.xpose.msra.mxu0 0
    %2830 = vmatprep.subr.bf16.mxu0 0
    %2831 = vmatpush1.bf16.xpose.msra.mxu0 0
    %2832 = vmatprep.subr.bf16.mxu0 0
    %2833 = vmatpush1.bf16.xpose.msra.mxu0 0
    %2834 = vmatprep.subr.bf16.mxu0 0
    %2835 = vmatpush1.bf16.xpose.msra.mxu0 0
    %2836 = vmatprep.mubr.bf16.mxu0 0
    %2837 = vmatmul.mubr.bf16.gmra.mrb[0].mxu0 %v2787
    %v2838 = vpop.f32.mrb[0].mxu0
    %v2839 = vadd.f32 0.0, %v2838
    %v2840 = vpop.f32.mrb[0].mxu0
    %v2841 = vpop.f32.mrb[0].mxu0
    %v2842 = vadd.f32 0.0, %v2841
    %v2843 = vpop.f32.mrb[0].mxu0
    %2844 = vmatprep.mubr.bf16.mxu0 0
    %2845 = vmatmul.mubr.bf16.gmra.mrb[0].mxu0 %v2790
    %v2846 = vpop.f32.mrb[0].mxu0
    %v2847 = vadd.f32 0.0, %v2846
    %v2848 = vpop.f32.mrb[0].mxu0
    %v2849 = vpop.f32.mrb[0].mxu0
    %v2850 = vadd.f32 0.0, %v2849
    %v2851 = vpop.f32.mrb[0].mxu0
    %2852 = vdwg.mxu0
    %v2854 = vsel %vm377, %v2378, 0
    %v2857 = vsel %vm377, %v2379, 0
    %v2860 = vsel %vm377, %v2380, 0
    %v2863 = vsel %vm377, %v2381, 0
    %v2866 = vsel %vm377, %v2382, 0
    %v2869 = vsel %vm377, %v2383, 0
    %2871 = vmatprep.subr.bf16.mxu0 0
    %2872 = vmatpush1.bf16.xpose.msra.mxu0 %v2860
    %2873 = vmatprep.subr.bf16.mxu0 0
    %2874 = vmatpush1.bf16.xpose.msra.mxu0 %v2863
    %2875 = vmatprep.subr.bf16.mxu0 0
    %2876 = vmatpush1.bf16.xpose.msra.mxu0 %v2866
    %2877 = vmatprep.subr.bf16.mxu0 0
    %2878 = vmatpush1.bf16.xpose.msra.mxu0 %v2869
    %2879 = vmatprep.subr.bf16.mxu0 0
    %2880 = vmatpush1.bf16.xpose.msra.mxu0 0
    %2881 = vmatprep.subr.bf16.mxu0 0
    %2882 = vmatpush1.bf16.xpose.msra.mxu0 0
    %2883 = vmatprep.subr.bf16.mxu0 0
    %2884 = vmatpush1.bf16.xpose.msra.mxu0 0
    %2885 = vmatprep.subr.bf16.mxu0 0
    %2886 = vmatpush1.bf16.xpose.msra.mxu0 0
    %2887 = vmatprep.subr.bf16.mxu0 0
    %2888 = vmatpush1.bf16.xpose.msra.mxu0 0
    %2889 = vmatprep.subr.bf16.mxu0 0
    %2890 = vmatpush1.bf16.xpose.msra.mxu0 0
    %2891 = vmatprep.subr.bf16.mxu0 0
    %2892 = vmatpush1.bf16.xpose.msra.mxu0 0
    %2893 = vmatprep.subr.bf16.mxu0 0
    %2894 = vmatpush1.bf16.xpose.msra.mxu0 0
    %2895 = vmatprep.subr.bf16.mxu0 0
    %2896 = vmatpush1.bf16.xpose.msra.mxu0 0
    %2897 = vmatprep.subr.bf16.mxu0 0
    %2898 = vmatpush1.bf16.xpose.msra.mxu0 0
    %2899 = vmatprep.subr.bf16.mxu0 0
    %2900 = vmatpush1.bf16.xpose.msra.mxu0 0
    %2901 = vmatprep.subr.bf16.mxu0 0
    %2902 = vmatpush1.bf16.xpose.msra.mxu0 0
    %2903 = vmatprep.mubr.bf16.mxu0 0
    %2904 = vmatmul.mubr.bf16.gmra.mrb[0].mxu0 %v2854
    %v2905 = vpop.f32.mrb[0].mxu0
    %v2906 = vadd.f32 0.0, %v2905
    %v2907 = vpop.f32.mrb[0].mxu0
    %v2908 = vpop.f32.mrb[0].mxu0
    %v2909 = vadd.f32 0.0, %v2908
    %v2910 = vpop.f32.mrb[0].mxu0
    %2911 = vmatprep.mubr.bf16.mxu0 0
    %2912 = vmatmul.mubr.bf16.gmra.mrb[0].mxu0 %v2857
    %v2913 = vpop.f32.mrb[0].mxu0
    %v2914 = vadd.f32 0.0, %v2913
    %v2915 = vpop.f32.mrb[0].mxu0
    %v2916 = vpop.f32.mrb[0].mxu0
    %v2917 = vadd.f32 0.0, %v2916
    %v2918 = vpop.f32.mrb[0].mxu0
    %2919 = vdwg.mxu0
    %v2920 = vmul.f32 %v2437, 14.285714
    %v2921 = vmul.f32 %v2440, 14.285714
    %v2922 = vmul.f32 %v2445, 14.285714
    %v2923 = vmul.f32 %v2448, 14.285714
    %v2924 = vmul.f32 %v2504, 14.285714
    %v2925 = vmul.f32 %v2507, 14.285714
    %v2926 = vmul.f32 %v2512, 14.285714
    %v2927 = vmul.f32 %v2515, 14.285714
    %v2928 = vmul.f32 %v2571, 14.285714
    %v2929 = vmul.f32 %v2574, 14.285714
    %v2930 = vmul.f32 %v2579, 14.285714
    %v2931 = vmul.f32 %v2582, 14.285714
    %v2932 = vmul.f32 %v2638, 14.285714
    %v2933 = vmul.f32 %v2641, 14.285714
    %v2934 = vmul.f32 %v2646, 14.285714
    %v2935 = vmul.f32 %v2649, 14.285714
    %v2936 = vmul.f32 %v2705, 14.285714
    %v2937 = vmul.f32 %v2708, 14.285714
    %v2938 = vmul.f32 %v2713, 14.285714
    %v2939 = vmul.f32 %v2716, 14.285714
    %v2940 = vmul.f32 %v2772, 14.285714
    %v2941 = vmul.f32 %v2775, 14.285714
    %v2942 = vmul.f32 %v2780, 14.285714
    %v2943 = vmul.f32 %v2783, 14.285714
    %v2944 = vmul.f32 %v2839, 14.285714
    %v2945 = vmul.f32 %v2842, 14.285714
    %v2946 = vmul.f32 %v2847, 14.285714
    %v2947 = vmul.f32 %v2850, 14.285714
    %v2948 = vmul.f32 %v2906, 14.285714
    %v2949 = vmul.f32 %v2909, 14.285714
    %v2950 = vmul.f32 %v2914, 14.285714
    %v2951 = vmul.f32 %v2917, 14.285714
    %v2952 = vlaneseq
    %v2953 = vand.u32 %v2952, 127
    %vm2954 = vcmp.ge.s32.totalorder %v2953, 32
    %v2955 = vsel %vm2954, %v2920, -inf
    %v2956 = vsel %vm2954, %v2921, -inf
    %v2957 = vsel %vm2954, %v2922, -inf
    %v2958 = vsel %vm2954, %v2923, -inf
    %v2959 = vsel %vm2954, %v2924, -inf
    %v2960 = vsel %vm2954, %v2925, -inf
    %v2961 = vsel %vm2954, %v2926, -inf
    %v2962 = vsel %vm2954, %v2927, -inf
    %v2963 = vsel %vm2954, %v2928, -inf
    %v2964 = vsel %vm2954, %v2929, -inf
    %v2965 = vsel %vm2954, %v2930, -inf
    %v2966 = vsel %vm2954, %v2931, -inf
    %v2967 = vsel %vm2954, %v2932, -inf
    %v2968 = vsel %vm2954, %v2933, -inf
    %v2969 = vsel %vm2954, %v2934, -inf
    %v2970 = vsel %vm2954, %v2935, -inf
    %v2971 = vsel %vm2954, %v2936, -inf
    %v2972 = vsel %vm2954, %v2937, -inf
    %v2973 = vsel %vm2954, %v2938, -inf
    %v2974 = vsel %vm2954, %v2939, -inf
    %v2975 = vsel %vm2954, %v2940, -inf
    %v2976 = vsel %vm2954, %v2941, -inf
    %v2977 = vsel %vm2954, %v2942, -inf
    %v2978 = vsel %vm2954, %v2943, -inf
    %v2979 = vsel %vm2954, %v2944, -inf
    %v2980 = vsel %vm2954, %v2945, -inf
    %v2981 = vsel %vm2954, %v2946, -inf
    %v2982 = vsel %vm2954, %v2947, -inf
    %v2983 = vsel %vm2954, %v2948, -inf
    %v2984 = vsel %vm2954, %v2949, -inf
    %v2985 = vsel %vm2954, %v2950, -inf
    %v2986 = vsel %vm2954, %v2951, -inf
    %vm2987 = vcmask 523264
    %v2988 = vsel %vm2987, %v2955, -inf
    %2989 = vmax.xlane.f32.xlu0 %v2988
    %v2990 = vpop.xlane.xlu0 %2989
    %v2991 = vsel %vm2987, %v2956, -inf
    %2992 = vmax.xlane.f32.xlu0 %v2991
    %v2993 = vpop.xlane.xlu0 %2992
    %v2994 = vsel %vm2987, %v2957, -inf
    %2995 = vmax.xlane.f32.xlu0 %v2994
    %v2996 = vpop.xlane.xlu0 %2995
    %v2997 = vsel %vm2987, %v2958, -inf
    %2998 = vmax.xlane.f32.xlu0 %v2997
    %v2999 = vpop.xlane.xlu0 %2998
    %v3000 = vsel %vm2987, %v2959, -inf
    %3001 = vmax.xlane.f32.xlu0 %v3000
    %v3002 = vpop.xlane.xlu0 %3001
    %v3003 = vsel %vm2987, %v2960, -inf
    %3004 = vmax.xlane.f32.xlu0 %v3003
    %v3005 = vpop.xlane.xlu0 %3004
    %v3006 = vsel %vm2987, %v2961, -inf
    %3007 = vmax.xlane.f32.xlu0 %v3006
    %v3008 = vpop.xlane.xlu0 %3007
    %v3009 = vsel %vm2987, %v2962, -inf
    %3010 = vmax.xlane.f32.xlu0 %v3009
    %v3011 = vpop.xlane.xlu0 %3010
    %v3012 = vsel %vm2987, %v2963, -inf
    %3013 = vmax.xlane.f32.xlu0 %v3012
    %v3014 = vpop.xlane.xlu0 %3013
    %v3015 = vsel %vm2987, %v2964, -inf
    %3016 = vmax.xlane.f32.xlu0 %v3015
    %v3017 = vpop.xlane.xlu0 %3016
    %v3018 = vsel %vm2987, %v2965, -inf
    %3019 = vmax.xlane.f32.xlu0 %v3018
    %v3020 = vpop.xlane.xlu0 %3019
    %v3021 = vsel %vm2987, %v2966, -inf
    %3022 = vmax.xlane.f32.xlu0 %v3021
    %v3023 = vpop.xlane.xlu0 %3022
    %v3024 = vsel %vm2987, %v2967, -inf
    %3025 = vmax.xlane.f32.xlu0 %v3024
    %v3026 = vpop.xlane.xlu0 %3025
    %v3027 = vsel %vm2987, %v2968, -inf
    %3028 = vmax.xlane.f32.xlu0 %v3027
    %v3029 = vpop.xlane.xlu0 %3028
    %v3030 = vsel %vm2987, %v2969, -inf
    %3031 = vmax.xlane.f32.xlu0 %v3030
    %v3032 = vpop.xlane.xlu0 %3031
    %v3033 = vsel %vm2987, %v2970, -inf
    %3034 = vmax.xlane.f32.xlu0 %v3033
    %v3035 = vpop.xlane.xlu0 %3034
    %v3036 = vsel %vm2987, %v2971, -inf
    %3037 = vmax.xlane.f32.xlu0 %v3036
    %v3038 = vpop.xlane.xlu0 %3037
    %v3039 = vsel %vm2987, %v2972, -inf
    %3040 = vmax.xlane.f32.xlu0 %v3039
    %v3041 = vpop.xlane.xlu0 %3040
    %v3042 = vsel %vm2987, %v2973, -inf
    %3043 = vmax.xlane.f32.xlu0 %v3042
    %v3044 = vpop.xlane.xlu0 %3043
    %v3045 = vsel %vm2987, %v2974, -inf
    %3046 = vmax.xlane.f32.xlu0 %v3045
    %v3047 = vpop.xlane.xlu0 %3046
    %v3048 = vsel %vm2987, %v2975, -inf
    %3049 = vmax.xlane.f32.xlu0 %v3048
    %v3050 = vpop.xlane.xlu0 %3049
    %v3051 = vsel %vm2987, %v2976, -inf
    %3052 = vmax.xlane.f32.xlu0 %v3051
    %v3053 = vpop.xlane.xlu0 %3052
    %v3054 = vsel %vm2987, %v2977, -inf
    %3055 = vmax.xlane.f32.xlu0 %v3054
    %v3056 = vpop.xlane.xlu0 %3055
    %v3057 = vsel %vm2987, %v2978, -inf
    %3058 = vmax.xlane.f32.xlu0 %v3057
    %v3059 = vpop.xlane.xlu0 %3058
    %v3060 = vsel %vm2987, %v2979, -inf
    %3061 = vmax.xlane.f32.xlu0 %v3060
    %v3062 = vpop.xlane.xlu0 %3061
    %v3063 = vsel %vm2987, %v2980, -inf
    %3064 = vmax.xlane.f32.xlu0 %v3063
    %v3065 = vpop.xlane.xlu0 %3064
    %v3066 = vsel %vm2987, %v2981, -inf
    %3067 = vmax.xlane.f32.xlu0 %v3066
    %v3068 = vpop.xlane.xlu0 %3067
    %v3069 = vsel %vm2987, %v2982, -inf
    %3070 = vmax.xlane.f32.xlu0 %v3069
    %v3071 = vpop.xlane.xlu0 %3070
    %v3072 = vsel %vm2987, %v2983, -inf
    %3073 = vmax.xlane.f32.xlu0 %v3072
    %v3074 = vpop.xlane.xlu0 %3073
    %v3075 = vsel %vm2987, %v2984, -inf
    %3076 = vmax.xlane.f32.xlu0 %v3075
    %v3077 = vpop.xlane.xlu0 %3076
    %v3078 = vsel %vm2987, %v2985, -inf
    %3079 = vmax.xlane.f32.xlu0 %v3078
    %v3080 = vpop.xlane.xlu0 %3079
    %v3081 = vsel %vm2987, %v2986, -inf
    %3082 = vmax.xlane.f32.xlu0 %v3081
    %v3083 = vpop.xlane.xlu0 %3082
    %v3084 = vsub.f32 %v2955, %v2990
    %v3085 = vsub.f32 %v2956, %v2993
    %v3086 = vsub.f32 %v2957, %v2996
    %v3087 = vsub.f32 %v2958, %v2999
    %v3088 = vsub.f32 %v2959, %v3002
    %v3089 = vsub.f32 %v2960, %v3005
    %v3090 = vsub.f32 %v2961, %v3008
    %v3091 = vsub.f32 %v2962, %v3011
    %v3092 = vsub.f32 %v2963, %v3014
    %v3093 = vsub.f32 %v2964, %v3017
    %v3094 = vsub.f32 %v2965, %v3020
    %v3095 = vsub.f32 %v2966, %v3023
    %v3096 = vsub.f32 %v2967, %v3026
    %v3097 = vsub.f32 %v2968, %v3029
    %v3098 = vsub.f32 %v2969, %v3032
    %v3099 = vsub.f32 %v2970, %v3035
    %v3100 = vsub.f32 %v2971, %v3038
    %v3101 = vsub.f32 %v2972, %v3041
    %v3102 = vsub.f32 %v2973, %v3044
    %v3103 = vsub.f32 %v2974, %v3047
    %v3104 = vsub.f32 %v2975, %v3050
    %v3105 = vsub.f32 %v2976, %v3053
    %v3106 = vsub.f32 %v2977, %v3056
    %v3107 = vsub.f32 %v2978, %v3059
    %v3108 = vsub.f32 %v2979, %v3062
    %v3109 = vsub.f32 %v2980, %v3065
    %v3110 = vsub.f32 %v2981, %v3068
    %v3111 = vsub.f32 %v2982, %v3071
    %v3112 = vsub.f32 %v2983, %v3074
    %v3113 = vsub.f32 %v2984, %v3077
    %v3114 = vsub.f32 %v2985, %v3080
    %v3115 = vsub.f32 %v2986, %v3083
    %v3116 = vmul.f32 %v3084, 1.442695
    %v3117 = vpow.pop %v3116
    %v3118 = vmul.f32 %v3085, 1.442695
    %v3119 = vpow.pop %v3118
    %v3120 = vmul.f32 %v3086, 1.442695
    %v3121 = vpow.pop %v3120
    %v3122 = vmul.f32 %v3087, 1.442695
    %v3123 = vpow.pop %v3122
    %v3124 = vmul.f32 %v3088, 1.442695
    %v3125 = vpow.pop %v3124
    %v3126 = vmul.f32 %v3089, 1.442695
    %v3127 = vpow.pop %v3126
    %v3128 = vmul.f32 %v3090, 1.442695
    %v3129 = vpow.pop %v3128
    %v3130 = vmul.f32 %v3091, 1.442695
    %v3131 = vpow.pop %v3130
    %v3132 = vmul.f32 %v3092, 1.442695
    %v3133 = vpow.pop %v3132
    %v3134 = vmul.f32 %v3093, 1.442695
    %v3135 = vpow.pop %v3134
    %v3136 = vmul.f32 %v3094, 1.442695
    %v3137 = vpow.pop %v3136
    %v3138 = vmul.f32 %v3095, 1.442695
    %v3139 = vpow.pop %v3138
    %v3140 = vmul.f32 %v3096, 1.442695
    %v3141 = vpow.pop %v3140
    %v3142 = vmul.f32 %v3097, 1.442695
    %v3143 = vpow.pop %v3142
    %v3144 = vmul.f32 %v3098, 1.442695
    %v3145 = vpow.pop %v3144
    %v3146 = vmul.f32 %v3099, 1.442695
    %v3147 = vpow.pop %v3146
    %v3148 = vmul.f32 %v3100, 1.442695
    %v3149 = vpow.pop %v3148
    %v3150 = vmul.f32 %v3101, 1.442695
    %v3151 = vpow.pop %v3150
    %v3152 = vmul.f32 %v3102, 1.442695
    %v3153 = vpow.pop %v3152
    %v3154 = vmul.f32 %v3103, 1.442695
    %v3155 = vpow.pop %v3154
    %v3156 = vmul.f32 %v3104, 1.442695
    %v3157 = vpow.pop %v3156
    %v3158 = vmul.f32 %v3105, 1.442695
    %v3159 = vpow.pop %v3158
    %v3160 = vmul.f32 %v3106, 1.442695
    %v3161 = vpow.pop %v3160
    %v3162 = vmul.f32 %v3107, 1.442695
    %v3163 = vpow.pop %v3162
    %v3164 = vmul.f32 %v3108, 1.442695
    %v3165 = vpow.pop %v3164
    %v3166 = vmul.f32 %v3109, 1.442695
    %v3167 = vpow.pop %v3166
    %v3168 = vmul.f32 %v3110, 1.442695
    %v3169 = vpow.pop %v3168
    %v3170 = vmul.f32 %v3111, 1.442695
    %v3171 = vpow.pop %v3170
    %v3172 = vmul.f32 %v3112, 1.442695
    %v3173 = vpow.pop %v3172
    %v3174 = vmul.f32 %v3113, 1.442695
    %v3175 = vpow.pop %v3174
    %v3176 = vmul.f32 %v3114, 1.442695
    %v3177 = vpow.pop %v3176
    %v3178 = vmul.f32 %v3115, 1.442695
    %v3179 = vpow.pop %v3178
    %v3180 = vsel %vm2987, %v3117, 0.0
    %3181 = vadd.xlane.f32.xlu0 %v3180
    %v3182 = vpop.xlane.xlu0 %3181
    %v3183 = vsel %vm2987, %v3119, 0.0
    %3184 = vadd.xlane.f32.xlu0 %v3183
    %v3185 = vpop.xlane.xlu0 %3184
    %v3186 = vsel %vm2987, %v3121, 0.0
    %3187 = vadd.xlane.f32.xlu0 %v3186
    %v3188 = vpop.xlane.xlu0 %3187
    %v3189 = vsel %vm2987, %v3123, 0.0
    %3190 = vadd.xlane.f32.xlu0 %v3189
    %v3191 = vpop.xlane.xlu0 %3190
    %v3192 = vsel %vm2987, %v3125, 0.0
    %3193 = vadd.xlane.f32.xlu0 %v3192
    %v3194 = vpop.xlane.xlu0 %3193
    %v3195 = vsel %vm2987, %v3127, 0.0
    %3196 = vadd.xlane.f32.xlu0 %v3195
    %v3197 = vpop.xlane.xlu0 %3196
    %v3198 = vsel %vm2987, %v3129, 0.0
    %3199 = vadd.xlane.f32.xlu0 %v3198
    %v3200 = vpop.xlane.xlu0 %3199
    %v3201 = vsel %vm2987, %v3131, 0.0
    %3202 = vadd.xlane.f32.xlu0 %v3201
    %v3203 = vpop.xlane.xlu0 %3202
    %v3204 = vsel %vm2987, %v3133, 0.0
    %3205 = vadd.xlane.f32.xlu0 %v3204
    %v3206 = vpop.xlane.xlu0 %3205
    %v3207 = vsel %vm2987, %v3135, 0.0
    %3208 = vadd.xlane.f32.xlu0 %v3207
    %v3209 = vpop.xlane.xlu0 %3208
    %v3210 = vsel %vm2987, %v3137, 0.0
    %3211 = vadd.xlane.f32.xlu0 %v3210
    %v3212 = vpop.xlane.xlu0 %3211
    %v3213 = vsel %vm2987, %v3139, 0.0
    %3214 = vadd.xlane.f32.xlu0 %v3213
    %v3215 = vpop.xlane.xlu0 %3214
    %v3216 = vsel %vm2987, %v3141, 0.0
    %3217 = vadd.xlane.f32.xlu0 %v3216
    %v3218 = vpop.xlane.xlu0 %3217
    %v3219 = vsel %vm2987, %v3143, 0.0
    %3220 = vadd.xlane.f32.xlu0 %v3219
    %v3221 = vpop.xlane.xlu0 %3220
    %v3222 = vsel %vm2987, %v3145, 0.0
    %3223 = vadd.xlane.f32.xlu0 %v3222
    %v3224 = vpop.xlane.xlu0 %3223
    %v3225 = vsel %vm2987, %v3147, 0.0
    %3226 = vadd.xlane.f32.xlu0 %v3225
    %v3227 = vpop.xlane.xlu0 %3226
    %v3228 = vsel %vm2987, %v3149, 0.0
    %3229 = vadd.xlane.f32.xlu0 %v3228
    %v3230 = vpop.xlane.xlu0 %3229
    %v3231 = vsel %vm2987, %v3151, 0.0
    %3232 = vadd.xlane.f32.xlu0 %v3231
    %v3233 = vpop.xlane.xlu0 %3232
    %v3234 = vsel %vm2987, %v3153, 0.0
    %3235 = vadd.xlane.f32.xlu0 %v3234
    %v3236 = vpop.xlane.xlu0 %3235
    %v3237 = vsel %vm2987, %v3155, 0.0
    %3238 = vadd.xlane.f32.xlu0 %v3237
    %v3239 = vpop.xlane.xlu0 %3238
    %v3240 = vsel %vm2987, %v3157, 0.0
    %3241 = vadd.xlane.f32.xlu0 %v3240
    %v3242 = vpop.xlane.xlu0 %3241
    %v3243 = vsel %vm2987, %v3159, 0.0
    %3244 = vadd.xlane.f32.xlu0 %v3243
    %v3245 = vpop.xlane.xlu0 %3244
    %v3246 = vsel %vm2987, %v3161, 0.0
    %3247 = vadd.xlane.f32.xlu0 %v3246
    %v3248 = vpop.xlane.xlu0 %3247
    %v3249 = vsel %vm2987, %v3163, 0.0
    %3250 = vadd.xlane.f32.xlu0 %v3249
    %v3251 = vpop.xlane.xlu0 %3250
    %v3252 = vsel %vm2987, %v3165, 0.0
    %3253 = vadd.xlane.f32.xlu0 %v3252
    %v3254 = vpop.xlane.xlu0 %3253
    %v3255 = vsel %vm2987, %v3167, 0.0
    %3256 = vadd.xlane.f32.xlu0 %v3255
    %v3257 = vpop.xlane.xlu0 %3256
    %v3258 = vsel %vm2987, %v3169, 0.0
    %3259 = vadd.xlane.f32.xlu0 %v3258
    %v3260 = vpop.xlane.xlu0 %3259
    %v3261 = vsel %vm2987, %v3171, 0.0
    %3262 = vadd.xlane.f32.xlu0 %v3261
    %v3263 = vpop.xlane.xlu0 %3262
    %v3264 = vsel %vm2987, %v3173, 0.0
    %3265 = vadd.xlane.f32.xlu0 %v3264
    %v3266 = vpop.xlane.xlu0 %3265
    %v3267 = vsel %vm2987, %v3175, 0.0
    %3268 = vadd.xlane.f32.xlu0 %v3267
    %v3269 = vpop.xlane.xlu0 %3268
    %v3270 = vsel %vm2987, %v3177, 0.0
    %3271 = vadd.xlane.f32.xlu0 %v3270
    %v3272 = vpop.xlane.xlu0 %3271
    %v3273 = vsel %vm2987, %v3179, 0.0
    %3274 = vadd.xlane.f32.xlu0 %v3273
    %v3275 = vpop.xlane.xlu0 %3274
    %v3276 = vlog2.pop %v3182
    %v3277 = vmul.f32 %v3276, 0.6931472
    %v3278 = vlog2.pop %v3185
    %v3279 = vmul.f32 %v3278, 0.6931472
    %v3280 = vlog2.pop %v3188
    %v3281 = vmul.f32 %v3280, 0.6931472
    %v3282 = vlog2.pop %v3191
    %v3283 = vmul.f32 %v3282, 0.6931472
    %v3284 = vlog2.pop %v3194
    %v3285 = vmul.f32 %v3284, 0.6931472
    %v3286 = vlog2.pop %v3197
    %v3287 = vmul.f32 %v3286, 0.6931472
    %v3288 = vlog2.pop %v3200
    %v3289 = vmul.f32 %v3288, 0.6931472
    %v3290 = vlog2.pop %v3203
    %v3291 = vmul.f32 %v3290, 0.6931472
    %v3292 = vlog2.pop %v3206
    %v3293 = vmul.f32 %v3292, 0.6931472
    %v3294 = vlog2.pop %v3209
    %v3295 = vmul.f32 %v3294, 0.6931472
    %v3296 = vlog2.pop %v3212
    %v3297 = vmul.f32 %v3296, 0.6931472
    %v3298 = vlog2.pop %v3215
    %v3299 = vmul.f32 %v3298, 0.6931472
    %v3300 = vlog2.pop %v3218
    %v3301 = vmul.f32 %v3300, 0.6931472
    %v3302 = vlog2.pop %v3221
    %v3303 = vmul.f32 %v3302, 0.6931472
    %v3304 = vlog2.pop %v3224
    %v3305 = vmul.f32 %v3304, 0.6931472
    %v3306 = vlog2.pop %v3227
    %v3307 = vmul.f32 %v3306, 0.6931472
    %v3308 = vlog2.pop %v3230
    %v3309 = vmul.f32 %v3308, 0.6931472
    %v3310 = vlog2.pop %v3233
    %v3311 = vmul.f32 %v3310, 0.6931472
    %v3312 = vlog2.pop %v3236
    %v3313 = vmul.f32 %v3312, 0.6931472
    %v3314 = vlog2.pop %v3239
    %v3315 = vmul.f32 %v3314, 0.6931472
    %v3316 = vlog2.pop %v3242
    %v3317 = vmul.f32 %v3316, 0.6931472
    %v3318 = vlog2.pop %v3245
    %v3319 = vmul.f32 %v3318, 0.6931472
    %v3320 = vlog2.pop %v3248
    %v3321 = vmul.f32 %v3320, 0.6931472
    %v3322 = vlog2.pop %v3251
    %v3323 = vmul.f32 %v3322, 0.6931472
    %v3324 = vlog2.pop %v3254
    %v3325 = vmul.f32 %v3324, 0.6931472
    %v3326 = vlog2.pop %v3257
    %v3327 = vmul.f32 %v3326, 0.6931472
    %v3328 = vlog2.pop %v3260
    %v3329 = vmul.f32 %v3328, 0.6931472
    %v3330 = vlog2.pop %v3263
    %v3331 = vmul.f32 %v3330, 0.6931472
    %v3332 = vlog2.pop %v3266
    %v3333 = vmul.f32 %v3332, 0.6931472
    %v3334 = vlog2.pop %v3269
    %v3335 = vmul.f32 %v3334, 0.6931472
    %v3336 = vlog2.pop %v3272
    %v3337 = vmul.f32 %v3336, 0.6931472
    %v3338 = vlog2.pop %v3275
    %v3339 = vmul.f32 %v3338, 0.6931472
    %v3340 = vadd.f32 %v2990, %v3277
    %v3341 = vadd.f32 %v2993, %v3279
    %v3342 = vadd.f32 %v2996, %v3281
    %v3343 = vadd.f32 %v2999, %v3283
    %v3344 = vadd.f32 %v3002, %v3285
    %v3345 = vadd.f32 %v3005, %v3287
    %v3346 = vadd.f32 %v3008, %v3289
    %v3347 = vadd.f32 %v3011, %v3291
    %v3348 = vadd.f32 %v3014, %v3293
    %v3349 = vadd.f32 %v3017, %v3295
    %v3350 = vadd.f32 %v3020, %v3297
    %v3351 = vadd.f32 %v3023, %v3299
    %v3352 = vadd.f32 %v3026, %v3301
    %v3353 = vadd.f32 %v3029, %v3303
    %v3354 = vadd.f32 %v3032, %v3305
    %v3355 = vadd.f32 %v3035, %v3307
    %v3356 = vadd.f32 %v3038, %v3309
    %v3357 = vadd.f32 %v3041, %v3311
    %v3358 = vadd.f32 %v3044, %v3313
    %v3359 = vadd.f32 %v3047, %v3315
    %v3360 = vadd.f32 %v3050, %v3317
    %v3361 = vadd.f32 %v3053, %v3319
    %v3362 = vadd.f32 %v3056, %v3321
    %v3363 = vadd.f32 %v3059, %v3323
    %v3364 = vadd.f32 %v3062, %v3325
    %v3365 = vadd.f32 %v3065, %v3327
    %v3366 = vadd.f32 %v3068, %v3329
    %v3367 = vadd.f32 %v3071, %v3331
    %v3368 = vadd.f32 %v3074, %v3333
    %v3369 = vadd.f32 %v3077, %v3335
    %v3370 = vadd.f32 %v3080, %v3337
    %v3371 = vadd.f32 %v3083, %v3339
    %v3372 = vsub.f32 %v3340, %v2920
    %v3373 = vsub.f32 %v3341, %v2921
    %v3374 = vsub.f32 %v3342, %v2922
    %v3375 = vsub.f32 %v3343, %v2923
    %v3376 = vsub.f32 %v3344, %v2924
    %v3377 = vsub.f32 %v3345, %v2925
    %v3378 = vsub.f32 %v3346, %v2926
    %v3379 = vsub.f32 %v3347, %v2927
    %v3380 = vsub.f32 %v3348, %v2928
    %v3381 = vsub.f32 %v3349, %v2929
    %v3382 = vsub.f32 %v3350, %v2930
    %v3383 = vsub.f32 %v3351, %v2931
    %v3384 = vsub.f32 %v3352, %v2932
    %v3385 = vsub.f32 %v3353, %v2933
    %v3386 = vsub.f32 %v3354, %v2934
    %v3387 = vsub.f32 %v3355, %v2935
    %v3388 = vsub.f32 %v3356, %v2936
    %v3389 = vsub.f32 %v3357, %v2937
    %v3390 = vsub.f32 %v3358, %v2938
    %v3391 = vsub.f32 %v3359, %v2939
    %v3392 = vsub.f32 %v3360, %v2940
    %v3393 = vsub.f32 %v3361, %v2941
    %v3394 = vsub.f32 %v3362, %v2942
    %v3395 = vsub.f32 %v3363, %v2943
    %v3396 = vsub.f32 %v3364, %v2944
    %v3397 = vsub.f32 %v3365, %v2945
    %v3398 = vsub.f32 %v3366, %v2946
    %v3399 = vsub.f32 %v3367, %v2947
    %v3400 = vsub.f32 %v3368, %v2948
    %v3401 = vsub.f32 %v3369, %v2949
    %v3402 = vsub.f32 %v3370, %v2950
    %v3403 = vsub.f32 %v3371, %v2951
    %v3404 = vmax.f32 %v3372, 0.0
    %v3405 = vmax.f32 %v3373, 0.0
    %v3406 = vmax.f32 %v3374, 0.0
    %v3407 = vmax.f32 %v3375, 0.0
    %v3408 = vmax.f32 %v3376, 0.0
    %v3409 = vmax.f32 %v3377, 0.0
    %v3410 = vmax.f32 %v3378, 0.0
    %v3411 = vmax.f32 %v3379, 0.0
    %v3412 = vmax.f32 %v3380, 0.0
    %v3413 = vmax.f32 %v3381, 0.0
    %v3414 = vmax.f32 %v3382, 0.0
    %v3415 = vmax.f32 %v3383, 0.0
    %v3416 = vmax.f32 %v3384, 0.0
    %v3417 = vmax.f32 %v3385, 0.0
    %v3418 = vmax.f32 %v3386, 0.0
    %v3419 = vmax.f32 %v3387, 0.0
    %v3420 = vmax.f32 %v3388, 0.0
    %v3421 = vmax.f32 %v3389, 0.0
    %v3422 = vmax.f32 %v3390, 0.0
    %v3423 = vmax.f32 %v3391, 0.0
    %v3424 = vmax.f32 %v3392, 0.0
    %v3425 = vmax.f32 %v3393, 0.0
    %v3426 = vmax.f32 %v3394, 0.0
    %v3427 = vmax.f32 %v3395, 0.0
    %v3428 = vmax.f32 %v3396, 0.0
    %v3429 = vmax.f32 %v3397, 0.0
    %v3430 = vmax.f32 %v3398, 0.0
    %v3431 = vmax.f32 %v3399, 0.0
    %v3432 = vmax.f32 %v3400, 0.0
    %v3433 = vmax.f32 %v3401, 0.0
    %v3434 = vmax.f32 %v3402, 0.0
    %v3435 = vmax.f32 %v3403, 0.0
    %v3436 = vand.u32 2147483647, %v3372
    %v3437 = vand.u32 2147483647, %v3373
    %v3438 = vand.u32 2147483647, %v3374
    %v3439 = vand.u32 2147483647, %v3375
    %v3440 = vand.u32 2147483647, %v3376
    %v3441 = vand.u32 2147483647, %v3377
    %v3442 = vand.u32 2147483647, %v3378
    %v3443 = vand.u32 2147483647, %v3379
    %v3444 = vand.u32 2147483647, %v3380
    %v3445 = vand.u32 2147483647, %v3381
    %v3446 = vand.u32 2147483647, %v3382
    %v3447 = vand.u32 2147483647, %v3383
    %v3448 = vand.u32 2147483647, %v3384
    %v3449 = vand.u32 2147483647, %v3385
    %v3450 = vand.u32 2147483647, %v3386
    %v3451 = vand.u32 2147483647, %v3387
    %v3452 = vand.u32 2147483647, %v3388
    %v3453 = vand.u32 2147483647, %v3389
    %v3454 = vand.u32 2147483647, %v3390
    %v3455 = vand.u32 2147483647, %v3391
    %v3456 = vand.u32 2147483647, %v3392
    %v3457 = vand.u32 2147483647, %v3393
    %v3458 = vand.u32 2147483647, %v3394
    %v3459 = vand.u32 2147483647, %v3395
    %v3460 = vand.u32 2147483647, %v3396
    %v3461 = vand.u32 2147483647, %v3397
    %v3462 = vand.u32 2147483647, %v3398
    %v3463 = vand.u32 2147483647, %v3399
    %v3464 = vand.u32 2147483647, %v3400
    %v3465 = vand.u32 2147483647, %v3401
    %v3466 = vand.u32 2147483647, %v3402
    %v3467 = vand.u32 2147483647, %v3403
    %v3468 = vsub.f32 0.0, %v3436
    %v3469 = vsub.f32 0.0, %v3437
    %v3470 = vsub.f32 0.0, %v3438
    %v3471 = vsub.f32 0.0, %v3439
    %v3472 = vsub.f32 0.0, %v3440
    %v3473 = vsub.f32 0.0, %v3441
    %v3474 = vsub.f32 0.0, %v3442
    %v3475 = vsub.f32 0.0, %v3443
    %v3476 = vsub.f32 0.0, %v3444
    %v3477 = vsub.f32 0.0, %v3445
    %v3478 = vsub.f32 0.0, %v3446
    %v3479 = vsub.f32 0.0, %v3447
    %v3480 = vsub.f32 0.0, %v3448
    %v3481 = vsub.f32 0.0, %v3449
    %v3482 = vsub.f32 0.0, %v3450
    %v3483 = vsub.f32 0.0, %v3451
    %v3484 = vsub.f32 0.0, %v3452
    %v3485 = vsub.f32 0.0, %v3453
    %v3486 = vsub.f32 0.0, %v3454
    %v3487 = vsub.f32 0.0, %v3455
    %v3488 = vsub.f32 0.0, %v3456
    %v3489 = vsub.f32 0.0, %v3457
    %v3490 = vsub.f32 0.0, %v3458
    %v3491 = vsub.f32 0.0, %v3459
    %v3492 = vsub.f32 0.0, %v3460
    %v3493 = vsub.f32 0.0, %v3461
    %v3494 = vsub.f32 0.0, %v3462
    %v3495 = vsub.f32 0.0, %v3463
    %v3496 = vsub.f32 0.0, %v3464
    %v3497 = vsub.f32 0.0, %v3465
    %v3498 = vsub.f32 0.0, %v3466
    %v3499 = vsub.f32 0.0, %v3467
    %v3500 = vmul.f32 %v3468, 1.442695
    %v3501 = vpow.pop %v3500
    %v3502 = vmul.f32 %v3469, 1.442695
    %v3503 = vpow.pop %v3502
    %v3504 = vmul.f32 %v3470, 1.442695
    %v3505 = vpow.pop %v3504
    %v3506 = vmul.f32 %v3471, 1.442695
    %v3507 = vpow.pop %v3506
    %v3508 = vmul.f32 %v3472, 1.442695
    %v3509 = vpow.pop %v3508
    %v3510 = vmul.f32 %v3473, 1.442695
    %v3511 = vpow.pop %v3510
    %v3512 = vmul.f32 %v3474, 1.442695
    %v3513 = vpow.pop %v3512
    %v3514 = vmul.f32 %v3475, 1.442695
    %v3515 = vpow.pop %v3514
    %v3516 = vmul.f32 %v3476, 1.442695
    %v3517 = vpow.pop %v3516
    %v3518 = vmul.f32 %v3477, 1.442695
    %v3519 = vpow.pop %v3518
    %v3520 = vmul.f32 %v3478, 1.442695
    %v3521 = vpow.pop %v3520
    %v3522 = vmul.f32 %v3479, 1.442695
    %v3523 = vpow.pop %v3522
    %v3524 = vmul.f32 %v3480, 1.442695
    %v3525 = vpow.pop %v3524
    %v3526 = vmul.f32 %v3481, 1.442695
    %v3527 = vpow.pop %v3526
    %v3528 = vmul.f32 %v3482, 1.442695
    %v3529 = vpow.pop %v3528
    %v3530 = vmul.f32 %v3483, 1.442695
    %v3531 = vpow.pop %v3530
    %v3532 = vmul.f32 %v3484, 1.442695
    %v3533 = vpow.pop %v3532
    %v3534 = vmul.f32 %v3485, 1.442695
    %v3535 = vpow.pop %v3534
    %v3536 = vmul.f32 %v3486, 1.442695
    %v3537 = vpow.pop %v3536
    %v3538 = vmul.f32 %v3487, 1.442695
    %v3539 = vpow.pop %v3538
    %v3540 = vmul.f32 %v3488, 1.442695
    %v3541 = vpow.pop %v3540
    %v3542 = vmul.f32 %v3489, 1.442695
    %v3543 = vpow.pop %v3542
    %v3544 = vmul.f32 %v3490, 1.442695
    %v3545 = vpow.pop %v3544
    %v3546 = vmul.f32 %v3491, 1.442695
    %v3547 = vpow.pop %v3546
    %v3548 = vmul.f32 %v3492, 1.442695
    %v3549 = vpow.pop %v3548
    %v3550 = vmul.f32 %v3493, 1.442695
    %v3551 = vpow.pop %v3550
    %v3552 = vmul.f32 %v3494, 1.442695
    %v3553 = vpow.pop %v3552
    %v3554 = vmul.f32 %v3495, 1.442695
    %v3555 = vpow.pop %v3554
    %v3556 = vmul.f32 %v3496, 1.442695
    %v3557 = vpow.pop %v3556
    %v3558 = vmul.f32 %v3497, 1.442695
    %v3559 = vpow.pop %v3558
    %v3560 = vmul.f32 %v3498, 1.442695
    %v3561 = vpow.pop %v3560
    %v3562 = vmul.f32 %v3499, 1.442695
    %v3563 = vpow.pop %v3562
    %v3564 = vadd.f32 %v3501, 1.0
    %v3565 = vadd.f32 %v3503, 1.0
    %v3566 = vadd.f32 %v3505, 1.0
    %v3567 = vadd.f32 %v3507, 1.0
    %v3568 = vadd.f32 %v3509, 1.0
    %v3569 = vadd.f32 %v3511, 1.0
    %v3570 = vadd.f32 %v3513, 1.0
    %v3571 = vadd.f32 %v3515, 1.0
    %v3572 = vadd.f32 %v3517, 1.0
    %v3573 = vadd.f32 %v3519, 1.0
    %v3574 = vadd.f32 %v3521, 1.0
    %v3575 = vadd.f32 %v3523, 1.0
    %v3576 = vadd.f32 %v3525, 1.0
    %v3577 = vadd.f32 %v3527, 1.0
    %v3578 = vadd.f32 %v3529, 1.0
    %v3579 = vadd.f32 %v3531, 1.0
    %v3580 = vadd.f32 %v3533, 1.0
    %v3581 = vadd.f32 %v3535, 1.0
    %v3582 = vadd.f32 %v3537, 1.0
    %v3583 = vadd.f32 %v3539, 1.0
    %v3584 = vadd.f32 %v3541, 1.0
    %v3585 = vadd.f32 %v3543, 1.0
    %v3586 = vadd.f32 %v3545, 1.0
    %v3587 = vadd.f32 %v3547, 1.0
    %v3588 = vadd.f32 %v3549, 1.0
    %v3589 = vadd.f32 %v3551, 1.0
    %v3590 = vadd.f32 %v3553, 1.0
    %v3591 = vadd.f32 %v3555, 1.0
    %v3592 = vadd.f32 %v3557, 1.0
    %v3593 = vadd.f32 %v3559, 1.0
    %v3594 = vadd.f32 %v3561, 1.0
    %v3595 = vadd.f32 %v3563, 1.0
    %v3596 = vlog2.pop %v3564
    %v3597 = vmul.f32 %v3596, 0.6931472
    %v3598 = vlog2.pop %v3565
    %v3599 = vmul.f32 %v3598, 0.6931472
    %v3600 = vlog2.pop %v3566
    %v3601 = vmul.f32 %v3600, 0.6931472
    %v3602 = vlog2.pop %v3567
    %v3603 = vmul.f32 %v3602, 0.6931472
    %v3604 = vlog2.pop %v3568
    %v3605 = vmul.f32 %v3604, 0.6931472
    %v3606 = vlog2.pop %v3569
    %v3607 = vmul.f32 %v3606, 0.6931472
    %v3608 = vlog2.pop %v3570
    %v3609 = vmul.f32 %v3608, 0.6931472
    %v3610 = vlog2.pop %v3571
    %v3611 = vmul.f32 %v3610, 0.6931472
    %v3612 = vlog2.pop %v3572
    %v3613 = vmul.f32 %v3612, 0.6931472
    %v3614 = vlog2.pop %v3573
    %v3615 = vmul.f32 %v3614, 0.6931472
    %v3616 = vlog2.pop %v3574
    %v3617 = vmul.f32 %v3616, 0.6931472
    %v3618 = vlog2.pop %v3575
    %v3619 = vmul.f32 %v3618, 0.6931472
    %v3620 = vlog2.pop %v3576
    %v3621 = vmul.f32 %v3620, 0.6931472
    %v3622 = vlog2.pop %v3577
    %v3623 = vmul.f32 %v3622, 0.6931472
    %v3624 = vlog2.pop %v3578
    %v3625 = vmul.f32 %v3624, 0.6931472
    %v3626 = vlog2.pop %v3579
    %v3627 = vmul.f32 %v3626, 0.6931472
    %v3628 = vlog2.pop %v3580
    %v3629 = vmul.f32 %v3628, 0.6931472
    %v3630 = vlog2.pop %v3581
    %v3631 = vmul.f32 %v3630, 0.6931472
    %v3632 = vlog2.pop %v3582
    %v3633 = vmul.f32 %v3632, 0.6931472
    %v3634 = vlog2.pop %v3583
    %v3635 = vmul.f32 %v3634, 0.6931472
    %v3636 = vlog2.pop %v3584
    %v3637 = vmul.f32 %v3636, 0.6931472
    %v3638 = vlog2.pop %v3585
    %v3639 = vmul.f32 %v3638, 0.6931472
    %v3640 = vlog2.pop %v3586
    %v3641 = vmul.f32 %v3640, 0.6931472
    %v3642 = vlog2.pop %v3587
    %v3643 = vmul.f32 %v3642, 0.6931472
    %v3644 = vlog2.pop %v3588
    %v3645 = vmul.f32 %v3644, 0.6931472
    %v3646 = vlog2.pop %v3589
    %v3647 = vmul.f32 %v3646, 0.6931472
    %v3648 = vlog2.pop %v3590
    %v3649 = vmul.f32 %v3648, 0.6931472
    %v3650 = vlog2.pop %v3591
    %v3651 = vmul.f32 %v3650, 0.6931472
    %v3652 = vlog2.pop %v3592
    %v3653 = vmul.f32 %v3652, 0.6931472
    %v3654 = vlog2.pop %v3593
    %v3655 = vmul.f32 %v3654, 0.6931472
    %v3656 = vlog2.pop %v3594
    %v3657 = vmul.f32 %v3656, 0.6931472
    %v3658 = vlog2.pop %v3595
    %v3659 = vmul.f32 %v3658, 0.6931472
    %v3660 = vadd.f32 %v3404, %v3597
    %v3661 = vadd.f32 %v3405, %v3599
    %v3662 = vadd.f32 %v3406, %v3601
    %v3663 = vadd.f32 %v3407, %v3603
    %v3664 = vadd.f32 %v3408, %v3605
    %v3665 = vadd.f32 %v3409, %v3607
    %v3666 = vadd.f32 %v3410, %v3609
    %v3667 = vadd.f32 %v3411, %v3611
    %v3668 = vadd.f32 %v3412, %v3613
    %v3669 = vadd.f32 %v3413, %v3615
    %v3670 = vadd.f32 %v3414, %v3617
    %v3671 = vadd.f32 %v3415, %v3619
    %v3672 = vadd.f32 %v3416, %v3621
    %v3673 = vadd.f32 %v3417, %v3623
    %v3674 = vadd.f32 %v3418, %v3625
    %v3675 = vadd.f32 %v3419, %v3627
    %v3676 = vadd.f32 %v3420, %v3629
    %v3677 = vadd.f32 %v3421, %v3631
    %v3678 = vadd.f32 %v3422, %v3633
    %v3679 = vadd.f32 %v3423, %v3635
    %v3680 = vadd.f32 %v3424, %v3637
    %v3681 = vadd.f32 %v3425, %v3639
    %v3682 = vadd.f32 %v3426, %v3641
    %v3683 = vadd.f32 %v3427, %v3643
    %v3684 = vadd.f32 %v3428, %v3645
    %v3685 = vadd.f32 %v3429, %v3647
    %v3686 = vadd.f32 %v3430, %v3649
    %v3687 = vadd.f32 %v3431, %v3651
    %v3688 = vadd.f32 %v3432, %v3653
    %v3689 = vadd.f32 %v3433, %v3655
    %v3690 = vadd.f32 %v3434, %v3657
    %v3691 = vadd.f32 %v3435, %v3659
    %v3692 = vsel %vm2954, 0.0, %v3660
    %v3693 = vsel %vm2954, 0.0, %v3661
    %v3694 = vsel %vm2954, 0.0, %v3662
    %v3695 = vsel %vm2954, 0.0, %v3663
    %v3696 = vsel %vm2954, 0.0, %v3664
    %v3697 = vsel %vm2954, 0.0, %v3665
    %v3698 = vsel %vm2954, 0.0, %v3666
    %v3699 = vsel %vm2954, 0.0, %v3667
    %v3700 = vsel %vm2954, 0.0, %v3668
    %v3701 = vsel %vm2954, 0.0, %v3669
    %v3702 = vsel %vm2954, 0.0, %v3670
    %v3703 = vsel %vm2954, 0.0, %v3671
    %v3704 = vsel %vm2954, 0.0, %v3672
    %v3705 = vsel %vm2954, 0.0, %v3673
    %v3706 = vsel %vm2954, 0.0, %v3674
    %v3707 = vsel %vm2954, 0.0, %v3675
    %v3708 = vsel %vm2954, 0.0, %v3676
    %v3709 = vsel %vm2954, 0.0, %v3677
    %v3710 = vsel %vm2954, 0.0, %v3678
    %v3711 = vsel %vm2954, 0.0, %v3679
    %v3712 = vsel %vm2954, 0.0, %v3680
    %v3713 = vsel %vm2954, 0.0, %v3681
    %v3714 = vsel %vm2954, 0.0, %v3682
    %v3715 = vsel %vm2954, 0.0, %v3683
    %v3716 = vsel %vm2954, 0.0, %v3684
    %v3717 = vsel %vm2954, 0.0, %v3685
    %v3718 = vsel %vm2954, 0.0, %v3686
    %v3719 = vsel %vm2954, 0.0, %v3687
    %v3720 = vsel %vm2954, 0.0, %v3688
    %v3721 = vsel %vm2954, 0.0, %v3689
    %v3722 = vsel %vm2954, 0.0, %v3690
    %v3723 = vsel %vm2954, 0.0, %v3691
    %v3724 = vsel %vm2987, %v3692, 0.0
    %3725 = vadd.xlane.f32.xlu0 %v3724
    %v3726 = vpop.xlane.xlu0 %3725
    %v3727 = vsel %vm2987, %v3693, 0.0
    %3728 = vadd.xlane.f32.xlu0 %v3727
    %v3729 = vpop.xlane.xlu0 %3728
    %v3730 = vsel %vm2987, %v3694, 0.0
    %3731 = vadd.xlane.f32.xlu0 %v3730
    %v3732 = vpop.xlane.xlu0 %3731
    %v3733 = vsel %vm2987, %v3695, 0.0
    %3734 = vadd.xlane.f32.xlu0 %v3733
    %v3735 = vpop.xlane.xlu0 %3734
    %v3736 = vsel %vm2987, %v3696, 0.0
    %3737 = vadd.xlane.f32.xlu0 %v3736
    %v3738 = vpop.xlane.xlu0 %3737
    %v3739 = vsel %vm2987, %v3697, 0.0
    %3740 = vadd.xlane.f32.xlu0 %v3739
    %v3741 = vpop.xlane.xlu0 %3740
    %v3742 = vsel %vm2987, %v3698, 0.0
    %3743 = vadd.xlane.f32.xlu0 %v3742
    %v3744 = vpop.xlane.xlu0 %3743
    %v3745 = vsel %vm2987, %v3699, 0.0
    %3746 = vadd.xlane.f32.xlu0 %v3745
    %v3747 = vpop.xlane.xlu0 %3746
    %v3748 = vsel %vm2987, %v3700, 0.0
    %3749 = vadd.xlane.f32.xlu0 %v3748
    %v3750 = vpop.xlane.xlu0 %3749
    %v3751 = vsel %vm2987, %v3701, 0.0
    %3752 = vadd.xlane.f32.xlu0 %v3751
    %v3753 = vpop.xlane.xlu0 %3752
    %v3754 = vsel %vm2987, %v3702, 0.0
    %3755 = vadd.xlane.f32.xlu0 %v3754
    %v3756 = vpop.xlane.xlu0 %3755
    %v3757 = vsel %vm2987, %v3703, 0.0
    %3758 = vadd.xlane.f32.xlu0 %v3757
    %v3759 = vpop.xlane.xlu0 %3758
    %v3760 = vsel %vm2987, %v3704, 0.0
    %3761 = vadd.xlane.f32.xlu0 %v3760
    %v3762 = vpop.xlane.xlu0 %3761
    %v3763 = vsel %vm2987, %v3705, 0.0
    %3764 = vadd.xlane.f32.xlu0 %v3763
    %v3765 = vpop.xlane.xlu0 %3764
    %v3766 = vsel %vm2987, %v3706, 0.0
    %3767 = vadd.xlane.f32.xlu0 %v3766
    %v3768 = vpop.xlane.xlu0 %3767
    %v3769 = vsel %vm2987, %v3707, 0.0
    %3770 = vadd.xlane.f32.xlu0 %v3769
    %v3771 = vpop.xlane.xlu0 %3770
    %v3772 = vsel %vm2987, %v3708, 0.0
    %3773 = vadd.xlane.f32.xlu0 %v3772
    %v3774 = vpop.xlane.xlu0 %3773
    %v3775 = vsel %vm2987, %v3709, 0.0
    %3776 = vadd.xlane.f32.xlu0 %v3775
    %v3777 = vpop.xlane.xlu0 %3776
    %v3778 = vsel %vm2987, %v3710, 0.0
    %3779 = vadd.xlane.f32.xlu0 %v3778
    %v3780 = vpop.xlane.xlu0 %3779
    %v3781 = vsel %vm2987, %v3711, 0.0
    %3782 = vadd.xlane.f32.xlu0 %v3781
    %v3783 = vpop.xlane.xlu0 %3782
    %v3784 = vsel %vm2987, %v3712, 0.0
    %3785 = vadd.xlane.f32.xlu0 %v3784
    %v3786 = vpop.xlane.xlu0 %3785
    %v3787 = vsel %vm2987, %v3713, 0.0
    %3788 = vadd.xlane.f32.xlu0 %v3787
    %v3789 = vpop.xlane.xlu0 %3788
    %v3790 = vsel %vm2987, %v3714, 0.0
    %3791 = vadd.xlane.f32.xlu0 %v3790
    %v3792 = vpop.xlane.xlu0 %3791
    %v3793 = vsel %vm2987, %v3715, 0.0
    %3794 = vadd.xlane.f32.xlu0 %v3793
    %v3795 = vpop.xlane.xlu0 %3794
    %v3796 = vsel %vm2987, %v3716, 0.0
    %3797 = vadd.xlane.f32.xlu0 %v3796
    %v3798 = vpop.xlane.xlu0 %3797
    %v3799 = vsel %vm2987, %v3717, 0.0
    %3800 = vadd.xlane.f32.xlu0 %v3799
    %v3801 = vpop.xlane.xlu0 %3800
    %v3802 = vsel %vm2987, %v3718, 0.0
    %3803 = vadd.xlane.f32.xlu0 %v3802
    %v3804 = vpop.xlane.xlu0 %3803
    %v3805 = vsel %vm2987, %v3719, 0.0
    %3806 = vadd.xlane.f32.xlu0 %v3805
    %v3807 = vpop.xlane.xlu0 %3806
    %v3808 = vsel %vm2987, %v3720, 0.0
    %3809 = vadd.xlane.f32.xlu0 %v3808
    %v3810 = vpop.xlane.xlu0 %3809
    %v3811 = vsel %vm2987, %v3721, 0.0
    %3812 = vadd.xlane.f32.xlu0 %v3811
    %v3813 = vpop.xlane.xlu0 %3812
    %v3814 = vsel %vm2987, %v3722, 0.0
    %3815 = vadd.xlane.f32.xlu0 %v3814
    %v3816 = vpop.xlane.xlu0 %3815
    %v3817 = vsel %vm2987, %v3723, 0.0
    %3818 = vadd.xlane.f32.xlu0 %v3817
    %v3819 = vpop.xlane.xlu0 %3818
    %v3852 = vlaneseq
    %v3853 = vshrl.u32 %v3852, 7
    %v3854 = vsub.s32 %v2953, %v3853
    %v3855 = vrot.slane %v3726, %v3854
    %v3856 = vadd.s32 %v2953, 4294967288
    %v3857 = vlaneseq
    %v3858 = vshrl.u32 %v3857, 7
    %v3859 = vsub.s32 %v3856, %v3858
    %v3860 = vrot.slane %v3729, %v3859
    %vm3861 = vcmask 130112
    %v3862 = vsel %vm3861, %v3860, %v3855
    %v3863 = vadd.s32 %v2953, 4294967280
    %v3864 = vlaneseq
    %v3865 = vshrl.u32 %v3864, 7
    %v3866 = vsub.s32 %v3863, %v3865
    %v3867 = vrot.slane %v3732, %v3866
    %vm3868 = vcmask 195712
    %v3869 = vsel %vm3868, %v3867, %v3862
    %v3870 = vadd.s32 %v2953, 4294967272
    %v3871 = vlaneseq
    %v3872 = vshrl.u32 %v3871, 7
    %v3873 = vsub.s32 %v3870, %v3872
    %v3874 = vrot.slane %v3735, %v3873
    %vm3875 = vcmask 261312
    %v3876 = vsel %vm3875, %v3874, %v3869
    %v3877 = vlaneseq
    %v3878 = vshrl.u32 %v3877, 7
    %v3879 = vsub.s32 %v2953, %v3878
    %v3880 = vrot.slane %v3738, %v3879
    %v3881 = vlaneseq
    %v3882 = vshrl.u32 %v3881, 7
    %v3883 = vsub.s32 %v3856, %v3882
    %v3884 = vrot.slane %v3741, %v3883
    %v3885 = vsel %vm3861, %v3884, %v3880
    %v3886 = vlaneseq
    %v3887 = vshrl.u32 %v3886, 7
    %v3888 = vsub.s32 %v3863, %v3887
    %v3889 = vrot.slane %v3744, %v3888
    %v3890 = vsel %vm3868, %v3889, %v3885
    %v3891 = vlaneseq
    %v3892 = vshrl.u32 %v3891, 7
    %v3893 = vsub.s32 %v3870, %v3892
    %v3894 = vrot.slane %v3747, %v3893
    %v3895 = vsel %vm3875, %v3894, %v3890
    %v3896 = vlaneseq
    %v3897 = vshrl.u32 %v3896, 7
    %v3898 = vsub.s32 %v2953, %v3897
    %v3899 = vrot.slane %v3750, %v3898
    %v3900 = vlaneseq
    %v3901 = vshrl.u32 %v3900, 7
    %v3902 = vsub.s32 %v3856, %v3901
    %v3903 = vrot.slane %v3753, %v3902
    %v3904 = vsel %vm3861, %v3903, %v3899
    %v3905 = vlaneseq
    %v3906 = vshrl.u32 %v3905, 7
    %v3907 = vsub.s32 %v3863, %v3906
    %v3908 = vrot.slane %v3756, %v3907
    %v3909 = vsel %vm3868, %v3908, %v3904
    %v3910 = vlaneseq
    %v3911 = vshrl.u32 %v3910, 7
    %v3912 = vsub.s32 %v3870, %v3911
    %v3913 = vrot.slane %v3759, %v3912
    %v3914 = vsel %vm3875, %v3913, %v3909
    %v3915 = vlaneseq
    %v3916 = vshrl.u32 %v3915, 7
    %v3917 = vsub.s32 %v2953, %v3916
    %v3918 = vrot.slane %v3762, %v3917
    %v3919 = vlaneseq
    %v3920 = vshrl.u32 %v3919, 7
    %v3921 = vsub.s32 %v3856, %v3920
    %v3922 = vrot.slane %v3765, %v3921
    %v3923 = vsel %vm3861, %v3922, %v3918
    %v3924 = vlaneseq
    %v3925 = vshrl.u32 %v3924, 7
    %v3926 = vsub.s32 %v3863, %v3925
    %v3927 = vrot.slane %v3768, %v3926
    %v3928 = vsel %vm3868, %v3927, %v3923
    %v3929 = vlaneseq
    %v3930 = vshrl.u32 %v3929, 7
    %v3931 = vsub.s32 %v3870, %v3930
    %v3932 = vrot.slane %v3771, %v3931
    %v3933 = vsel %vm3875, %v3932, %v3928
    %v3934 = vlaneseq
    %v3935 = vshrl.u32 %v3934, 7
    %v3936 = vsub.s32 %v2953, %v3935
    %v3937 = vrot.slane %v3774, %v3936
    %v3938 = vlaneseq
    %v3939 = vshrl.u32 %v3938, 7
    %v3940 = vsub.s32 %v3856, %v3939
    %v3941 = vrot.slane %v3777, %v3940
    %v3942 = vsel %vm3861, %v3941, %v3937
    %v3943 = vlaneseq
    %v3944 = vshrl.u32 %v3943, 7
    %v3945 = vsub.s32 %v3863, %v3944
    %v3946 = vrot.slane %v3780, %v3945
    %v3947 = vsel %vm3868, %v3946, %v3942
    %v3948 = vlaneseq
    %v3949 = vshrl.u32 %v3948, 7
    %v3950 = vsub.s32 %v3870, %v3949
    %v3951 = vrot.slane %v3783, %v3950
    %v3952 = vsel %vm3875, %v3951, %v3947
    %v3953 = vlaneseq
    %v3954 = vshrl.u32 %v3953, 7
    %v3955 = vsub.s32 %v2953, %v3954
    %v3956 = vrot.slane %v3786, %v3955
    %v3957 = vlaneseq
    %v3958 = vshrl.u32 %v3957, 7
    %v3959 = vsub.s32 %v3856, %v3958
    %v3960 = vrot.slane %v3789, %v3959
    %v3961 = vsel %vm3861, %v3960, %v3956
    %v3962 = vlaneseq
    %v3963 = vshrl.u32 %v3962, 7
    %v3964 = vsub.s32 %v3863, %v3963
    %v3965 = vrot.slane %v3792, %v3964
    %v3966 = vsel %vm3868, %v3965, %v3961
    %v3967 = vlaneseq
    %v3968 = vshrl.u32 %v3967, 7
    %v3969 = vsub.s32 %v3870, %v3968
    %v3970 = vrot.slane %v3795, %v3969
    %v3971 = vsel %vm3875, %v3970, %v3966
    %v3972 = vlaneseq
    %v3973 = vshrl.u32 %v3972, 7
    %v3974 = vsub.s32 %v2953, %v3973
    %v3975 = vrot.slane %v3798, %v3974
    %v3976 = vlaneseq
    %v3977 = vshrl.u32 %v3976, 7
    %v3978 = vsub.s32 %v3856, %v3977
    %v3979 = vrot.slane %v3801, %v3978
    %v3980 = vsel %vm3861, %v3979, %v3975
    %v3981 = vlaneseq
    %v3982 = vshrl.u32 %v3981, 7
    %v3983 = vsub.s32 %v3863, %v3982
    %v3984 = vrot.slane %v3804, %v3983
    %v3985 = vsel %vm3868, %v3984, %v3980
    %v3986 = vlaneseq
    %v3987 = vshrl.u32 %v3986, 7
    %v3988 = vsub.s32 %v3870, %v3987
    %v3989 = vrot.slane %v3807, %v3988
    %v3990 = vsel %vm3875, %v3989, %v3985
    %v3991 = vlaneseq
    %v3992 = vshrl.u32 %v3991, 7
    %v3993 = vsub.s32 %v2953, %v3992
    %v3994 = vrot.slane %v3810, %v3993
    %v3995 = vlaneseq
    %v3996 = vshrl.u32 %v3995, 7
    %v3997 = vsub.s32 %v3856, %v3996
    %v3998 = vrot.slane %v3813, %v3997
    %v3999 = vsel %vm3861, %v3998, %v3994
    %v4000 = vlaneseq
    %v4001 = vshrl.u32 %v4000, 7
    %v4002 = vsub.s32 %v3863, %v4001
    %v4003 = vrot.slane %v3816, %v4002
    %v4004 = vsel %vm3868, %v4003, %v3999
    %v4005 = vlaneseq
    %v4006 = vshrl.u32 %v4005, 7
    %v4007 = vsub.s32 %v3870, %v4006
    %v4008 = vrot.slane %v3819, %v4007
    %v4009 = vsel %vm3875, %v4008, %v4004
    %vm4010 = vcmask 1041409
    %v4011 = vsel %vm4010, %v3895, %v3876
    %vm4012 = vcmask 1042434
    %v4013 = vsel %vm4012, %v3914, %v4011
    %vm4014 = vcmask 1043459
    %v4015 = vsel %vm4014, %v3933, %v4013
    %vm4016 = vcmask 1044484
    %v4017 = vsel %vm4016, %v3952, %v4015
    %vm4018 = vcmask 1045509
    %v4019 = vsel %vm4018, %v3971, %v4017
    %vm4020 = vcmask 1046534
    %v4021 = vsel %vm4020, %v3990, %v4019
    %vm4022 = vcmask 1047559
    %v4023 = vsel %vm4022, %v4009, %v4021
    %v4025 = vsel %vm377, %v4023, 0.0
    %4026 = vadd.xlane.f32.xlu0 %v4025
    %v4027 = vpop.xlane.xlu0 %4026
    %v4028 = vmul.f32 %v4027, 0.0009765625
    %4029 = vst [vmem:[#allocation2] sm:$0xff] %v4028
    // Predicated region
    $region18: #{tpu_custom_call.1} parent=1 // pred_check
      _
    $region19: #{tpu_custom_call.1} parent=1 // pred_check_branch
      %4031 = sbr.rel (0) target = $region21
    $region20: #{tpu_custom_call.1} parent=1 // pred_region
      %s4033 = ssub.s32 128, 128
      %4034 = vsyncadd [#allocation3], %s4033
      %s4036 = sshll.u32 [#allocation2], 4
      %s4037 = int_to_ptr.vmem [resolvable:$true] %s4036
      %4039 = dma.vmem_to_hbm [thread:$0]  %s4037, 128, %s4, [#allocation3]
    $region21: #{tpu_custom_call.1} parent=1 // pred_fallthru
      _
    // Predicated region
    $region22: #{tpu_custom_call.1} parent=1 // pred_check
      _
    $region23: #{tpu_custom_call.1} parent=1 // pred_check_branch
      %4041 = sbr.rel (0) target = $region25
    $region24: #{tpu_custom_call.1} parent=1 // pred_region
      %4042 = dma.done [#allocation3], 128
    $region25: #{tpu_custom_call.1} parent=1 // pred_fallthru
      _
    %4043 = vsyncpa [#allocation3], 1

</llo_original>
